<compile_context>
chip_gen: v5e
topology: v5e:2x2
jax: 0.10.0
libtpu: 0.0.40
codegen_flags: <defaults>
</compile_context>

<pallas_src>
import math
from functools import partial

import jax
import jax.numpy as jnp
from jax.experimental import pallas as pl
from jax.experimental.pallas import tpu as pltpu

EMBED_DIM = 12
NUM_HEADS = 1
NUM_LAYERS = 2
SEQ_LEN = 6
VOCAB_SIZE = 10          # len(range(1, 10)) + 1
MLP_HIDDEN = 128
HEAD_DIM = EMBED_DIM // NUM_HEADS
LN_EPS = 1e-5

OUT_PAD = 128            # lane-dense logits width (first VOCAB_SIZE columns are real)
MAX_B_TILE = 16          # sequences fused per grid step (vreg pressure / softmax-waste sweet spot)
NEG_INF = -1e30

# Full-precision f32 matmuls everywhere (kernel, reference, host-side folding) so the
# correctness check is not polluted by default bf16 MXU passes.
MXU_PREC = jax.lax.Precision.HIGHEST


def _round_up(x, m):
    return (x + m - 1) // m * m


def _pick_b_tile(B):
    # ROWS = b_tile * SEQ_LEN must be a multiple of 8 -> b_tile a multiple of 4.
    # Once the batch is big enough, aim for >= 2 grid steps so both of v7x's TensorCores get
    # work (grid axis is "parallel"); cap at MAX_B_TILE so the quadratic (ROWS x ROWS)
    # masked-softmax waste and vreg pressure stay bounded.
    if B <= 4:
        return _round_up(max(B, 1), 4)
    return min(MAX_B_TILE, _round_up(-(-B // 2), 4))


def _dot(a, b):
    return jnp.dot(a, b, precision=MXU_PREC, preferred_element_type=jnp.float32)


def _layer_norm(x):
    # Affine (gamma/beta) is folded into the following Linear weights host-side.
    mean = jnp.mean(x, axis=-1, keepdims=True)
    xc = x - mean
    var = jnp.mean(xc * xc, axis=-1, keepdims=True)
    return xc * jax.lax.rsqrt(var + LN_EPS)


def tiny_transformer_kernel(
    tok_ref,                                   # (ROWS, 1) int32
    proj_w_ref,                                # (V, D)
    pos_bias_ref,                              # (ROWS, D)   = tile(pos + proj_b)
    attn_bias_ref,                             # (ROWS, ROWS) block-diagonal mask bias
    q_w_ref, q_b_ref,                          # (L, D, D), (L, 1, D)   ln1- and 1/sqrt(d)-folded
    k_w_ref, k_b_ref,                          # (L, D, D), (L, 1, D)   ln1-folded
    vo_w_ref, vo_b_ref,                        # (L, D, D), (L, 1, D)   ln1- and o_w-folded
    o_b_ref,                                   # (L, 1, D)
    fc1_w_ref, fc1_b_ref,                      # (L, D, H), (L, 1, H)   ln2-folded
    fc2_w_ref, fc2_b_ref,                      # (L, H, D), (L, 1, D)
    out_w_ref, out_b_ref,                      # (D, OUT_PAD), (1, OUT_PAD)
    out_ref,                                   # (ROWS, OUT_PAD)
):
    rows = tok_ref.shape[0]
    tok = tok_ref[...]                                            # (ROWS, 1) int32

    # Lane-major one-hot (vocab on the lane axis) feeds the embedding matmul directly.
    iota_v = jax.lax.broadcasted_iota(jnp.int32, (rows, VOCAB_SIZE), 1)
    onehot = (iota_v == tok).astype(jnp.float32)                  # (ROWS, V)

    h = _dot(onehot, proj_w_ref[...]) + pos_bias_ref[...]         # (ROWS, D)
    attn_bias = attn_bias_ref[...]                                # (ROWS, ROWS)

    for l in range(NUM_LAYERS):
        # --- self-attention sub-block (num_heads == 1 -> head == full dim) ---
        xn = _layer_norm(h)
        q = _dot(xn, q_w_ref[l]) + q_b_ref[l]                     # (ROWS, D), already * 1/sqrt(d)
        k = _dot(xn, k_w_ref[l]) + k_b_ref[l]                     # (ROWS, D)
        vo = _dot(xn, vo_w_ref[l]) + vo_b_ref[l]                  # (ROWS, D) = v @ o_w

        # Scores over the whole fused batch; block-diagonal bias masks cross-sequence pairs.
        s = jax.lax.dot_general(q, k, (((1,), (1,)), ((), ())),
                                precision=MXU_PREC,
                                preferred_element_type=jnp.float32)   # (ROWS, ROWS)
        s = s + attn_bias
        s = s - jnp.max(s, axis=-1, keepdims=True)
        p = jnp.exp(s)                                            # masked entries underflow to 0
        p = p * (1.0 / jnp.sum(p, axis=-1, keepdims=True))        # exact normalization

        attn = _dot(p, vo) + o_b_ref[l]                           # (ROWS, D)
        h = h + attn

        # --- MLP sub-block ---
        xn2 = _layer_norm(h)
        m = _dot(xn2, fc1_w_ref[l]) + fc1_b_ref[l]
        m = jnp.maximum(m, 0.0)
        m = _dot(m, fc2_w_ref[l]) + fc2_b_ref[l]
        h = h + m

    # Lane-dense logits slab (columns >= VOCAB_SIZE are zero, sliced off outside the kernel).
    out_ref[...] = _dot(h, out_w_ref[...]) + out_b_ref[...]


def prepare_params(params, b_tile):
    """One-time host-side packing: call once, reuse the result for every forward call."""
    L, D, V, H, T = NUM_LAYERS, EMBED_DIM, VOCAB_SIZE, MLP_HIDDEN, SEQ_LEN
    inv_sqrt_hd = 1.0 / math.sqrt(HEAD_DIM)

    def fold_ln(w_ln, b_ln, W, c):
        # LayerNorm affine folded into the following Linear:
        #   (xn*w + b) @ W + c == xn @ (w^T * W) + (b @ W + c)
        Wf = jnp.transpose(w_ln, (0, 2, 1)) * W                       # (L,D,1)*(L,D,N)
        cf = jnp.matmul(b_ln, W, precision=MXU_PREC) + c              # (L,1,N)
        return Wf, cf

    q_w, q_b = fold_ln(params["ln1_w"], params["ln1_b"], params["q_w"], params["q_b"])
    q_w, q_b = q_w * inv_sqrt_hd, q_b * inv_sqrt_hd                   # fold 1/sqrt(head_dim)
    k_w, k_b = fold_ln(params["ln1_w"], params["ln1_b"], params["k_w"], params["k_b"])
    v_w, v_b = fold_ln(params["ln1_w"], params["ln1_b"], params["v_w"], params["v_b"])
    # Reassociate (p @ v) @ o_w -> p @ (v @ o_w): fold out_proj weight into the v path.
    vo_w = jnp.matmul(v_w, params["o_w"], precision=MXU_PREC)         # (L, D, D)
    vo_b = jnp.matmul(v_b, params["o_w"], precision=MXU_PREC)         # (L, 1, D)
    fc1_w, fc1_b = fold_ln(params["ln2_w"], params["ln2_b"], params["fc1_w"], params["fc1_b"])

    # Lane-dense output head.
    out_w = jnp.zeros((D, OUT_PAD), jnp.float32).at[:, :V].set(params["out_w"])
    out_b = jnp.zeros((1, OUT_PAD), jnp.float32).at[:, :V].set(params["out_b"])

    # proj_b + positional embedding folded into one per-row bias for the fused batch tile.
    pos_bias = jnp.tile(params["pos"] + params["proj_b"], (b_tile, 1))           # (ROWS, D)

    # Block-diagonal attention bias: 0 within a sequence, -1e30 across sequences.
    seq_id = jnp.repeat(jnp.arange(b_tile, dtype=jnp.int32), T)
    attn_bias = jnp.where(seq_id[:, None] == seq_id[None, :], 0.0, NEG_INF).astype(jnp.float32)

    return dict(
        proj_w=params["proj_w"], pos_bias=pos_bias, attn_bias=attn_bias,
        q_w=q_w, q_b=q_b, k_w=k_w, k_b=k_b, vo_w=vo_w, vo_b=vo_b, o_b=params["o_b"],
        fc1_w=fc1_w, fc1_b=fc1_b, fc2_w=params["fc2_w"], fc2_b=params["fc2_b"],
        out_w=out_w, out_b=out_b,
    )


def tiny_transformer_packed(tokens, packed, b_tile):
    B = tokens.shape[0]
    T = SEQ_LEN
    b_pad = _round_up(B, b_tile)
    rows = b_tile * T
    n_tiles = b_pad // b_tile

    # Tokens: pad the batch with dummy sequences, flatten to (B_pad*T, 1) sequence-major so
    # each grid step sees b_tile whole sequences.
    tok = jnp.zeros((b_pad, T), jnp.int32).at[:B].set(tokens.astype(jnp.int32))
    tok = tok.reshape(b_pad * T, 1)

    weights = [packed[name] for name in (
        "proj_w", "pos_bias", "attn_bias",
        "q_w", "q_b", "k_w", "k_b", "vo_w", "vo_b", "o_b",
        "fc1_w", "fc1_b", "fc2_w", "fc2_b", "out_w", "out_b")]

    def const_spec(a):
        nd = a.ndim
        # Constant weights: same block (0,...,0) every step. Total resident VMEM is <1 MiB,
        # so pl.Buffered(1) hygiene is skipped.
        return pl.BlockSpec(a.shape, lambda i, _n=nd: (0,) * _n)

    in_specs = [pl.BlockSpec((rows, 1), lambda i: (i, 0))]
    in_specs += [const_spec(w) for w in weights]
    out_spec = pl.BlockSpec((rows, OUT_PAD), lambda i: (i, 0))

    out = pl.pallas_call(
        tiny_transformer_kernel,
        out_shape=jax.ShapeDtypeStruct((b_pad * T, OUT_PAD), jnp.float32),
        grid=(n_tiles,),
        in_specs=in_specs,
        out_specs=out_spec,
        compiler_params=pltpu.CompilerParams(dimension_semantics=("parallel",)),
    )(tok, *weights)

    # TODO(synk): for very large B on v5e the f32 (ROWS,128) logits writeback is the first
    # thing to saturate; emitting bf16 and casting outside would halve that traffic.
    return out.reshape(b_pad, T, OUT_PAD)[:B, :, :VOCAB_SIZE]


def tiny_transformer(tokens, params):
    """Convenience one-shot entry point. For repeated calls, run prepare_params() once and
    reuse the packed weights with tiny_transformer_packed()."""
    b_tile = _pick_b_tile(tokens.shape[0])
    return tiny_transformer_packed(tokens, prepare_params(params, b_tile), b_tile)


def init_params(key):
    shapes = {
        "proj_w": (VOCAB_SIZE, EMBED_DIM),
        "proj_b": (1, EMBED_DIM),
        "pos": (SEQ_LEN, EMBED_DIM),
        "ln1_w": (NUM_LAYERS, 1, EMBED_DIM),
        "ln1_b": (NUM_LAYERS, 1, EMBED_DIM),
        "q_w": (NUM_LAYERS, EMBED_DIM, EMBED_DIM),
        "q_b": (NUM_LAYERS, 1, EMBED_DIM),
        "k_w": (NUM_LAYERS, EMBED_DIM, EMBED_DIM),
        "k_b": (NUM_LAYERS, 1, EMBED_DIM),
        "v_w": (NUM_LAYERS, EMBED_DIM, EMBED_DIM),
        "v_b": (NUM_LAYERS, 1, EMBED_DIM),
        "o_w": (NUM_LAYERS, EMBED_DIM, EMBED_DIM),
        "o_b": (NUM_LAYERS, 1, EMBED_DIM),
        "ln2_w": (NUM_LAYERS, 1, EMBED_DIM),
        "ln2_b": (NUM_LAYERS, 1, EMBED_DIM),
        "fc1_w": (NUM_LAYERS, EMBED_DIM, MLP_HIDDEN),
        "fc1_b": (NUM_LAYERS, 1, MLP_HIDDEN),
        "fc2_w": (NUM_LAYERS, MLP_HIDDEN, EMBED_DIM),
        "fc2_b": (NUM_LAYERS, 1, EMBED_DIM),
        "out_w": (EMBED_DIM, VOCAB_SIZE),
        "out_b": (1, VOCAB_SIZE),
    }
    keys = jax.random.split(key, len(shapes))
    params = {}
    for k, (name, shp) in zip(keys, shapes.items()):
        scale = 1.0 if name == "pos" else 0.1
        params[name] = scale * jax.random.normal(k, shp, dtype=jnp.float32)
    # LayerNorm init like nn.LayerNorm: weight = 1, bias = 0.
    for name in ("ln1_w", "ln2_w"):
        params[name] = jnp.ones(shapes[name], jnp.float32)
    for name in ("ln1_b", "ln2_b"):
        params[name] = jnp.zeros(shapes[name], jnp.float32)
    return params


def _ln_ref(x, w, b):
    mean = jnp.mean(x, axis=-1, keepdims=True)
    xc = x - mean
    var = jnp.mean(xc * xc, axis=-1, keepdims=True)
    return xc * jax.lax.rsqrt(var + LN_EPS) * w + b


def reference(tokens, p):
    prec = MXU_PREC
    oh = jax.nn.one_hot(tokens, VOCAB_SIZE, dtype=jnp.float32)     # (B, T, V)
    h = jnp.matmul(oh, p["proj_w"], precision=prec) + p["proj_b"]
    h = h + p["pos"][None]
    for l in range(NUM_LAYERS):
        n1 = _ln_ref(h, p["ln1_w"][l], p["ln1_b"][l])
        q = jnp.matmul(n1, p["q_w"][l], precision=prec) + p["q_b"][l]
        k = jnp.matmul(n1, p["k_w"][l], precision=prec) + p["k_b"][l]
        v = jnp.matmul(n1, p["v_w"][l], precision=prec) + p["v_b"][l]
        s = jnp.einsum("btd,bsd->bts", q, k, precision=prec) / math.sqrt(HEAD_DIM)
        a = jax.nn.softmax(s, axis=-1)
        attn = jnp.einsum("bts,bsd->btd", a, v, precision=prec)
        h = h + jnp.matmul(attn, p["o_w"][l], precision=prec) + p["o_b"][l]
        n2 = _ln_ref(h, p["ln2_w"][l], p["ln2_b"][l])
        m = jax.nn.relu(jnp.matmul(n2, p["fc1_w"][l], precision=prec) + p["fc1_b"][l])
        h = h + jnp.matmul(m, p["fc2_w"][l], precision=prec) + p["fc2_b"][l]
    return jnp.matmul(h, p["out_w"], precision=prec) + p["out_b"]


if __name__ == "__main__":
    key = jax.random.PRNGKey(0)
    kp, kt = jax.random.split(key)
    params = init_params(kp)

    B = 2
    tokens = jax.random.randint(kt, (B, SEQ_LEN), 1, VOCAB_SIZE, dtype=jnp.int32)

    # One-time host-side packing (hoisted out of the per-call path), then a jitted forward.
    b_tile = _pick_b_tile(B)
    packed = prepare_params(params, b_tile)
    fwd = jax.jit(partial(tiny_transformer_packed, b_tile=b_tile))

    out = jax.block_until_ready(fwd(tokens, packed))

    ref = reference(tokens, params)
    assert out.shape == (B, SEQ_LEN, VOCAB_SIZE)
    # Host-side weight folding (LN affine, 1/sqrt(d), v@o_w reassociation) only changes f32
    # rounding order; with full-precision matmuls everywhere the residual error is ~1e-5.
    assert jnp.allclose(out, ref, atol=1e-3, rtol=1e-3), "Pallas kernel mismatch vs JAX reference"
    print("KERNEL_OK")
</pallas_src>

<mosaic_0001>
module attributes {stable_mosaic.version = 11 : i64} {
  func.func @tiny_transformer_kernel(%arg0: i32, %arg1: memref<24x1xi32, #tpu.memory_space<vmem>>, %arg2: memref<10x12xf32, #tpu.memory_space<vmem>>, %arg3: memref<24x12xf32, #tpu.memory_space<vmem>>, %arg4: memref<24x24xf32, #tpu.memory_space<vmem>>, %arg5: memref<2x12x12xf32, #tpu.memory_space<vmem>>, %arg6: memref<2x1x12xf32, #tpu.memory_space<vmem>>, %arg7: memref<2x12x12xf32, #tpu.memory_space<vmem>>, %arg8: memref<2x1x12xf32, #tpu.memory_space<vmem>>, %arg9: memref<2x12x12xf32, #tpu.memory_space<vmem>>, %arg10: memref<2x1x12xf32, #tpu.memory_space<vmem>>, %arg11: memref<2x1x12xf32, #tpu.memory_space<vmem>>, %arg12: memref<2x12x128xf32, #tpu.memory_space<vmem>>, %arg13: memref<2x1x128xf32, #tpu.memory_space<vmem>>, %arg14: memref<2x128x12xf32, #tpu.memory_space<vmem>>, %arg15: memref<2x1x12xf32, #tpu.memory_space<vmem>>, %arg16: memref<12x128xf32, #tpu.memory_space<vmem>>, %arg17: memref<1x128xf32, #tpu.memory_space<vmem>>, %arg18: memref<24x128xf32, #tpu.memory_space<vmem>>) attributes {dimension_semantics = [#tpu.dimension_semantics<parallel>], iteration_bounds = array<i64: 1>, scalar_prefetch = 0 : i64, scratch_operands = 0 : i64, tpu.core_type = #tpu.core_type<tc>, window_params = [{transform_indices = @transform_0, window_bounds = array<i64: 24, 1>}, {pipeline_mode = #tpu.pipeline_mode<synchronous>, transform_indices = @transform_1, window_bounds = array<i64: 10, 12>}, {pipeline_mode = #tpu.pipeline_mode<synchronous>, transform_indices = @transform_2, window_bounds = array<i64: 24, 12>}, {pipeline_mode = #tpu.pipeline_mode<synchronous>, transform_indices = @transform_3, window_bounds = array<i64: 24, 24>}, {pipeline_mode = #tpu.pipeline_mode<synchronous>, transform_indices = @transform_4, window_bounds = array<i64: 2, 12, 12>}, {pipeline_mode = #tpu.pipeline_mode<synchronous>, transform_indices = @transform_5, window_bounds = array<i64: 2, 1, 12>}, {pipeline_mode = #tpu.pipeline_mode<synchronous>, transform_indices = @transform_6, window_bounds = array<i64: 2, 12, 12>}, {pipeline_mode = #tpu.pipeline_mode<synchronous>, transform_indices = @transform_7, window_bounds = array<i64: 2, 1, 12>}, {pipeline_mode = #tpu.pipeline_mode<synchronous>, transform_indices = @transform_8, window_bounds = array<i64: 2, 12, 12>}, {pipeline_mode = #tpu.pipeline_mode<synchronous>, transform_indices = @transform_9, window_bounds = array<i64: 2, 1, 12>}, {pipeline_mode = #tpu.pipeline_mode<synchronous>, transform_indices = @transform_10, window_bounds = array<i64: 2, 1, 12>}, {pipeline_mode = #tpu.pipeline_mode<synchronous>, transform_indices = @transform_11, window_bounds = array<i64: 2, 12, 128>}, {pipeline_mode = #tpu.pipeline_mode<synchronous>, transform_indices = @transform_12, window_bounds = array<i64: 2, 1, 128>}, {pipeline_mode = #tpu.pipeline_mode<synchronous>, transform_indices = @transform_13, window_bounds = array<i64: 2, 128, 12>}, {pipeline_mode = #tpu.pipeline_mode<synchronous>, transform_indices = @transform_14, window_bounds = array<i64: 2, 1, 12>}, {pipeline_mode = #tpu.pipeline_mode<synchronous>, transform_indices = @transform_15, window_bounds = array<i64: 12, 128>}, {pipeline_mode = #tpu.pipeline_mode<synchronous>, transform_indices = @transform_16, window_bounds = array<i64: 1, 128>}, {transform_indices = @transform_17, window_bounds = array<i64: 24, 128>}]} {
    %c0 = arith.constant 0 : index
    %c0_0 = arith.constant 0 : index
    %0 = vector.load %arg1[%c0, %c0_0] : memref<24x1xi32, #tpu.memory_space<vmem>>, vector<24x1xi32>
    %1 = tpu.iota {dimensions = array<i32: 1>} : vector<24x10xi32>
    %2 = vector.broadcast %0 : vector<24x1xi32> to vector<24x10xi32>
    %3 = arith.cmpi eq, %1, %2 : vector<24x10xi32>
    %4 = arith.extui %3 : vector<24x10xi1> to vector<24x10xi32>
    %5 = arith.sitofp %4 : vector<24x10xi32> to vector<24x10xf32>
    %c0_1 = arith.constant 0 : index
    %c0_2 = arith.constant 0 : index
    %6 = vector.load %arg2[%c0_1, %c0_2] : memref<10x12xf32, #tpu.memory_space<vmem>>, vector<10x12xf32>
    %cst = arith.constant dense<0.000000e+00> : vector<24x12xf32>
    %7 = tpu.matmul %5, %6, %cst {dimension_numbers = #tpu.dot_dimension_numbers<[1], [0], [0], [1], [0, 0, 1, 1], [], []>, precision = #tpu.contract_precision<fp32>} : vector<24x10xf32>, vector<10x12xf32>, vector<24x12xf32> -> vector<24x12xf32>
    %c0_3 = arith.constant 0 : index
    %c0_4 = arith.constant 0 : index
    %8 = vector.load %arg3[%c0_3, %c0_4] : memref<24x12xf32, #tpu.memory_space<vmem>>, vector<24x12xf32>
    %9 = arith.addf %7, %8 : vector<24x12xf32>
    %c0_5 = arith.constant 0 : index
    %c0_6 = arith.constant 0 : index
    %10 = vector.load %arg4[%c0_5, %c0_6] : memref<24x24xf32, #tpu.memory_space<vmem>>, vector<24x24xf32>
    %cst_7 = arith.constant dense<0.000000e+00> : vector<24xf32>
    %11 = vector.multi_reduction <add>, %9, %cst_7 [1] : vector<24x12xf32> to vector<24xf32>
    %12 = vector.shape_cast %11 : vector<24xf32> to vector<24x1xf32>
    %cst_8 = arith.constant 1.200000e+01 : f32
    %13 = vector.broadcast %cst_8 : f32 to vector<24x1xf32>
    %14 = arith.divf %12, %13 : vector<24x1xf32>
    %15 = vector.broadcast %14 : vector<24x1xf32> to vector<24x12xf32>
    %16 = arith.subf %9, %15 : vector<24x12xf32>
    %17 = arith.mulf %16, %16 : vector<24x12xf32>
    %cst_9 = arith.constant dense<0.000000e+00> : vector<24xf32>
    %18 = vector.multi_reduction <add>, %17, %cst_9 [1] : vector<24x12xf32> to vector<24xf32>
    %19 = vector.shape_cast %18 : vector<24xf32> to vector<24x1xf32>
    %cst_10 = arith.constant 1.200000e+01 : f32
    %20 = vector.broadcast %cst_10 : f32 to vector<24x1xf32>
    %21 = arith.divf %19, %20 : vector<24x1xf32>
    %cst_11 = arith.constant 9.99999974E-6 : f32
    %22 = vector.broadcast %cst_11 : f32 to vector<24x1xf32>
    %23 = arith.addf %21, %22 : vector<24x1xf32>
    %24 = math.rsqrt %23 : vector<24x1xf32>
    %25 = vector.broadcast %24 : vector<24x1xf32> to vector<24x12xf32>
    %26 = arith.mulf %16, %25 : vector<24x12xf32>
    %c0_12 = arith.constant 0 : index
    %c0_13 = arith.constant 0 : index
    %c0_14 = arith.constant 0 : index
    %27 = vector.load %arg5[%c0_12, %c0_13, %c0_14] : memref<2x12x12xf32, #tpu.memory_space<vmem>>, vector<1x12x12xf32>
    %28 = vector.shape_cast %27 : vector<1x12x12xf32> to vector<12x12xf32>
    %cst_15 = arith.constant dense<0.000000e+00> : vector<24x12xf32>
    %29 = tpu.matmul %26, %28, %cst_15 {dimension_numbers = #tpu.dot_dimension_numbers<[1], [0], [0], [1], [0, 0, 1, 1], [], []>, precision = #tpu.contract_precision<fp32>} : vector<24x12xf32>, vector<12x12xf32>, vector<24x12xf32> -> vector<24x12xf32>
    %c0_16 = arith.constant 0 : index
    %c0_17 = arith.constant 0 : index
    %c0_18 = arith.constant 0 : index
    %30 = vector.load %arg6[%c0_16, %c0_17, %c0_18] : memref<2x1x12xf32, #tpu.memory_space<vmem>>, vector<1x1x12xf32>
    %31 = vector.shape_cast %30 : vector<1x1x12xf32> to vector<1x12xf32>
    %32 = vector.broadcast %31 : vector<1x12xf32> to vector<24x12xf32>
    %33 = arith.addf %29, %32 : vector<24x12xf32>
    %c0_19 = arith.constant 0 : index
    %c0_20 = arith.constant 0 : index
    %c0_21 = arith.constant 0 : index
    %34 = vector.load %arg7[%c0_19, %c0_20, %c0_21] : memref<2x12x12xf32, #tpu.memory_space<vmem>>, vector<1x12x12xf32>
    %35 = vector.shape_cast %34 : vector<1x12x12xf32> to vector<12x12xf32>
    %cst_22 = arith.constant dense<0.000000e+00> : vector<24x12xf32>
    %36 = tpu.matmul %26, %35, %cst_22 {dimension_numbers = #tpu.dot_dimension_numbers<[1], [0], [0], [1], [0, 0, 1, 1], [], []>, precision = #tpu.contract_precision<fp32>} : vector<24x12xf32>, vector<12x12xf32>, vector<24x12xf32> -> vector<24x12xf32>
    %c0_23 = arith.constant 0 : index
    %c0_24 = arith.constant 0 : index
    %c0_25 = arith.constant 0 : index
    %37 = vector.load %arg8[%c0_23, %c0_24, %c0_25] : memref<2x1x12xf32, #tpu.memory_space<vmem>>, vector<1x1x12xf32>
    %38 = vector.shape_cast %37 : vector<1x1x12xf32> to vector<1x12xf32>
    %39 = vector.broadcast %38 : vector<1x12xf32> to vector<24x12xf32>
    %40 = arith.addf %36, %39 : vector<24x12xf32>
    %c0_26 = arith.constant 0 : index
    %c0_27 = arith.constant 0 : index
    %c0_28 = arith.constant 0 : index
    %41 = vector.load %arg9[%c0_26, %c0_27, %c0_28] : memref<2x12x12xf32, #tpu.memory_space<vmem>>, vector<1x12x12xf32>
    %42 = vector.shape_cast %41 : vector<1x12x12xf32> to vector<12x12xf32>
    %cst_29 = arith.constant dense<0.000000e+00> : vector<24x12xf32>
    %43 = tpu.matmul %26, %42, %cst_29 {dimension_numbers = #tpu.dot_dimension_numbers<[1], [0], [0], [1], [0, 0, 1, 1], [], []>, precision = #tpu.contract_precision<fp32>} : vector<24x12xf32>, vector<12x12xf32>, vector<24x12xf32> -> vector<24x12xf32>
    %c0_30 = arith.constant 0 : index
    %c0_31 = arith.constant 0 : index
    %c0_32 = arith.constant 0 : index
    %44 = vector.load %arg10[%c0_30, %c0_31, %c0_32] : memref<2x1x12xf32, #tpu.memory_space<vmem>>, vector<1x1x12xf32>
    %45 = vector.shape_cast %44 : vector<1x1x12xf32> to vector<1x12xf32>
    %46 = vector.broadcast %45 : vector<1x12xf32> to vector<24x12xf32>
    %47 = arith.addf %43, %46 : vector<24x12xf32>
    %cst_33 = arith.constant dense<0.000000e+00> : vector<24x24xf32>
    %48 = tpu.matmul %33, %40, %cst_33 {dimension_numbers = #tpu.dot_dimension_numbers<[1], [1], [0], [0], [0, 0, 1, 0], [], []>, precision = #tpu.contract_precision<fp32>} : vector<24x12xf32>, vector<24x12xf32>, vector<24x24xf32> -> vector<24x24xf32>
    %49 = arith.addf %48, %10 : vector<24x24xf32>
    %cst_34 = arith.constant dense<0xFF800000> : vector<24xf32>
    %50 = vector.multi_reduction <maximumf>, %49, %cst_34 [1] : vector<24x24xf32> to vector<24xf32>
    %51 = vector.shape_cast %50 : vector<24xf32> to vector<24x1xf32>
    %52 = vector.broadcast %51 : vector<24x1xf32> to vector<24x24xf32>
    %53 = arith.subf %49, %52 : vector<24x24xf32>
    %54 = math.exp %53 : vector<24x24xf32>
    %cst_35 = arith.constant dense<0.000000e+00> : vector<24xf32>
    %55 = vector.multi_reduction <add>, %54, %cst_35 [1] : vector<24x24xf32> to vector<24xf32>
    %56 = vector.shape_cast %55 : vector<24xf32> to vector<24x1xf32>
    %cst_36 = arith.constant 1.000000e+00 : f32
    %57 = vector.broadcast %cst_36 : f32 to vector<24x1xf32>
    %58 = arith.divf %57, %56 : vector<24x1xf32>
    %59 = vector.broadcast %58 : vector<24x1xf32> to vector<24x24xf32>
    %60 = arith.mulf %54, %59 : vector<24x24xf32>
    %cst_37 = arith.constant dense<0.000000e+00> : vector<24x12xf32>
    %61 = tpu.matmul %60, %47, %cst_37 {dimension_numbers = #tpu.dot_dimension_numbers<[1], [0], [0], [1], [0, 0, 1, 1], [], []>, precision = #tpu.contract_precision<fp32>} : vector<24x24xf32>, vector<24x12xf32>, vector<24x12xf32> -> vector<24x12xf32>
    %c0_38 = arith.constant 0 : index
    %c0_39 = arith.constant 0 : index
    %c0_40 = arith.constant 0 : index
    %62 = vector.load %arg11[%c0_38, %c0_39, %c0_40] : memref<2x1x12xf32, #tpu.memory_space<vmem>>, vector<1x1x12xf32>
    %63 = vector.shape_cast %62 : vector<1x1x12xf32> to vector<1x12xf32>
    %64 = vector.broadcast %63 : vector<1x12xf32> to vector<24x12xf32>
    %65 = arith.addf %61, %64 : vector<24x12xf32>
    %66 = arith.addf %9, %65 : vector<24x12xf32>
    %cst_41 = arith.constant dense<0.000000e+00> : vector<24xf32>
    %67 = vector.multi_reduction <add>, %66, %cst_41 [1] : vector<24x12xf32> to vector<24xf32>
    %68 = vector.shape_cast %67 : vector<24xf32> to vector<24x1xf32>
    %cst_42 = arith.constant 1.200000e+01 : f32
    %69 = vector.broadcast %cst_42 : f32 to vector<24x1xf32>
    %70 = arith.divf %68, %69 : vector<24x1xf32>
    %71 = vector.broadcast %70 : vector<24x1xf32> to vector<24x12xf32>
    %72 = arith.subf %66, %71 : vector<24x12xf32>
    %73 = arith.mulf %72, %72 : vector<24x12xf32>
    %cst_43 = arith.constant dense<0.000000e+00> : vector<24xf32>
    %74 = vector.multi_reduction <add>, %73, %cst_43 [1] : vector<24x12xf32> to vector<24xf32>
    %75 = vector.shape_cast %74 : vector<24xf32> to vector<24x1xf32>
    %cst_44 = arith.constant 1.200000e+01 : f32
    %76 = vector.broadcast %cst_44 : f32 to vector<24x1xf32>
    %77 = arith.divf %75, %76 : vector<24x1xf32>
    %cst_45 = arith.constant 9.99999974E-6 : f32
    %78 = vector.broadcast %cst_45 : f32 to vector<24x1xf32>
    %79 = arith.addf %77, %78 : vector<24x1xf32>
    %80 = math.rsqrt %79 : vector<24x1xf32>
    %81 = vector.broadcast %80 : vector<24x1xf32> to vector<24x12xf32>
    %82 = arith.mulf %72, %81 : vector<24x12xf32>
    %c0_46 = arith.constant 0 : index
    %c0_47 = arith.constant 0 : index
    %c0_48 = arith.constant 0 : index
    %83 = vector.load %arg12[%c0_46, %c0_47, %c0_48] : memref<2x12x128xf32, #tpu.memory_space<vmem>>, vector<1x12x128xf32>
    %84 = vector.shape_cast %83 : vector<1x12x128xf32> to vector<12x128xf32>
    %cst_49 = arith.constant dense<0.000000e+00> : vector<24x128xf32>
    %85 = tpu.matmul %82, %84, %cst_49 {dimension_numbers = #tpu.dot_dimension_numbers<[1], [0], [0], [1], [0, 0, 1, 1], [], []>, precision = #tpu.contract_precision<fp32>} : vector<24x12xf32>, vector<12x128xf32>, vector<24x128xf32> -> vector<24x128xf32>
    %c0_50 = arith.constant 0 : index
    %c0_51 = arith.constant 0 : index
    %c0_52 = arith.constant 0 : index
    %86 = vector.load %arg13[%c0_50, %c0_51, %c0_52] : memref<2x1x128xf32, #tpu.memory_space<vmem>>, vector<1x1x128xf32>
    %87 = vector.shape_cast %86 : vector<1x1x128xf32> to vector<1x128xf32>
    %88 = vector.broadcast %87 : vector<1x128xf32> to vector<24x128xf32>
    %89 = arith.addf %85, %88 : vector<24x128xf32>
    %cst_53 = arith.constant 0.000000e+00 : f32
    %90 = vector.broadcast %cst_53 : f32 to vector<24x128xf32>
    %91 = arith.maximumf %89, %90 : vector<24x128xf32>
    %c0_54 = arith.constant 0 : index
    %c0_55 = arith.constant 0 : index
    %c0_56 = arith.constant 0 : index
    %92 = vector.load %arg14[%c0_54, %c0_55, %c0_56] : memref<2x128x12xf32, #tpu.memory_space<vmem>>, vector<1x128x12xf32>
    %93 = vector.shape_cast %92 : vector<1x128x12xf32> to vector<128x12xf32>
    %cst_57 = arith.constant dense<0.000000e+00> : vector<24x12xf32>
    %94 = tpu.matmul %91, %93, %cst_57 {dimension_numbers = #tpu.dot_dimension_numbers<[1], [0], [0], [1], [0, 0, 1, 1], [], []>, precision = #tpu.contract_precision<fp32>} : vector<24x128xf32>, vector<128x12xf32>, vector<24x12xf32> -> vector<24x12xf32>
    %c0_58 = arith.constant 0 : index
    %c0_59 = arith.constant 0 : index
    %c0_60 = arith.constant 0 : index
    %95 = vector.load %arg15[%c0_58, %c0_59, %c0_60] : memref<2x1x12xf32, #tpu.memory_space<vmem>>, vector<1x1x12xf32>
    %96 = vector.shape_cast %95 : vector<1x1x12xf32> to vector<1x12xf32>
    %97 = vector.broadcast %96 : vector<1x12xf32> to vector<24x12xf32>
    %98 = arith.addf %94, %97 : vector<24x12xf32>
    %99 = arith.addf %66, %98 : vector<24x12xf32>
    %cst_61 = arith.constant dense<0.000000e+00> : vector<24xf32>
    %100 = vector.multi_reduction <add>, %99, %cst_61 [1] : vector<24x12xf32> to vector<24xf32>
    %101 = vector.shape_cast %100 : vector<24xf32> to vector<24x1xf32>
    %cst_62 = arith.constant 1.200000e+01 : f32
    %102 = vector.broadcast %cst_62 : f32 to vector<24x1xf32>
    %103 = arith.divf %101, %102 : vector<24x1xf32>
    %104 = vector.broadcast %103 : vector<24x1xf32> to vector<24x12xf32>
    %105 = arith.subf %99, %104 : vector<24x12xf32>
    %106 = arith.mulf %105, %105 : vector<24x12xf32>
    %cst_63 = arith.constant dense<0.000000e+00> : vector<24xf32>
    %107 = vector.multi_reduction <add>, %106, %cst_63 [1] : vector<24x12xf32> to vector<24xf32>
    %108 = vector.shape_cast %107 : vector<24xf32> to vector<24x1xf32>
    %cst_64 = arith.constant 1.200000e+01 : f32
    %109 = vector.broadcast %cst_64 : f32 to vector<24x1xf32>
    %110 = arith.divf %108, %109 : vector<24x1xf32>
    %cst_65 = arith.constant 9.99999974E-6 : f32
    %111 = vector.broadcast %cst_65 : f32 to vector<24x1xf32>
    %112 = arith.addf %110, %111 : vector<24x1xf32>
    %113 = math.rsqrt %112 : vector<24x1xf32>
    %114 = vector.broadcast %113 : vector<24x1xf32> to vector<24x12xf32>
    %115 = arith.mulf %105, %114 : vector<24x12xf32>
    %c1 = arith.constant 1 : index
    %c0_66 = arith.constant 0 : index
    %c0_67 = arith.constant 0 : index
    %116 = vector.load %arg5[%c1, %c0_66, %c0_67] : memref<2x12x12xf32, #tpu.memory_space<vmem>>, vector<1x12x12xf32>
    %117 = vector.shape_cast %116 : vector<1x12x12xf32> to vector<12x12xf32>
    %cst_68 = arith.constant dense<0.000000e+00> : vector<24x12xf32>
    %118 = tpu.matmul %115, %117, %cst_68 {dimension_numbers = #tpu.dot_dimension_numbers<[1], [0], [0], [1], [0, 0, 1, 1], [], []>, precision = #tpu.contract_precision<fp32>} : vector<24x12xf32>, vector<12x12xf32>, vector<24x12xf32> -> vector<24x12xf32>
    %c1_69 = arith.constant 1 : index
    %c0_70 = arith.constant 0 : index
    %c0_71 = arith.constant 0 : index
    %119 = vector.load %arg6[%c1_69, %c0_70, %c0_71] : memref<2x1x12xf32, #tpu.memory_space<vmem>>, vector<1x1x12xf32>
    %120 = vector.shape_cast %119 : vector<1x1x12xf32> to vector<1x12xf32>
    %121 = vector.broadcast %120 : vector<1x12xf32> to vector<24x12xf32>
    %122 = arith.addf %118, %121 : vector<24x12xf32>
    %c1_72 = arith.constant 1 : index
    %c0_73 = arith.constant 0 : index
    %c0_74 = arith.constant 0 : index
    %123 = vector.load %arg7[%c1_72, %c0_73, %c0_74] : memref<2x12x12xf32, #tpu.memory_space<vmem>>, vector<1x12x12xf32>
    %124 = vector.shape_cast %123 : vector<1x12x12xf32> to vector<12x12xf32>
    %cst_75 = arith.constant dense<0.000000e+00> : vector<24x12xf32>
    %125 = tpu.matmul %115, %124, %cst_75 {dimension_numbers = #tpu.dot_dimension_numbers<[1], [0], [0], [1], [0, 0, 1, 1], [], []>, precision = #tpu.contract_precision<fp32>} : vector<24x12xf32>, vector<12x12xf32>, vector<24x12xf32> -> vector<24x12xf32>
    %c1_76 = arith.constant 1 : index
    %c0_77 = arith.constant 0 : index
    %c0_78 = arith.constant 0 : index
    %126 = vector.load %arg8[%c1_76, %c0_77, %c0_78] : memref<2x1x12xf32, #tpu.memory_space<vmem>>, vector<1x1x12xf32>
    %127 = vector.shape_cast %126 : vector<1x1x12xf32> to vector<1x12xf32>
    %128 = vector.broadcast %127 : vector<1x12xf32> to vector<24x12xf32>
    %129 = arith.addf %125, %128 : vector<24x12xf32>
    %c1_79 = arith.constant 1 : index
    %c0_80 = arith.constant 0 : index
    %c0_81 = arith.constant 0 : index
    %130 = vector.load %arg9[%c1_79, %c0_80, %c0_81] : memref<2x12x12xf32, #tpu.memory_space<vmem>>, vector<1x12x12xf32>
    %131 = vector.shape_cast %130 : vector<1x12x12xf32> to vector<12x12xf32>
    %cst_82 = arith.constant dense<0.000000e+00> : vector<24x12xf32>
    %132 = tpu.matmul %115, %131, %cst_82 {dimension_numbers = #tpu.dot_dimension_numbers<[1], [0], [0], [1], [0, 0, 1, 1], [], []>, precision = #tpu.contract_precision<fp32>} : vector<24x12xf32>, vector<12x12xf32>, vector<24x12xf32> -> vector<24x12xf32>
    %c1_83 = arith.constant 1 : index
    %c0_84 = arith.constant 0 : index
    %c0_85 = arith.constant 0 : index
    %133 = vector.load %arg10[%c1_83, %c0_84, %c0_85] : memref<2x1x12xf32, #tpu.memory_space<vmem>>, vector<1x1x12xf32>
    %134 = vector.shape_cast %133 : vector<1x1x12xf32> to vector<1x12xf32>
    %135 = vector.broadcast %134 : vector<1x12xf32> to vector<24x12xf32>
    %136 = arith.addf %132, %135 : vector<24x12xf32>
    %cst_86 = arith.constant dense<0.000000e+00> : vector<24x24xf32>
    %137 = tpu.matmul %122, %129, %cst_86 {dimension_numbers = #tpu.dot_dimension_numbers<[1], [1], [0], [0], [0, 0, 1, 0], [], []>, precision = #tpu.contract_precision<fp32>} : vector<24x12xf32>, vector<24x12xf32>, vector<24x24xf32> -> vector<24x24xf32>
    %138 = arith.addf %137, %10 : vector<24x24xf32>
    %cst_87 = arith.constant dense<0xFF800000> : vector<24xf32>
    %139 = vector.multi_reduction <maximumf>, %138, %cst_87 [1] : vector<24x24xf32> to vector<24xf32>
    %140 = vector.shape_cast %139 : vector<24xf32> to vector<24x1xf32>
    %141 = vector.broadcast %140 : vector<24x1xf32> to vector<24x24xf32>
    %142 = arith.subf %138, %141 : vector<24x24xf32>
    %143 = math.exp %142 : vector<24x24xf32>
    %cst_88 = arith.constant dense<0.000000e+00> : vector<24xf32>
    %144 = vector.multi_reduction <add>, %143, %cst_88 [1] : vector<24x24xf32> to vector<24xf32>
    %145 = vector.shape_cast %144 : vector<24xf32> to vector<24x1xf32>
    %cst_89 = arith.constant 1.000000e+00 : f32
    %146 = vector.broadcast %cst_89 : f32 to vector<24x1xf32>
    %147 = arith.divf %146, %145 : vector<24x1xf32>
    %148 = vector.broadcast %147 : vector<24x1xf32> to vector<24x24xf32>
    %149 = arith.mulf %143, %148 : vector<24x24xf32>
    %cst_90 = arith.constant dense<0.000000e+00> : vector<24x12xf32>
    %150 = tpu.matmul %149, %136, %cst_90 {dimension_numbers = #tpu.dot_dimension_numbers<[1], [0], [0], [1], [0, 0, 1, 1], [], []>, precision = #tpu.contract_precision<fp32>} : vector<24x24xf32>, vector<24x12xf32>, vector<24x12xf32> -> vector<24x12xf32>
    %c1_91 = arith.constant 1 : index
    %c0_92 = arith.constant 0 : index
    %c0_93 = arith.constant 0 : index
    %151 = vector.load %arg11[%c1_91, %c0_92, %c0_93] : memref<2x1x12xf32, #tpu.memory_space<vmem>>, vector<1x1x12xf32>
    %152 = vector.shape_cast %151 : vector<1x1x12xf32> to vector<1x12xf32>
    %153 = vector.broadcast %152 : vector<1x12xf32> to vector<24x12xf32>
    %154 = arith.addf %150, %153 : vector<24x12xf32>
    %155 = arith.addf %99, %154 : vector<24x12xf32>
    %cst_94 = arith.constant dense<0.000000e+00> : vector<24xf32>
    %156 = vector.multi_reduction <add>, %155, %cst_94 [1] : vector<24x12xf32> to vector<24xf32>
    %157 = vector.shape_cast %156 : vector<24xf32> to vector<24x1xf32>
    %cst_95 = arith.constant 1.200000e+01 : f32
    %158 = vector.broadcast %cst_95 : f32 to vector<24x1xf32>
    %159 = arith.divf %157, %158 : vector<24x1xf32>
    %160 = vector.broadcast %159 : vector<24x1xf32> to vector<24x12xf32>
    %161 = arith.subf %155, %160 : vector<24x12xf32>
    %162 = arith.mulf %161, %161 : vector<24x12xf32>
    %cst_96 = arith.constant dense<0.000000e+00> : vector<24xf32>
    %163 = vector.multi_reduction <add>, %162, %cst_96 [1] : vector<24x12xf32> to vector<24xf32>
    %164 = vector.shape_cast %163 : vector<24xf32> to vector<24x1xf32>
    %cst_97 = arith.constant 1.200000e+01 : f32
    %165 = vector.broadcast %cst_97 : f32 to vector<24x1xf32>
    %166 = arith.divf %164, %165 : vector<24x1xf32>
    %cst_98 = arith.constant 9.99999974E-6 : f32
    %167 = vector.broadcast %cst_98 : f32 to vector<24x1xf32>
    %168 = arith.addf %166, %167 : vector<24x1xf32>
    %169 = math.rsqrt %168 : vector<24x1xf32>
    %170 = vector.broadcast %169 : vector<24x1xf32> to vector<24x12xf32>
    %171 = arith.mulf %161, %170 : vector<24x12xf32>
    %c1_99 = arith.constant 1 : index
    %c0_100 = arith.constant 0 : index
    %c0_101 = arith.constant 0 : index
    %172 = vector.load %arg12[%c1_99, %c0_100, %c0_101] : memref<2x12x128xf32, #tpu.memory_space<vmem>>, vector<1x12x128xf32>
    %173 = vector.shape_cast %172 : vector<1x12x128xf32> to vector<12x128xf32>
    %cst_102 = arith.constant dense<0.000000e+00> : vector<24x128xf32>
    %174 = tpu.matmul %171, %173, %cst_102 {dimension_numbers = #tpu.dot_dimension_numbers<[1], [0], [0], [1], [0, 0, 1, 1], [], []>, precision = #tpu.contract_precision<fp32>} : vector<24x12xf32>, vector<12x128xf32>, vector<24x128xf32> -> vector<24x128xf32>
    %c1_103 = arith.constant 1 : index
    %c0_104 = arith.constant 0 : index
    %c0_105 = arith.constant 0 : index
    %175 = vector.load %arg13[%c1_103, %c0_104, %c0_105] : memref<2x1x128xf32, #tpu.memory_space<vmem>>, vector<1x1x128xf32>
    %176 = vector.shape_cast %175 : vector<1x1x128xf32> to vector<1x128xf32>
    %177 = vector.broadcast %176 : vector<1x128xf32> to vector<24x128xf32>
    %178 = arith.addf %174, %177 : vector<24x128xf32>
    %cst_106 = arith.constant 0.000000e+00 : f32
    %179 = vector.broadcast %cst_106 : f32 to vector<24x128xf32>
    %180 = arith.maximumf %178, %179 : vector<24x128xf32>
    %c1_107 = arith.constant 1 : index
    %c0_108 = arith.constant 0 : index
    %c0_109 = arith.constant 0 : index
    %181 = vector.load %arg14[%c1_107, %c0_108, %c0_109] : memref<2x128x12xf32, #tpu.memory_space<vmem>>, vector<1x128x12xf32>
    %182 = vector.shape_cast %181 : vector<1x128x12xf32> to vector<128x12xf32>
    %cst_110 = arith.constant dense<0.000000e+00> : vector<24x12xf32>
    %183 = tpu.matmul %180, %182, %cst_110 {dimension_numbers = #tpu.dot_dimension_numbers<[1], [0], [0], [1], [0, 0, 1, 1], [], []>, precision = #tpu.contract_precision<fp32>} : vector<24x128xf32>, vector<128x12xf32>, vector<24x12xf32> -> vector<24x12xf32>
    %c1_111 = arith.constant 1 : index
    %c0_112 = arith.constant 0 : index
    %c0_113 = arith.constant 0 : index
    %184 = vector.load %arg15[%c1_111, %c0_112, %c0_113] : memref<2x1x12xf32, #tpu.memory_space<vmem>>, vector<1x1x12xf32>
    %185 = vector.shape_cast %184 : vector<1x1x12xf32> to vector<1x12xf32>
    %186 = vector.broadcast %185 : vector<1x12xf32> to vector<24x12xf32>
    %187 = arith.addf %183, %186 : vector<24x12xf32>
    %188 = arith.addf %155, %187 : vector<24x12xf32>
    %c0_114 = arith.constant 0 : index
    %c0_115 = arith.constant 0 : index
    %189 = vector.load %arg16[%c0_114, %c0_115] : memref<12x128xf32, #tpu.memory_space<vmem>>, vector<12x128xf32>
    %cst_116 = arith.constant dense<0.000000e+00> : vector<24x128xf32>
    %190 = tpu.matmul %188, %189, %cst_116 {dimension_numbers = #tpu.dot_dimension_numbers<[1], [0], [0], [1], [0, 0, 1, 1], [], []>, precision = #tpu.contract_precision<fp32>} : vector<24x12xf32>, vector<12x128xf32>, vector<24x128xf32> -> vector<24x128xf32>
    %c0_117 = arith.constant 0 : index
    %c0_118 = arith.constant 0 : index
    %191 = vector.load %arg17[%c0_117, %c0_118] : memref<1x128xf32, #tpu.memory_space<vmem>>, vector<1x128xf32>
    %192 = vector.broadcast %191 : vector<1x128xf32> to vector<24x128xf32>
    %193 = arith.addf %190, %192 : vector<24x128xf32>
    %c0_119 = arith.constant 0 : index
    %c0_120 = arith.constant 0 : index
    %194 = vector.load %arg18[%c0_119, %c0_120] : memref<24x128xf32, #tpu.memory_space<vmem>>, vector<24x128xf32>
    tpu.vector_store %arg18[%c0_119, %c0_120], %193 {strides = array<i32>} : memref<24x128xf32, #tpu.memory_space<vmem>>, vector<24x128xf32>,
    return
  }
  func.func @transform_0(%arg0: i32) -> (i32, i32) {
    %c0_i32 = arith.constant 0 : i32
    %c0_i32_0 = arith.constant 0 : i32
    return %arg0, %c0_i32 : i32, i32
  }
  func.func @transform_1(%arg0: i32) -> (i32, i32) {
    %c0_i32 = arith.constant 0 : i32
    %c0_i32_0 = arith.constant 0 : i32
    %c0_i32_1 = arith.constant 0 : i32
    return %c0_i32, %c0_i32_0 : i32, i32
  }
  func.func @transform_2(%arg0: i32) -> (i32, i32) {
    %c0_i32 = arith.constant 0 : i32
    %c0_i32_0 = arith.constant 0 : i32
    %c0_i32_1 = arith.constant 0 : i32
    return %c0_i32, %c0_i32_0 : i32, i32
  }
  func.func @transform_3(%arg0: i32) -> (i32, i32) {
    %c0_i32 = arith.constant 0 : i32
    %c0_i32_0 = arith.constant 0 : i32
    %c0_i32_1 = arith.constant 0 : i32
    return %c0_i32, %c0_i32_0 : i32, i32
  }
  func.func @transform_4(%arg0: i32) -> (i32, i32, i32) {
    %c0_i32 = arith.constant 0 : i32
    %c0_i32_0 = arith.constant 0 : i32
    %c0_i32_1 = arith.constant 0 : i32
    %c0_i32_2 = arith.constant 0 : i32
    return %c0_i32, %c0_i32_0, %c0_i32_1 : i32, i32, i32
  }
  func.func @transform_5(%arg0: i32) -> (i32, i32, i32) {
    %c0_i32 = arith.constant 0 : i32
    %c0_i32_0 = arith.constant 0 : i32
    %c0_i32_1 = arith.constant 0 : i32
    %c0_i32_2 = arith.constant 0 : i32
    return %c0_i32, %c0_i32_0, %c0_i32_1 : i32, i32, i32
  }
  func.func @transform_6(%arg0: i32) -> (i32, i32, i32) {
    %c0_i32 = arith.constant 0 : i32
    %c0_i32_0 = arith.constant 0 : i32
    %c0_i32_1 = arith.constant 0 : i32
    %c0_i32_2 = arith.constant 0 : i32
    return %c0_i32, %c0_i32_0, %c0_i32_1 : i32, i32, i32
  }
  func.func @transform_7(%arg0: i32) -> (i32, i32, i32) {
    %c0_i32 = arith.constant 0 : i32
    %c0_i32_0 = arith.constant 0 : i32
    %c0_i32_1 = arith.constant 0 : i32
    %c0_i32_2 = arith.constant 0 : i32
    return %c0_i32, %c0_i32_0, %c0_i32_1 : i32, i32, i32
  }
  func.func @transform_8(%arg0: i32) -> (i32, i32, i32) {
    %c0_i32 = arith.constant 0 : i32
    %c0_i32_0 = arith.constant 0 : i32
    %c0_i32_1 = arith.constant 0 : i32
    %c0_i32_2 = arith.constant 0 : i32
    return %c0_i32, %c0_i32_0, %c0_i32_1 : i32, i32, i32
  }
  func.func @transform_9(%arg0: i32) -> (i32, i32, i32) {
    %c0_i32 = arith.constant 0 : i32
    %c0_i32_0 = arith.constant 0 : i32
    %c0_i32_1 = arith.constant 0 : i32
    %c0_i32_2 = arith.constant 0 : i32
    return %c0_i32, %c0_i32_0, %c0_i32_1 : i32, i32, i32
  }
  func.func @transform_10(%arg0: i32) -> (i32, i32, i32) {
    %c0_i32 = arith.constant 0 : i32
    %c0_i32_0 = arith.constant 0 : i32
    %c0_i32_1 = arith.constant 0 : i32
    %c0_i32_2 = arith.constant 0 : i32
    return %c0_i32, %c0_i32_0, %c0_i32_1 : i32, i32, i32
  }
  func.func @transform_11(%arg0: i32) -> (i32, i32, i32) {
    %c0_i32 = arith.constant 0 : i32
    %c0_i32_0 = arith.constant 0 : i32
    %c0_i32_1 = arith.constant 0 : i32
    %c0_i32_2 = arith.constant 0 : i32
    return %c0_i32, %c0_i32_0, %c0_i32_1 : i32, i32, i32
  }
  func.func @transform_12(%arg0: i32) -> (i32, i32, i32) {
    %c0_i32 = arith.constant 0 : i32
    %c0_i32_0 = arith.constant 0 : i32
    %c0_i32_1 = arith.constant 0 : i32
    %c0_i32_2 = arith.constant 0 : i32
    return %c0_i32, %c0_i32_0, %c0_i32_1 : i32, i32, i32
  }
  func.func @transform_13(%arg0: i32) -> (i32, i32, i32) {
    %c0_i32 = arith.constant 0 : i32
    %c0_i32_0 = arith.constant 0 : i32
    %c0_i32_1 = arith.constant 0 : i32
    %c0_i32_2 = arith.constant 0 : i32
    return %c0_i32, %c0_i32_0, %c0_i32_1 : i32, i32, i32
  }
  func.func @transform_14(%arg0: i32) -> (i32, i32, i32) {
    %c0_i32 = arith.constant 0 : i32
    %c0_i32_0 = arith.constant 0 : i32
    %c0_i32_1 = arith.constant 0 : i32
    %c0_i32_2 = arith.constant 0 : i32
    return %c0_i32, %c0_i32_0, %c0_i32_1 : i32, i32, i32
  }
  func.func @transform_15(%arg0: i32) -> (i32, i32) {
    %c0_i32 = arith.constant 0 : i32
    %c0_i32_0 = arith.constant 0 : i32
    %c0_i32_1 = arith.constant 0 : i32
    return %c0_i32, %c0_i32_0 : i32, i32
  }
  func.func @transform_16(%arg0: i32) -> (i32, i32) {
    %c0_i32 = arith.constant 0 : i32
    %c0_i32_0 = arith.constant 0 : i32
    %c0_i32_1 = arith.constant 0 : i32
    return %c0_i32, %c0_i32_0 : i32, i32
  }
  func.func @transform_17(%arg0: i32) -> (i32, i32) {
    %c0_i32 = arith.constant 0 : i32
    %c0_i32_0 = arith.constant 0 : i32
    return %arg0, %c0_i32 : i32, i32
  }
}

</mosaic_0001>

<llo_original>
// kernel: tiny_transformer_packed.1
$region0: #{tiny_transformer_packed.1}
  #allocation0 [shape = 'u32[]', space=smem, size = 0x4, offset = 0x4, fixed_abs, tag = 'smem constant byte address 0x4 - core index']
  #allocation1 [shape = 'u32[72,128]{1,0:T(1,128)}', space=vmem, size = 0x9000, scoped, tag = 'internal scratch']
  %s0 = inlined_call_operand.vmem [shape: s32[24,1], index: 0, kind: input, shape index: {}]
  %s1 = inlined_call_operand.vmem [shape: f32[10,12], index: 1, kind: input, shape index: {}]
  %s2 = inlined_call_operand.vmem [shape: f32[24,12], index: 2, kind: input, shape index: {}]
  %s3 = inlined_call_operand.vmem [shape: f32[24,24], index: 3, kind: input, shape index: {}]
  %s4 = inlined_call_operand.vmem [shape: f32[2,12,12], index: 4, kind: input, shape index: {}]
  %s5 = inlined_call_operand.vmem [shape: f32[2,1,12], index: 5, kind: input, shape index: {}]
  %s6 = inlined_call_operand.vmem [shape: f32[2,12,12], index: 6, kind: input, shape index: {}]
  %s7 = inlined_call_operand.vmem [shape: f32[2,1,12], index: 7, kind: input, shape index: {}]
  %s8 = inlined_call_operand.vmem [shape: f32[2,12,12], index: 8, kind: input, shape index: {}]
  %s9 = inlined_call_operand.vmem [shape: f32[2,1,12], index: 9, kind: input, shape index: {}]
  %s10 = inlined_call_operand.vmem [shape: f32[2,1,12], index: 10, kind: input, shape index: {}]
  %s11 = inlined_call_operand.vmem [shape: f32[2,12,128], index: 11, kind: input, shape index: {}]
  %s12 = inlined_call_operand.vmem [shape: f32[2,1,128], index: 12, kind: input, shape index: {}]
  %s13 = inlined_call_operand.vmem [shape: f32[2,128,12], index: 13, kind: input, shape index: {}]
  %s14 = inlined_call_operand.vmem [shape: f32[2,1,12], index: 14, kind: input, shape index: {}]
  %s15 = inlined_call_operand.vmem [shape: f32[12,128], index: 15, kind: input, shape index: {}]
  %s16 = inlined_call_operand.vmem [shape: f32[1,128], index: 16, kind: input, shape index: {}]
  %s17 = inlined_call_operand.vmem [shape: f32[24,128], index: 17, kind: output, shape index: {}]
  %s18 = sld [smem:[#allocation0]]
  $region78: #{tiny_transformer_packed.1} parent=0
    _
  %s20 = ssub.s32 1, %s18
  %s21 = scalar_select 0, %s20, %s18
  // Predicated region
  $region2: #{tiny_transformer_packed.1} parent=0 // pred_check
    _
  $region3: #{tiny_transformer_packed.1} parent=0 // pred_check_branch
    %23 = sbr.rel (0) target = $region5
  $region4: #{tiny_transformer_packed.1} parent=0 // pred_region
    _
  $region5: #{tiny_transformer_packed.1} parent=0 // pred_fallthru
    _
  // Predicated region
  $region6: #{tiny_transformer_packed.1} parent=0 // pred_check
    _
  $region7: #{tiny_transformer_packed.1} parent=0 // pred_check_branch
    %25 = sbr.rel (0) target = $region9
  $region8: #{tiny_transformer_packed.1} parent=0 // pred_region
    _
  $region9: #{tiny_transformer_packed.1} parent=0 // pred_fallthru
    _
  // Predicated region
  $region10: #{tiny_transformer_packed.1} parent=0 // pred_check
    _
  $region11: #{tiny_transformer_packed.1} parent=0 // pred_check_branch
    %27 = sbr.rel (0) target = $region13
  $region12: #{tiny_transformer_packed.1} parent=0 // pred_region
    _
  $region13: #{tiny_transformer_packed.1} parent=0 // pred_fallthru
    _
  // Predicated region
  $region14: #{tiny_transformer_packed.1} parent=0 // pred_check
    _
  $region15: #{tiny_transformer_packed.1} parent=0 // pred_check_branch
    %29 = sbr.rel (0) target = $region17
  $region16: #{tiny_transformer_packed.1} parent=0 // pred_region
    _
  $region17: #{tiny_transformer_packed.1} parent=0 // pred_fallthru
    _
  // Predicated region
  $region18: #{tiny_transformer_packed.1} parent=0 // pred_check
    _
  $region19: #{tiny_transformer_packed.1} parent=0 // pred_check_branch
    %31 = sbr.rel (0) target = $region21
  $region20: #{tiny_transformer_packed.1} parent=0 // pred_region
    _
  $region21: #{tiny_transformer_packed.1} parent=0 // pred_fallthru
    _
  // Predicated region
  $region22: #{tiny_transformer_packed.1} parent=0 // pred_check
    _
  $region23: #{tiny_transformer_packed.1} parent=0 // pred_check_branch
    %33 = sbr.rel (0) target = $region25
  $region24: #{tiny_transformer_packed.1} parent=0 // pred_region
    _
  $region25: #{tiny_transformer_packed.1} parent=0 // pred_fallthru
    _
  // Predicated region
  $region26: #{tiny_transformer_packed.1} parent=0 // pred_check
    _
  $region27: #{tiny_transformer_packed.1} parent=0 // pred_check_branch
    %35 = sbr.rel (0) target = $region29
  $region28: #{tiny_transformer_packed.1} parent=0 // pred_region
    _
  $region29: #{tiny_transformer_packed.1} parent=0 // pred_fallthru
    _
  // Predicated region
  $region30: #{tiny_transformer_packed.1} parent=0 // pred_check
    _
  $region31: #{tiny_transformer_packed.1} parent=0 // pred_check_branch
    %37 = sbr.rel (0) target = $region33
  $region32: #{tiny_transformer_packed.1} parent=0 // pred_region
    _
  $region33: #{tiny_transformer_packed.1} parent=0 // pred_fallthru
    _
  // Predicated region
  $region34: #{tiny_transformer_packed.1} parent=0 // pred_check
    _
  $region35: #{tiny_transformer_packed.1} parent=0 // pred_check_branch
    %39 = sbr.rel (0) target = $region37
  $region36: #{tiny_transformer_packed.1} parent=0 // pred_region
    _
  $region37: #{tiny_transformer_packed.1} parent=0 // pred_fallthru
    _
  // Predicated region
  $region38: #{tiny_transformer_packed.1} parent=0 // pred_check
    _
  $region39: #{tiny_transformer_packed.1} parent=0 // pred_check_branch
    %41 = sbr.rel (0) target = $region41
  $region40: #{tiny_transformer_packed.1} parent=0 // pred_region
    _
  $region41: #{tiny_transformer_packed.1} parent=0 // pred_fallthru
    _
  // Predicated region
  $region42: #{tiny_transformer_packed.1} parent=0 // pred_check
    _
  $region43: #{tiny_transformer_packed.1} parent=0 // pred_check_branch
    %43 = sbr.rel (0) target = $region45
  $region44: #{tiny_transformer_packed.1} parent=0 // pred_region
    _
  $region45: #{tiny_transformer_packed.1} parent=0 // pred_fallthru
    _
  // Predicated region
  $region46: #{tiny_transformer_packed.1} parent=0 // pred_check
    _
  $region47: #{tiny_transformer_packed.1} parent=0 // pred_check_branch
    %45 = sbr.rel (0) target = $region49
  $region48: #{tiny_transformer_packed.1} parent=0 // pred_region
    _
  $region49: #{tiny_transformer_packed.1} parent=0 // pred_fallthru
    _
  // Predicated region
  $region50: #{tiny_transformer_packed.1} parent=0 // pred_check
    _
  $region51: #{tiny_transformer_packed.1} parent=0 // pred_check_branch
    %47 = sbr.rel (0) target = $region53
  $region52: #{tiny_transformer_packed.1} parent=0 // pred_region
    _
  $region53: #{tiny_transformer_packed.1} parent=0 // pred_fallthru
    _
  // Predicated region
  $region54: #{tiny_transformer_packed.1} parent=0 // pred_check
    _
  $region55: #{tiny_transformer_packed.1} parent=0 // pred_check_branch
    %49 = sbr.rel (0) target = $region57
  $region56: #{tiny_transformer_packed.1} parent=0 // pred_region
    _
  $region57: #{tiny_transformer_packed.1} parent=0 // pred_fallthru
    _
  // Predicated region
  $region58: #{tiny_transformer_packed.1} parent=0 // pred_check
    _
  $region59: #{tiny_transformer_packed.1} parent=0 // pred_check_branch
    %51 = sbr.rel (0) target = $region61
  $region60: #{tiny_transformer_packed.1} parent=0 // pred_region
    _
  $region61: #{tiny_transformer_packed.1} parent=0 // pred_fallthru
    _
  // Predicated region
  $region62: #{tiny_transformer_packed.1} parent=0 // pred_check
    _
  $region63: #{tiny_transformer_packed.1} parent=0 // pred_check_branch
    %53 = sbr.rel (0) target = $region65
  $region64: #{tiny_transformer_packed.1} parent=0 // pred_region
    _
  $region65: #{tiny_transformer_packed.1} parent=0 // pred_fallthru
    _
  // Predicated region
  $region66: #{tiny_transformer_packed.1} parent=0 // pred_check
    _
  $region67: #{tiny_transformer_packed.1} parent=0 // pred_check_branch
    %55 = sbr.rel (0) target = $region69
  $region68: #{tiny_transformer_packed.1} parent=0 // pred_region
    _
  $region69: #{tiny_transformer_packed.1} parent=0 // pred_fallthru
    _
  %v56 = vld [vmem:[%s0] sm:$0xff]
  %v57 = vld [vmem:[%s0 + $0x8] sm:$0xff]
  %v58 = vld [vmem:[%s0 + $0x10] sm:$0xff]
  %v59 = vlaneseq
  %v60 = vand.u32 %v59, 127
  %61 = vset.pattern.permute.xlu0 0
  %62 = vperm.xlu0 %61, %v56
  %v63 = vpop.permute.xlu0 %62
  %64 = vset.pattern.permute.xlu0 0
  %65 = vperm.xlu0 %64, %v57
  %v66 = vpop.permute.xlu0 %65
  %67 = vset.pattern.permute.xlu0 0
  %68 = vperm.xlu0 %67, %v58
  %v69 = vpop.permute.xlu0 %68
  %vm70 = vcmp.eq.s32.totalorder %v60, %v63
  %vm71 = vcmp.eq.s32.totalorder %v60, %v66
  %vm72 = vcmp.eq.s32.totalorder %v60, %v69
  %v73 = vsel %vm70, 1, 0
  %v74 = vsel %vm71, 1, 0
  %v75 = vsel %vm72, 1, 0
  %v76 = vcvt.s32.f32 %v73
  %v77 = vcvt.s32.f32 %v74
  %v78 = vcvt.s32.f32 %v75
  %v79 = vld [vmem:[%s1] sm:$0xff]
  %v80 = vld [vmem:[%s1 + $0x8] sm:$0x3]
  %v81 = vld [vmem:[%s2] sm:$0xff]
  %v82 = vld [vmem:[%s2 + $0x8] sm:$0xff]
  %v83 = vld [vmem:[%s2 + $0x10] sm:$0xff]
  %vm84 = vcmask 80896
  %v86 = vsel %vm84, %v76, 0
  %v89 = vsel %vm84, %v77, 0
  %v92 = vsel %vm84, %v78, 0
  %vm94 = vcmask 1041408
  %v96 = vsel %vm94, %v80, 0
  %98 = vmatpush.msra.mxu0 0.0
  %99 = vmatpush.msra.mxu0 0.0
  %100 = vmatpush.msra.mxu0 0.0
  %101 = vmatpush.msra.mxu0 0.0
  %102 = vmatpush.msra.mxu0 0.0
  %103 = vmatpush.msra.mxu0 0.0
  %104 = vmatpush.msra.mxu0 0.0
  %105 = vmatpush.msra.mxu0 0.0
  %106 = vmatpush.msra.mxu0 0.0
  %107 = vmatpush.msra.mxu0 0.0
  %108 = vmatpush.msra.mxu0 0.0
  %109 = vmatpush.msra.mxu0 0.0
  %110 = vmatpush.msra.mxu0 0.0
  %111 = vmatpush.msra.mxu0 0.0
  %v112 = vand.u32 %v96, 4294901760
  %113 = vmatpush.msra.mxu0 %v112
  %v114 = vand.u32 %v79, 4294901760
  %115 = vmatpush.msra.mxu0 %v114
  %v116 = vand.u32 %v86, 4294901760
  %v117 = vsub.f32 %v86, %v116
  %v118 = vand.u32 %v117, 4294901760
  %v119 = vsub.f32 %v117, %v118
  %v120 = vand.u32 %v119, 4294901760
  %121 = vmatmul.f32.gmra.mxu0 %v120
  %v122 = vpop.f32.mrf.mxu0
  %v123 = vadd.f32 %v81, %v122
  %v124 = vand.u32 %v89, 4294901760
  %v125 = vsub.f32 %v89, %v124
  %v126 = vand.u32 %v125, 4294901760
  %v127 = vsub.f32 %v125, %v126
  %v128 = vand.u32 %v127, 4294901760
  %129 = vmatmul.f32.gmra.mxu0 %v128
  %v130 = vpop.f32.mrf.mxu0
  %v131 = vadd.f32 %v82, %v130
  %v132 = vand.u32 %v92, 4294901760
  %v133 = vsub.f32 %v92, %v132
  %v134 = vand.u32 %v133, 4294901760
  %v135 = vsub.f32 %v133, %v134
  %v136 = vand.u32 %v135, 4294901760
  %137 = vmatmul.f32.gmra.mxu0 %v136
  %v138 = vpop.f32.mrf.mxu0
  %v139 = vadd.f32 %v83, %v138
  %140 = vdwg.mxu0
  %141 = vmatpush.msra.mxu0 0.0
  %142 = vmatpush.msra.mxu0 0.0
  %143 = vmatpush.msra.mxu0 0.0
  %144 = vmatpush.msra.mxu0 0.0
  %145 = vmatpush.msra.mxu0 0.0
  %146 = vmatpush.msra.mxu0 0.0
  %147 = vmatpush.msra.mxu0 0.0
  %148 = vmatpush.msra.mxu0 0.0
  %149 = vmatpush.msra.mxu0 0.0
  %150 = vmatpush.msra.mxu0 0.0
  %151 = vmatpush.msra.mxu0 0.0
  %152 = vmatpush.msra.mxu0 0.0
  %153 = vmatpush.msra.mxu0 0.0
  %154 = vmatpush.msra.mxu0 0.0
  %v155 = vand.u32 %v96, 4294901760
  %v156 = vsub.f32 %v96, %v155
  %v157 = vand.u32 %v156, 4294901760
  %v158 = vsub.f32 %v156, %v157
  %v159 = vand.u32 %v158, 4294901760
  %160 = vmatpush.msra.mxu0 %v159
  %v161 = vand.u32 %v79, 4294901760
  %v162 = vsub.f32 %v79, %v161
  %v163 = vand.u32 %v162, 4294901760
  %v164 = vsub.f32 %v162, %v163
  %v165 = vand.u32 %v164, 4294901760
  %166 = vmatpush.msra.mxu0 %v165
  %v167 = vand.u32 %v86, 4294901760
  %168 = vmatmul.f32.gmra.mxu0 %v167
  %v169 = vpop.f32.mrf.mxu0
  %v170 = vadd.f32 %v123, %v169
  %v171 = vand.u32 %v89, 4294901760
  %172 = vmatmul.f32.gmra.mxu0 %v171
  %v173 = vpop.f32.mrf.mxu0
  %v174 = vadd.f32 %v131, %v173
  %v175 = vand.u32 %v92, 4294901760
  %176 = vmatmul.f32.gmra.mxu0 %v175
  %v177 = vpop.f32.mrf.mxu0
  %v178 = vadd.f32 %v139, %v177
  %179 = vdwg.mxu0
  %180 = vmatpush.msra.mxu0 0.0
  %181 = vmatpush.msra.mxu0 0.0
  %182 = vmatpush.msra.mxu0 0.0
  %183 = vmatpush.msra.mxu0 0.0
  %184 = vmatpush.msra.mxu0 0.0
  %185 = vmatpush.msra.mxu0 0.0
  %186 = vmatpush.msra.mxu0 0.0
  %187 = vmatpush.msra.mxu0 0.0
  %188 = vmatpush.msra.mxu0 0.0
  %189 = vmatpush.msra.mxu0 0.0
  %190 = vmatpush.msra.mxu0 0.0
  %191 = vmatpush.msra.mxu0 0.0
  %192 = vmatpush.msra.mxu0 0.0
  %193 = vmatpush.msra.mxu0 0.0
  %v194 = vand.u32 %v96, 4294901760
  %v195 = vsub.f32 %v96, %v194
  %196 = vmatpush.msra.mxu0 %v195
  %v197 = vand.u32 %v79, 4294901760
  %v198 = vsub.f32 %v79, %v197
  %199 = vmatpush.msra.mxu0 %v198
  %v200 = vand.u32 %v86, 4294901760
  %v201 = vsub.f32 %v86, %v200
  %202 = vmatmul.f32.gmra.mxu0 %v201
  %v203 = vpop.f32.mrf.mxu0
  %v204 = vadd.f32 %v170, %v203
  %v205 = vand.u32 %v89, 4294901760
  %v206 = vsub.f32 %v89, %v205
  %207 = vmatmul.f32.gmra.mxu0 %v206
  %v208 = vpop.f32.mrf.mxu0
  %v209 = vadd.f32 %v174, %v208
  %v210 = vand.u32 %v92, 4294901760
  %v211 = vsub.f32 %v92, %v210
  %212 = vmatmul.f32.gmra.mxu0 %v211
  %v213 = vpop.f32.mrf.mxu0
  %v214 = vadd.f32 %v178, %v213
  %215 = vdwg.mxu0
  %216 = vmatpush.msra.mxu0 0.0
  %217 = vmatpush.msra.mxu0 0.0
  %218 = vmatpush.msra.mxu0 0.0
  %219 = vmatpush.msra.mxu0 0.0
  %220 = vmatpush.msra.mxu0 0.0
  %221 = vmatpush.msra.mxu0 0.0
  %222 = vmatpush.msra.mxu0 0.0
  %223 = vmatpush.msra.mxu0 0.0
  %224 = vmatpush.msra.mxu0 0.0
  %225 = vmatpush.msra.mxu0 0.0
  %226 = vmatpush.msra.mxu0 0.0
  %227 = vmatpush.msra.mxu0 0.0
  %228 = vmatpush.msra.mxu0 0.0
  %229 = vmatpush.msra.mxu0 0.0
  %v230 = vand.u32 %v96, 4294901760
  %231 = vmatpush.msra.mxu0 %v230
  %v232 = vand.u32 %v79, 4294901760
  %233 = vmatpush.msra.mxu0 %v232
  %v234 = vand.u32 %v86, 4294901760
  %v235 = vsub.f32 %v86, %v234
  %v236 = vand.u32 %v235, 4294901760
  %237 = vmatmul.f32.gmra.mxu0 %v236
  %v238 = vpop.f32.mrf.mxu0
  %v239 = vadd.f32 %v204, %v238
  %v240 = vand.u32 %v89, 4294901760
  %v241 = vsub.f32 %v89, %v240
  %v242 = vand.u32 %v241, 4294901760
  %243 = vmatmul.f32.gmra.mxu0 %v242
  %v244 = vpop.f32.mrf.mxu0
  %v245 = vadd.f32 %v209, %v244
  %v246 = vand.u32 %v92, 4294901760
  %v247 = vsub.f32 %v92, %v246
  %v248 = vand.u32 %v247, 4294901760
  %249 = vmatmul.f32.gmra.mxu0 %v248
  %v250 = vpop.f32.mrf.mxu0
  %v251 = vadd.f32 %v214, %v250
  %252 = vdwg.mxu0
  %253 = vmatpush.msra.mxu0 0.0
  %254 = vmatpush.msra.mxu0 0.0
  %255 = vmatpush.msra.mxu0 0.0
  %256 = vmatpush.msra.mxu0 0.0
  %257 = vmatpush.msra.mxu0 0.0
  %258 = vmatpush.msra.mxu0 0.0
  %259 = vmatpush.msra.mxu0 0.0
  %260 = vmatpush.msra.mxu0 0.0
  %261 = vmatpush.msra.mxu0 0.0
  %262 = vmatpush.msra.mxu0 0.0
  %263 = vmatpush.msra.mxu0 0.0
  %264 = vmatpush.msra.mxu0 0.0
  %265 = vmatpush.msra.mxu0 0.0
  %266 = vmatpush.msra.mxu0 0.0
  %v267 = vand.u32 %v96, 4294901760
  %v268 = vsub.f32 %v96, %v267
  %v269 = vand.u32 %v268, 4294901760
  %270 = vmatpush.msra.mxu0 %v269
  %v271 = vand.u32 %v79, 4294901760
  %v272 = vsub.f32 %v79, %v271
  %v273 = vand.u32 %v272, 4294901760
  %274 = vmatpush.msra.mxu0 %v273
  %v275 = vand.u32 %v86, 4294901760
  %276 = vmatmul.f32.gmra.mxu0 %v275
  %v277 = vpop.f32.mrf.mxu0
  %v278 = vadd.f32 %v239, %v277
  %v279 = vand.u32 %v89, 4294901760
  %280 = vmatmul.f32.gmra.mxu0 %v279
  %v281 = vpop.f32.mrf.mxu0
  %v282 = vadd.f32 %v245, %v281
  %v283 = vand.u32 %v92, 4294901760
  %284 = vmatmul.f32.gmra.mxu0 %v283
  %v285 = vpop.f32.mrf.mxu0
  %v286 = vadd.f32 %v251, %v285
  %287 = vdwg.mxu0
  %288 = vmatpush.msra.mxu0 0.0
  %289 = vmatpush.msra.mxu0 0.0
  %290 = vmatpush.msra.mxu0 0.0
  %291 = vmatpush.msra.mxu0 0.0
  %292 = vmatpush.msra.mxu0 0.0
  %293 = vmatpush.msra.mxu0 0.0
  %294 = vmatpush.msra.mxu0 0.0
  %295 = vmatpush.msra.mxu0 0.0
  %296 = vmatpush.msra.mxu0 0.0
  %297 = vmatpush.msra.mxu0 0.0
  %298 = vmatpush.msra.mxu0 0.0
  %299 = vmatpush.msra.mxu0 0.0
  %300 = vmatpush.msra.mxu0 0.0
  %301 = vmatpush.msra.mxu0 0.0
  %v302 = vand.u32 %v96, 4294901760
  %303 = vmatpush.msra.mxu0 %v302
  %v304 = vand.u32 %v79, 4294901760
  %305 = vmatpush.msra.mxu0 %v304
  %v306 = vand.u32 %v86, 4294901760
  %307 = vmatmul.f32.gmra.mxu0 %v306
  %v308 = vpop.f32.mrf.mxu0
  %v309 = vadd.f32 %v278, %v308
  %v310 = vand.u32 %v89, 4294901760
  %311 = vmatmul.f32.gmra.mxu0 %v310
  %v312 = vpop.f32.mrf.mxu0
  %v313 = vadd.f32 %v282, %v312
  %v314 = vand.u32 %v92, 4294901760
  %315 = vmatmul.f32.gmra.mxu0 %v314
  %v316 = vpop.f32.mrf.mxu0
  %v317 = vadd.f32 %v286, %v316
  %318 = vdwg.mxu0
  %v319 = vld [vmem:[%s3] sm:$0xff]
  %v320 = vld [vmem:[%s3 + $0x8] sm:$0xff]
  %v321 = vld [vmem:[%s3 + $0x10] sm:$0xff]
  %vm322 = vcmask 97280
  %v323 = vsel %vm322, %v309, 0.0
  %324 = vadd.xlane.f32.xlu0 %v323
  %v325 = vpop.xlane.xlu0 %324
  %v326 = vsel %vm322, %v313, 0.0
  %327 = vadd.xlane.f32.xlu0 %v326
  %v328 = vpop.xlane.xlu0 %327
  %v329 = vsel %vm322, %v317, 0.0
  %330 = vadd.xlane.f32.xlu0 %v329
  %v331 = vpop.xlane.xlu0 %330
  %v332 = vrcp.pop 12.0
  %v333 = vmul.f32 12.0, %v332
  %v334 = vsub.f32 1.0, %v333
  %v335 = vmul.f32 %v332, %v334
  %v336 = vadd.f32 %v332, %v335
  %vm337 = vweird.f32 %v332
  %v338 = vsel %vm337, %v332, %v336
  %v339 = vmul.f32 %v325, %v338
  %v340 = vmul.f32 %v328, %v338
  %v341 = vmul.f32 %v331, %v338
  %v342 = vsub.f32 %v309, %v339
  %v343 = vsub.f32 %v313, %v340
  %v344 = vsub.f32 %v317, %v341
  %v345 = vmul.f32 %v342, %v342
  %v346 = vmul.f32 %v343, %v343
  %v347 = vmul.f32 %v344, %v344
  %v348 = vsel %vm322, %v345, 0.0
  %349 = vadd.xlane.f32.xlu0 %v348
  %v350 = vpop.xlane.xlu0 %349
  %v351 = vsel %vm322, %v346, 0.0
  %352 = vadd.xlane.f32.xlu0 %v351
  %v353 = vpop.xlane.xlu0 %352
  %v354 = vsel %vm322, %v347, 0.0
  %355 = vadd.xlane.f32.xlu0 %v354
  %v356 = vpop.xlane.xlu0 %355
  %v357 = vmul.f32 %v350, %v338
  %v358 = vmul.f32 %v353, %v338
  %v359 = vmul.f32 %v356, %v338
  %v360 = vadd.f32 %v357, 1e-05
  %v361 = vadd.f32 %v358, 1e-05
  %v362 = vadd.f32 %v359, 1e-05
  %v363 = vrsqrt.pop %v360
  %v364 = vmul.f32 %v363, %v360
  %v365 = vmul.f32 %v364, %v363
  %v366 = vmul.f32 0.5, %v365
  %v367 = vsub.f32 1.5, %v366
  %v368 = vmul.f32 %v363, %v367
  %vm369 = vweird.f32 %v360
  %vm370 = vweird.f32 %v363
  %vm371 = vmor %vm369, %vm370
  %v372 = vsel %vm371, %v363, %v368
  %v373 = vrsqrt.pop %v361
  %v374 = vmul.f32 %v373, %v361
  %v375 = vmul.f32 %v374, %v373
  %v376 = vmul.f32 0.5, %v375
  %v377 = vsub.f32 1.5, %v376
  %v378 = vmul.f32 %v373, %v377
  %vm379 = vweird.f32 %v361
  %vm380 = vweird.f32 %v373
  %vm381 = vmor %vm379, %vm380
  %v382 = vsel %vm381, %v373, %v378
  %v383 = vrsqrt.pop %v362
  %v384 = vmul.f32 %v383, %v362
  %v385 = vmul.f32 %v384, %v383
  %v386 = vmul.f32 0.5, %v385
  %v387 = vsub.f32 1.5, %v386
  %v388 = vmul.f32 %v383, %v387
  %vm389 = vweird.f32 %v362
  %vm390 = vweird.f32 %v383
  %vm391 = vmor %vm389, %vm390
  %v392 = vsel %vm391, %v383, %v388
  %v393 = vmul.f32 %v342, %v372
  %v394 = vmul.f32 %v343, %v382
  %v395 = vmul.f32 %v344, %v392
  %v396 = vld [vmem:[%s4] sm:$0xff]
  %v397 = vld [vmem:[%s4 + $0x8] sm:$0xf]
  %v398 = vld [vmem:[%s5] sm:$0x1]
  %v400 = vperm.slane %v398, 0
  %v403 = vsel %vm322, %v393, 0
  %v406 = vsel %vm322, %v394, 0
  %v409 = vsel %vm322, %v395, 0
  %vm411 = vcmask 1043456
  %v413 = vsel %vm411, %v397, 0
  %415 = vmatpush.msra.mxu0 0.0
  %416 = vmatpush.msra.mxu0 0.0
  %417 = vmatpush.msra.mxu0 0.0
  %418 = vmatpush.msra.mxu0 0.0
  %419 = vmatpush.msra.mxu0 0.0
  %420 = vmatpush.msra.mxu0 0.0
  %421 = vmatpush.msra.mxu0 0.0
  %422 = vmatpush.msra.mxu0 0.0
  %423 = vmatpush.msra.mxu0 0.0
  %424 = vmatpush.msra.mxu0 0.0
  %425 = vmatpush.msra.mxu0 0.0
  %426 = vmatpush.msra.mxu0 0.0
  %427 = vmatpush.msra.mxu0 0.0
  %428 = vmatpush.msra.mxu0 0.0
  %v429 = vand.u32 %v413, 4294901760
  %430 = vmatpush.msra.mxu0 %v429
  %v431 = vand.u32 %v396, 4294901760
  %432 = vmatpush.msra.mxu0 %v431
  %v433 = vand.u32 %v403, 4294901760
  %v434 = vsub.f32 %v403, %v433
  %v435 = vand.u32 %v434, 4294901760
  %v436 = vsub.f32 %v434, %v435
  %v437 = vand.u32 %v436, 4294901760
  %438 = vmatmul.f32.gmra.mxu0 %v437
  %v439 = vpop.f32.mrf.mxu0
  %v440 = vadd.f32 %v400, %v439
  %v441 = vand.u32 %v406, 4294901760
  %v442 = vsub.f32 %v406, %v441
  %v443 = vand.u32 %v442, 4294901760
  %v444 = vsub.f32 %v442, %v443
  %v445 = vand.u32 %v444, 4294901760
  %446 = vmatmul.f32.gmra.mxu0 %v445
  %v447 = vpop.f32.mrf.mxu0
  %v448 = vadd.f32 %v400, %v447
  %v449 = vand.u32 %v409, 4294901760
  %v450 = vsub.f32 %v409, %v449
  %v451 = vand.u32 %v450, 4294901760
  %v452 = vsub.f32 %v450, %v451
  %v453 = vand.u32 %v452, 4294901760
  %454 = vmatmul.f32.gmra.mxu0 %v453
  %v455 = vpop.f32.mrf.mxu0
  %v456 = vadd.f32 %v400, %v455
  %457 = vdwg.mxu0
  %458 = vmatpush.msra.mxu0 0.0
  %459 = vmatpush.msra.mxu0 0.0
  %460 = vmatpush.msra.mxu0 0.0
  %461 = vmatpush.msra.mxu0 0.0
  %462 = vmatpush.msra.mxu0 0.0
  %463 = vmatpush.msra.mxu0 0.0
  %464 = vmatpush.msra.mxu0 0.0
  %465 = vmatpush.msra.mxu0 0.0
  %466 = vmatpush.msra.mxu0 0.0
  %467 = vmatpush.msra.mxu0 0.0
  %468 = vmatpush.msra.mxu0 0.0
  %469 = vmatpush.msra.mxu0 0.0
  %470 = vmatpush.msra.mxu0 0.0
  %471 = vmatpush.msra.mxu0 0.0
  %v472 = vand.u32 %v413, 4294901760
  %v473 = vsub.f32 %v413, %v472
  %v474 = vand.u32 %v473, 4294901760
  %v475 = vsub.f32 %v473, %v474
  %v476 = vand.u32 %v475, 4294901760
  %477 = vmatpush.msra.mxu0 %v476
  %v478 = vand.u32 %v396, 4294901760
  %v479 = vsub.f32 %v396, %v478
  %v480 = vand.u32 %v479, 4294901760
  %v481 = vsub.f32 %v479, %v480
  %v482 = vand.u32 %v481, 4294901760
  %483 = vmatpush.msra.mxu0 %v482
  %v484 = vand.u32 %v403, 4294901760
  %485 = vmatmul.f32.gmra.mxu0 %v484
  %v486 = vpop.f32.mrf.mxu0
  %v487 = vadd.f32 %v440, %v486
  %v488 = vand.u32 %v406, 4294901760
  %489 = vmatmul.f32.gmra.mxu0 %v488
  %v490 = vpop.f32.mrf.mxu0
  %v491 = vadd.f32 %v448, %v490
  %v492 = vand.u32 %v409, 4294901760
  %493 = vmatmul.f32.gmra.mxu0 %v492
  %v494 = vpop.f32.mrf.mxu0
  %v495 = vadd.f32 %v456, %v494
  %496 = vdwg.mxu0
  %497 = vmatpush.msra.mxu0 0.0
  %498 = vmatpush.msra.mxu0 0.0
  %499 = vmatpush.msra.mxu0 0.0
  %500 = vmatpush.msra.mxu0 0.0
  %501 = vmatpush.msra.mxu0 0.0
  %502 = vmatpush.msra.mxu0 0.0
  %503 = vmatpush.msra.mxu0 0.0
  %504 = vmatpush.msra.mxu0 0.0
  %505 = vmatpush.msra.mxu0 0.0
  %506 = vmatpush.msra.mxu0 0.0
  %507 = vmatpush.msra.mxu0 0.0
  %508 = vmatpush.msra.mxu0 0.0
  %509 = vmatpush.msra.mxu0 0.0
  %510 = vmatpush.msra.mxu0 0.0
  %v511 = vand.u32 %v413, 4294901760
  %v512 = vsub.f32 %v413, %v511
  %513 = vmatpush.msra.mxu0 %v512
  %v514 = vand.u32 %v396, 4294901760
  %v515 = vsub.f32 %v396, %v514
  %516 = vmatpush.msra.mxu0 %v515
  %v517 = vand.u32 %v403, 4294901760
  %v518 = vsub.f32 %v403, %v517
  %519 = vmatmul.f32.gmra.mxu0 %v518
  %v520 = vpop.f32.mrf.mxu0
  %v521 = vadd.f32 %v487, %v520
  %v522 = vand.u32 %v406, 4294901760
  %v523 = vsub.f32 %v406, %v522
  %524 = vmatmul.f32.gmra.mxu0 %v523
  %v525 = vpop.f32.mrf.mxu0
  %v526 = vadd.f32 %v491, %v525
  %v527 = vand.u32 %v409, 4294901760
  %v528 = vsub.f32 %v409, %v527
  %529 = vmatmul.f32.gmra.mxu0 %v528
  %v530 = vpop.f32.mrf.mxu0
  %v531 = vadd.f32 %v495, %v530
  %532 = vdwg.mxu0
  %533 = vmatpush.msra.mxu0 0.0
  %534 = vmatpush.msra.mxu0 0.0
  %535 = vmatpush.msra.mxu0 0.0
  %536 = vmatpush.msra.mxu0 0.0
  %537 = vmatpush.msra.mxu0 0.0
  %538 = vmatpush.msra.mxu0 0.0
  %539 = vmatpush.msra.mxu0 0.0
  %540 = vmatpush.msra.mxu0 0.0
  %541 = vmatpush.msra.mxu0 0.0
  %542 = vmatpush.msra.mxu0 0.0
  %543 = vmatpush.msra.mxu0 0.0
  %544 = vmatpush.msra.mxu0 0.0
  %545 = vmatpush.msra.mxu0 0.0
  %546 = vmatpush.msra.mxu0 0.0
  %v547 = vand.u32 %v413, 4294901760
  %548 = vmatpush.msra.mxu0 %v547
  %v549 = vand.u32 %v396, 4294901760
  %550 = vmatpush.msra.mxu0 %v549
  %v551 = vand.u32 %v403, 4294901760
  %v552 = vsub.f32 %v403, %v551
  %v553 = vand.u32 %v552, 4294901760
  %554 = vmatmul.f32.gmra.mxu0 %v553
  %v555 = vpop.f32.mrf.mxu0
  %v556 = vadd.f32 %v521, %v555
  %v557 = vand.u32 %v406, 4294901760
  %v558 = vsub.f32 %v406, %v557
  %v559 = vand.u32 %v558, 4294901760
  %560 = vmatmul.f32.gmra.mxu0 %v559
  %v561 = vpop.f32.mrf.mxu0
  %v562 = vadd.f32 %v526, %v561
  %v563 = vand.u32 %v409, 4294901760
  %v564 = vsub.f32 %v409, %v563
  %v565 = vand.u32 %v564, 4294901760
  %566 = vmatmul.f32.gmra.mxu0 %v565
  %v567 = vpop.f32.mrf.mxu0
  %v568 = vadd.f32 %v531, %v567
  %569 = vdwg.mxu0
  %570 = vmatpush.msra.mxu0 0.0
  %571 = vmatpush.msra.mxu0 0.0
  %572 = vmatpush.msra.mxu0 0.0
  %573 = vmatpush.msra.mxu0 0.0
  %574 = vmatpush.msra.mxu0 0.0
  %575 = vmatpush.msra.mxu0 0.0
  %576 = vmatpush.msra.mxu0 0.0
  %577 = vmatpush.msra.mxu0 0.0
  %578 = vmatpush.msra.mxu0 0.0
  %579 = vmatpush.msra.mxu0 0.0
  %580 = vmatpush.msra.mxu0 0.0
  %581 = vmatpush.msra.mxu0 0.0
  %582 = vmatpush.msra.mxu0 0.0
  %583 = vmatpush.msra.mxu0 0.0
  %v584 = vand.u32 %v413, 4294901760
  %v585 = vsub.f32 %v413, %v584
  %v586 = vand.u32 %v585, 4294901760
  %587 = vmatpush.msra.mxu0 %v586
  %v588 = vand.u32 %v396, 4294901760
  %v589 = vsub.f32 %v396, %v588
  %v590 = vand.u32 %v589, 4294901760
  %591 = vmatpush.msra.mxu0 %v590
  %v592 = vand.u32 %v403, 4294901760
  %593 = vmatmul.f32.gmra.mxu0 %v592
  %v594 = vpop.f32.mrf.mxu0
  %v595 = vadd.f32 %v556, %v594
  %v596 = vand.u32 %v406, 4294901760
  %597 = vmatmul.f32.gmra.mxu0 %v596
  %v598 = vpop.f32.mrf.mxu0
  %v599 = vadd.f32 %v562, %v598
  %v600 = vand.u32 %v409, 4294901760
  %601 = vmatmul.f32.gmra.mxu0 %v600
  %v602 = vpop.f32.mrf.mxu0
  %v603 = vadd.f32 %v568, %v602
  %604 = vdwg.mxu0
  %605 = vmatpush.msra.mxu0 0.0
  %606 = vmatpush.msra.mxu0 0.0
  %607 = vmatpush.msra.mxu0 0.0
  %608 = vmatpush.msra.mxu0 0.0
  %609 = vmatpush.msra.mxu0 0.0
  %610 = vmatpush.msra.mxu0 0.0
  %611 = vmatpush.msra.mxu0 0.0
  %612 = vmatpush.msra.mxu0 0.0
  %613 = vmatpush.msra.mxu0 0.0
  %614 = vmatpush.msra.mxu0 0.0
  %615 = vmatpush.msra.mxu0 0.0
  %616 = vmatpush.msra.mxu0 0.0
  %617 = vmatpush.msra.mxu0 0.0
  %618 = vmatpush.msra.mxu0 0.0
  %v619 = vand.u32 %v413, 4294901760
  %620 = vmatpush.msra.mxu0 %v619
  %v621 = vand.u32 %v396, 4294901760
  %622 = vmatpush.msra.mxu0 %v621
  %v623 = vand.u32 %v403, 4294901760
  %624 = vmatmul.f32.gmra.mxu0 %v623
  %v625 = vpop.f32.mrf.mxu0
  %v626 = vadd.f32 %v595, %v625
  %v627 = vand.u32 %v406, 4294901760
  %628 = vmatmul.f32.gmra.mxu0 %v627
  %v629 = vpop.f32.mrf.mxu0
  %v630 = vadd.f32 %v599, %v629
  %v631 = vand.u32 %v409, 4294901760
  %632 = vmatmul.f32.gmra.mxu0 %v631
  %v633 = vpop.f32.mrf.mxu0
  %v634 = vadd.f32 %v603, %v633
  %635 = vdwg.mxu0
  %v636 = vld [vmem:[%s6] sm:$0xff]
  %v637 = vld [vmem:[%s6 + $0x8] sm:$0xf]
  %v638 = vld [vmem:[%s7] sm:$0x1]
  %v640 = vperm.slane %v638, 0
  %v643 = vsel %vm411, %v637, 0
  %645 = vmatpush.msra.mxu0 0.0
  %646 = vmatpush.msra.mxu0 0.0
  %647 = vmatpush.msra.mxu0 0.0
  %648 = vmatpush.msra.mxu0 0.0
  %649 = vmatpush.msra.mxu0 0.0
  %650 = vmatpush.msra.mxu0 0.0
  %651 = vmatpush.msra.mxu0 0.0
  %652 = vmatpush.msra.mxu0 0.0
  %653 = vmatpush.msra.mxu0 0.0
  %654 = vmatpush.msra.mxu0 0.0
  %655 = vmatpush.msra.mxu0 0.0
  %656 = vmatpush.msra.mxu0 0.0
  %657 = vmatpush.msra.mxu0 0.0
  %658 = vmatpush.msra.mxu0 0.0
  %v659 = vand.u32 %v643, 4294901760
  %660 = vmatpush.msra.mxu0 %v659
  %v661 = vand.u32 %v636, 4294901760
  %662 = vmatpush.msra.mxu0 %v661
  %v663 = vand.u32 %v403, 4294901760
  %v664 = vsub.f32 %v403, %v663
  %v665 = vand.u32 %v664, 4294901760
  %v666 = vsub.f32 %v664, %v665
  %v667 = vand.u32 %v666, 4294901760
  %668 = vmatmul.f32.gmra.mxu0 %v667
  %v669 = vpop.f32.mrf.mxu0
  %v670 = vadd.f32 %v640, %v669
  %v671 = vand.u32 %v406, 4294901760
  %v672 = vsub.f32 %v406, %v671
  %v673 = vand.u32 %v672, 4294901760
  %v674 = vsub.f32 %v672, %v673
  %v675 = vand.u32 %v674, 4294901760
  %676 = vmatmul.f32.gmra.mxu0 %v675
  %v677 = vpop.f32.mrf.mxu0
  %v678 = vadd.f32 %v640, %v677
  %v679 = vand.u32 %v409, 4294901760
  %v680 = vsub.f32 %v409, %v679
  %v681 = vand.u32 %v680, 4294901760
  %v682 = vsub.f32 %v680, %v681
  %v683 = vand.u32 %v682, 4294901760
  %684 = vmatmul.f32.gmra.mxu0 %v683
  %v685 = vpop.f32.mrf.mxu0
  %v686 = vadd.f32 %v640, %v685
  %687 = vdwg.mxu0
  %688 = vmatpush.msra.mxu0 0.0
  %689 = vmatpush.msra.mxu0 0.0
  %690 = vmatpush.msra.mxu0 0.0
  %691 = vmatpush.msra.mxu0 0.0
  %692 = vmatpush.msra.mxu0 0.0
  %693 = vmatpush.msra.mxu0 0.0
  %694 = vmatpush.msra.mxu0 0.0
  %695 = vmatpush.msra.mxu0 0.0
  %696 = vmatpush.msra.mxu0 0.0
  %697 = vmatpush.msra.mxu0 0.0
  %698 = vmatpush.msra.mxu0 0.0
  %699 = vmatpush.msra.mxu0 0.0
  %700 = vmatpush.msra.mxu0 0.0
  %701 = vmatpush.msra.mxu0 0.0
  %v702 = vand.u32 %v643, 4294901760
  %v703 = vsub.f32 %v643, %v702
  %v704 = vand.u32 %v703, 4294901760
  %v705 = vsub.f32 %v703, %v704
  %v706 = vand.u32 %v705, 4294901760
  %707 = vmatpush.msra.mxu0 %v706
  %v708 = vand.u32 %v636, 4294901760
  %v709 = vsub.f32 %v636, %v708
  %v710 = vand.u32 %v709, 4294901760
  %v711 = vsub.f32 %v709, %v710
  %v712 = vand.u32 %v711, 4294901760
  %713 = vmatpush.msra.mxu0 %v712
  %v714 = vand.u32 %v403, 4294901760
  %715 = vmatmul.f32.gmra.mxu0 %v714
  %v716 = vpop.f32.mrf.mxu0
  %v717 = vadd.f32 %v670, %v716
  %v718 = vand.u32 %v406, 4294901760
  %719 = vmatmul.f32.gmra.mxu0 %v718
  %v720 = vpop.f32.mrf.mxu0
  %v721 = vadd.f32 %v678, %v720
  %v722 = vand.u32 %v409, 4294901760
  %723 = vmatmul.f32.gmra.mxu0 %v722
  %v724 = vpop.f32.mrf.mxu0
  %v725 = vadd.f32 %v686, %v724
  %726 = vdwg.mxu0
  %727 = vmatpush.msra.mxu0 0.0
  %728 = vmatpush.msra.mxu0 0.0
  %729 = vmatpush.msra.mxu0 0.0
  %730 = vmatpush.msra.mxu0 0.0
  %731 = vmatpush.msra.mxu0 0.0
  %732 = vmatpush.msra.mxu0 0.0
  %733 = vmatpush.msra.mxu0 0.0
  %734 = vmatpush.msra.mxu0 0.0
  %735 = vmatpush.msra.mxu0 0.0
  %736 = vmatpush.msra.mxu0 0.0
  %737 = vmatpush.msra.mxu0 0.0
  %738 = vmatpush.msra.mxu0 0.0
  %739 = vmatpush.msra.mxu0 0.0
  %740 = vmatpush.msra.mxu0 0.0
  %v741 = vand.u32 %v643, 4294901760
  %v742 = vsub.f32 %v643, %v741
  %743 = vmatpush.msra.mxu0 %v742
  %v744 = vand.u32 %v636, 4294901760
  %v745 = vsub.f32 %v636, %v744
  %746 = vmatpush.msra.mxu0 %v745
  %v747 = vand.u32 %v403, 4294901760
  %v748 = vsub.f32 %v403, %v747
  %749 = vmatmul.f32.gmra.mxu0 %v748
  %v750 = vpop.f32.mrf.mxu0
  %v751 = vadd.f32 %v717, %v750
  %v752 = vand.u32 %v406, 4294901760
  %v753 = vsub.f32 %v406, %v752
  %754 = vmatmul.f32.gmra.mxu0 %v753
  %v755 = vpop.f32.mrf.mxu0
  %v756 = vadd.f32 %v721, %v755
  %v757 = vand.u32 %v409, 4294901760
  %v758 = vsub.f32 %v409, %v757
  %759 = vmatmul.f32.gmra.mxu0 %v758
  %v760 = vpop.f32.mrf.mxu0
  %v761 = vadd.f32 %v725, %v760
  %762 = vdwg.mxu0
  %763 = vmatpush.msra.mxu0 0.0
  %764 = vmatpush.msra.mxu0 0.0
  %765 = vmatpush.msra.mxu0 0.0
  %766 = vmatpush.msra.mxu0 0.0
  %767 = vmatpush.msra.mxu0 0.0
  %768 = vmatpush.msra.mxu0 0.0
  %769 = vmatpush.msra.mxu0 0.0
  %770 = vmatpush.msra.mxu0 0.0
  %771 = vmatpush.msra.mxu0 0.0
  %772 = vmatpush.msra.mxu0 0.0
  %773 = vmatpush.msra.mxu0 0.0
  %774 = vmatpush.msra.mxu0 0.0
  %775 = vmatpush.msra.mxu0 0.0
  %776 = vmatpush.msra.mxu0 0.0
  %v777 = vand.u32 %v643, 4294901760
  %778 = vmatpush.msra.mxu0 %v777
  %v779 = vand.u32 %v636, 4294901760
  %780 = vmatpush.msra.mxu0 %v779
  %v781 = vand.u32 %v403, 4294901760
  %v782 = vsub.f32 %v403, %v781
  %v783 = vand.u32 %v782, 4294901760
  %784 = vmatmul.f32.gmra.mxu0 %v783
  %v785 = vpop.f32.mrf.mxu0
  %v786 = vadd.f32 %v751, %v785
  %v787 = vand.u32 %v406, 4294901760
  %v788 = vsub.f32 %v406, %v787
  %v789 = vand.u32 %v788, 4294901760
  %790 = vmatmul.f32.gmra.mxu0 %v789
  %v791 = vpop.f32.mrf.mxu0
  %v792 = vadd.f32 %v756, %v791
  %v793 = vand.u32 %v409, 4294901760
  %v794 = vsub.f32 %v409, %v793
  %v795 = vand.u32 %v794, 4294901760
  %796 = vmatmul.f32.gmra.mxu0 %v795
  %v797 = vpop.f32.mrf.mxu0
  %v798 = vadd.f32 %v761, %v797
  %799 = vdwg.mxu0
  %800 = vmatpush.msra.mxu0 0.0
  %801 = vmatpush.msra.mxu0 0.0
  %802 = vmatpush.msra.mxu0 0.0
  %803 = vmatpush.msra.mxu0 0.0
  %804 = vmatpush.msra.mxu0 0.0
  %805 = vmatpush.msra.mxu0 0.0
  %806 = vmatpush.msra.mxu0 0.0
  %807 = vmatpush.msra.mxu0 0.0
  %808 = vmatpush.msra.mxu0 0.0
  %809 = vmatpush.msra.mxu0 0.0
  %810 = vmatpush.msra.mxu0 0.0
  %811 = vmatpush.msra.mxu0 0.0
  %812 = vmatpush.msra.mxu0 0.0
  %813 = vmatpush.msra.mxu0 0.0
  %v814 = vand.u32 %v643, 4294901760
  %v815 = vsub.f32 %v643, %v814
  %v816 = vand.u32 %v815, 4294901760
  %817 = vmatpush.msra.mxu0 %v816
  %v818 = vand.u32 %v636, 4294901760
  %v819 = vsub.f32 %v636, %v818
  %v820 = vand.u32 %v819, 4294901760
  %821 = vmatpush.msra.mxu0 %v820
  %v822 = vand.u32 %v403, 4294901760
  %823 = vmatmul.f32.gmra.mxu0 %v822
  %v824 = vpop.f32.mrf.mxu0
  %v825 = vadd.f32 %v786, %v824
  %v826 = vand.u32 %v406, 4294901760
  %827 = vmatmul.f32.gmra.mxu0 %v826
  %v828 = vpop.f32.mrf.mxu0
  %v829 = vadd.f32 %v792, %v828
  %v830 = vand.u32 %v409, 4294901760
  %831 = vmatmul.f32.gmra.mxu0 %v830
  %v832 = vpop.f32.mrf.mxu0
  %v833 = vadd.f32 %v798, %v832
  %834 = vdwg.mxu0
  %835 = vmatpush.msra.mxu0 0.0
  %836 = vmatpush.msra.mxu0 0.0
  %837 = vmatpush.msra.mxu0 0.0
  %838 = vmatpush.msra.mxu0 0.0
  %839 = vmatpush.msra.mxu0 0.0
  %840 = vmatpush.msra.mxu0 0.0
  %841 = vmatpush.msra.mxu0 0.0
  %842 = vmatpush.msra.mxu0 0.0
  %843 = vmatpush.msra.mxu0 0.0
  %844 = vmatpush.msra.mxu0 0.0
  %845 = vmatpush.msra.mxu0 0.0
  %846 = vmatpush.msra.mxu0 0.0
  %847 = vmatpush.msra.mxu0 0.0
  %848 = vmatpush.msra.mxu0 0.0
  %v849 = vand.u32 %v643, 4294901760
  %850 = vmatpush.msra.mxu0 %v849
  %v851 = vand.u32 %v636, 4294901760
  %852 = vmatpush.msra.mxu0 %v851
  %v853 = vand.u32 %v403, 4294901760
  %854 = vmatmul.f32.gmra.mxu0 %v853
  %v855 = vpop.f32.mrf.mxu0
  %v856 = vadd.f32 %v825, %v855
  %v857 = vand.u32 %v406, 4294901760
  %858 = vmatmul.f32.gmra.mxu0 %v857
  %v859 = vpop.f32.mrf.mxu0
  %v860 = vadd.f32 %v829, %v859
  %v861 = vand.u32 %v409, 4294901760
  %862 = vmatmul.f32.gmra.mxu0 %v861
  %v863 = vpop.f32.mrf.mxu0
  %v864 = vadd.f32 %v833, %v863
  %865 = vdwg.mxu0
  %v866 = vld [vmem:[%s8] sm:$0xff]
  %v867 = vld [vmem:[%s8 + $0x8] sm:$0xf]
  %v868 = vld [vmem:[%s9] sm:$0x1]
  %v870 = vperm.slane %v868, 0
  %v873 = vsel %vm411, %v867, 0
  %875 = vmatpush.msra.mxu0 0.0
  %876 = vmatpush.msra.mxu0 0.0
  %877 = vmatpush.msra.mxu0 0.0
  %878 = vmatpush.msra.mxu0 0.0
  %879 = vmatpush.msra.mxu0 0.0
  %880 = vmatpush.msra.mxu0 0.0
  %881 = vmatpush.msra.mxu0 0.0
  %882 = vmatpush.msra.mxu0 0.0
  %883 = vmatpush.msra.mxu0 0.0
  %884 = vmatpush.msra.mxu0 0.0
  %885 = vmatpush.msra.mxu0 0.0
  %886 = vmatpush.msra.mxu0 0.0
  %887 = vmatpush.msra.mxu0 0.0
  %888 = vmatpush.msra.mxu0 0.0
  %v889 = vand.u32 %v873, 4294901760
  %890 = vmatpush.msra.mxu0 %v889
  %v891 = vand.u32 %v866, 4294901760
  %892 = vmatpush.msra.mxu0 %v891
  %v893 = vand.u32 %v403, 4294901760
  %v894 = vsub.f32 %v403, %v893
  %v895 = vand.u32 %v894, 4294901760
  %v896 = vsub.f32 %v894, %v895
  %v897 = vand.u32 %v896, 4294901760
  %898 = vmatmul.f32.gmra.mxu0 %v897
  %v899 = vpop.f32.mrf.mxu0
  %v900 = vadd.f32 %v870, %v899
  %v901 = vand.u32 %v406, 4294901760
  %v902 = vsub.f32 %v406, %v901
  %v903 = vand.u32 %v902, 4294901760
  %v904 = vsub.f32 %v902, %v903
  %v905 = vand.u32 %v904, 4294901760
  %906 = vmatmul.f32.gmra.mxu0 %v905
  %v907 = vpop.f32.mrf.mxu0
  %v908 = vadd.f32 %v870, %v907
  %v909 = vand.u32 %v409, 4294901760
  %v910 = vsub.f32 %v409, %v909
  %v911 = vand.u32 %v910, 4294901760
  %v912 = vsub.f32 %v910, %v911
  %v913 = vand.u32 %v912, 4294901760
  %914 = vmatmul.f32.gmra.mxu0 %v913
  %v915 = vpop.f32.mrf.mxu0
  %v916 = vadd.f32 %v870, %v915
  %917 = vdwg.mxu0
  %918 = vmatpush.msra.mxu0 0.0
  %919 = vmatpush.msra.mxu0 0.0
  %920 = vmatpush.msra.mxu0 0.0
  %921 = vmatpush.msra.mxu0 0.0
  %922 = vmatpush.msra.mxu0 0.0
  %923 = vmatpush.msra.mxu0 0.0
  %924 = vmatpush.msra.mxu0 0.0
  %925 = vmatpush.msra.mxu0 0.0
  %926 = vmatpush.msra.mxu0 0.0
  %927 = vmatpush.msra.mxu0 0.0
  %928 = vmatpush.msra.mxu0 0.0
  %929 = vmatpush.msra.mxu0 0.0
  %930 = vmatpush.msra.mxu0 0.0
  %931 = vmatpush.msra.mxu0 0.0
  %v932 = vand.u32 %v873, 4294901760
  %v933 = vsub.f32 %v873, %v932
  %v934 = vand.u32 %v933, 4294901760
  %v935 = vsub.f32 %v933, %v934
  %v936 = vand.u32 %v935, 4294901760
  %937 = vmatpush.msra.mxu0 %v936
  %v938 = vand.u32 %v866, 4294901760
  %v939 = vsub.f32 %v866, %v938
  %v940 = vand.u32 %v939, 4294901760
  %v941 = vsub.f32 %v939, %v940
  %v942 = vand.u32 %v941, 4294901760
  %943 = vmatpush.msra.mxu0 %v942
  %v944 = vand.u32 %v403, 4294901760
  %945 = vmatmul.f32.gmra.mxu0 %v944
  %v946 = vpop.f32.mrf.mxu0
  %v947 = vadd.f32 %v900, %v946
  %v948 = vand.u32 %v406, 4294901760
  %949 = vmatmul.f32.gmra.mxu0 %v948
  %v950 = vpop.f32.mrf.mxu0
  %v951 = vadd.f32 %v908, %v950
  %v952 = vand.u32 %v409, 4294901760
  %953 = vmatmul.f32.gmra.mxu0 %v952
  %v954 = vpop.f32.mrf.mxu0
  %v955 = vadd.f32 %v916, %v954
  %956 = vdwg.mxu0
  %957 = vmatpush.msra.mxu0 0.0
  %958 = vmatpush.msra.mxu0 0.0
  %959 = vmatpush.msra.mxu0 0.0
  %960 = vmatpush.msra.mxu0 0.0
  %961 = vmatpush.msra.mxu0 0.0
  %962 = vmatpush.msra.mxu0 0.0
  %963 = vmatpush.msra.mxu0 0.0
  %964 = vmatpush.msra.mxu0 0.0
  %965 = vmatpush.msra.mxu0 0.0
  %966 = vmatpush.msra.mxu0 0.0
  %967 = vmatpush.msra.mxu0 0.0
  %968 = vmatpush.msra.mxu0 0.0
  %969 = vmatpush.msra.mxu0 0.0
  %970 = vmatpush.msra.mxu0 0.0
  %v971 = vand.u32 %v873, 4294901760
  %v972 = vsub.f32 %v873, %v971
  %973 = vmatpush.msra.mxu0 %v972
  %v974 = vand.u32 %v866, 4294901760
  %v975 = vsub.f32 %v866, %v974
  %976 = vmatpush.msra.mxu0 %v975
  %v977 = vand.u32 %v403, 4294901760
  %v978 = vsub.f32 %v403, %v977
  %979 = vmatmul.f32.gmra.mxu0 %v978
  %v980 = vpop.f32.mrf.mxu0
  %v981 = vadd.f32 %v947, %v980
  %v982 = vand.u32 %v406, 4294901760
  %v983 = vsub.f32 %v406, %v982
  %984 = vmatmul.f32.gmra.mxu0 %v983
  %v985 = vpop.f32.mrf.mxu0
  %v986 = vadd.f32 %v951, %v985
  %v987 = vand.u32 %v409, 4294901760
  %v988 = vsub.f32 %v409, %v987
  %989 = vmatmul.f32.gmra.mxu0 %v988
  %v990 = vpop.f32.mrf.mxu0
  %v991 = vadd.f32 %v955, %v990
  %992 = vdwg.mxu0
  %993 = vmatpush.msra.mxu0 0.0
  %994 = vmatpush.msra.mxu0 0.0
  %995 = vmatpush.msra.mxu0 0.0
  %996 = vmatpush.msra.mxu0 0.0
  %997 = vmatpush.msra.mxu0 0.0
  %998 = vmatpush.msra.mxu0 0.0
  %999 = vmatpush.msra.mxu0 0.0
  %1000 = vmatpush.msra.mxu0 0.0
  %1001 = vmatpush.msra.mxu0 0.0
  %1002 = vmatpush.msra.mxu0 0.0
  %1003 = vmatpush.msra.mxu0 0.0
  %1004 = vmatpush.msra.mxu0 0.0
  %1005 = vmatpush.msra.mxu0 0.0
  %1006 = vmatpush.msra.mxu0 0.0
  %v1007 = vand.u32 %v873, 4294901760
  %1008 = vmatpush.msra.mxu0 %v1007
  %v1009 = vand.u32 %v866, 4294901760
  %1010 = vmatpush.msra.mxu0 %v1009
  %v1011 = vand.u32 %v403, 4294901760
  %v1012 = vsub.f32 %v403, %v1011
  %v1013 = vand.u32 %v1012, 4294901760
  %1014 = vmatmul.f32.gmra.mxu0 %v1013
  %v1015 = vpop.f32.mrf.mxu0
  %v1016 = vadd.f32 %v981, %v1015
  %v1017 = vand.u32 %v406, 4294901760
  %v1018 = vsub.f32 %v406, %v1017
  %v1019 = vand.u32 %v1018, 4294901760
  %1020 = vmatmul.f32.gmra.mxu0 %v1019
  %v1021 = vpop.f32.mrf.mxu0
  %v1022 = vadd.f32 %v986, %v1021
  %v1023 = vand.u32 %v409, 4294901760
  %v1024 = vsub.f32 %v409, %v1023
  %v1025 = vand.u32 %v1024, 4294901760
  %1026 = vmatmul.f32.gmra.mxu0 %v1025
  %v1027 = vpop.f32.mrf.mxu0
  %v1028 = vadd.f32 %v991, %v1027
  %1029 = vdwg.mxu0
  %1030 = vmatpush.msra.mxu0 0.0
  %1031 = vmatpush.msra.mxu0 0.0
  %1032 = vmatpush.msra.mxu0 0.0
  %1033 = vmatpush.msra.mxu0 0.0
  %1034 = vmatpush.msra.mxu0 0.0
  %1035 = vmatpush.msra.mxu0 0.0
  %1036 = vmatpush.msra.mxu0 0.0
  %1037 = vmatpush.msra.mxu0 0.0
  %1038 = vmatpush.msra.mxu0 0.0
  %1039 = vmatpush.msra.mxu0 0.0
  %1040 = vmatpush.msra.mxu0 0.0
  %1041 = vmatpush.msra.mxu0 0.0
  %1042 = vmatpush.msra.mxu0 0.0
  %1043 = vmatpush.msra.mxu0 0.0
  %v1044 = vand.u32 %v873, 4294901760
  %v1045 = vsub.f32 %v873, %v1044
  %v1046 = vand.u32 %v1045, 4294901760
  %1047 = vmatpush.msra.mxu0 %v1046
  %v1048 = vand.u32 %v866, 4294901760
  %v1049 = vsub.f32 %v866, %v1048
  %v1050 = vand.u32 %v1049, 4294901760
  %1051 = vmatpush.msra.mxu0 %v1050
  %v1052 = vand.u32 %v403, 4294901760
  %1053 = vmatmul.f32.gmra.mxu0 %v1052
  %v1054 = vpop.f32.mrf.mxu0
  %v1055 = vadd.f32 %v1016, %v1054
  %v1056 = vand.u32 %v406, 4294901760
  %1057 = vmatmul.f32.gmra.mxu0 %v1056
  %v1058 = vpop.f32.mrf.mxu0
  %v1059 = vadd.f32 %v1022, %v1058
  %v1060 = vand.u32 %v409, 4294901760
  %1061 = vmatmul.f32.gmra.mxu0 %v1060
  %v1062 = vpop.f32.mrf.mxu0
  %v1063 = vadd.f32 %v1028, %v1062
  %1064 = vdwg.mxu0
  %1065 = vmatpush.msra.mxu0 0.0
  %1066 = vmatpush.msra.mxu0 0.0
  %1067 = vmatpush.msra.mxu0 0.0
  %1068 = vmatpush.msra.mxu0 0.0
  %1069 = vmatpush.msra.mxu0 0.0
  %1070 = vmatpush.msra.mxu0 0.0
  %1071 = vmatpush.msra.mxu0 0.0
  %1072 = vmatpush.msra.mxu0 0.0
  %1073 = vmatpush.msra.mxu0 0.0
  %1074 = vmatpush.msra.mxu0 0.0
  %1075 = vmatpush.msra.mxu0 0.0
  %1076 = vmatpush.msra.mxu0 0.0
  %1077 = vmatpush.msra.mxu0 0.0
  %1078 = vmatpush.msra.mxu0 0.0
  %v1079 = vand.u32 %v873, 4294901760
  %1080 = vmatpush.msra.mxu0 %v1079
  %v1081 = vand.u32 %v866, 4294901760
  %1082 = vmatpush.msra.mxu0 %v1081
  %v1083 = vand.u32 %v403, 4294901760
  %1084 = vmatmul.f32.gmra.mxu0 %v1083
  %v1085 = vpop.f32.mrf.mxu0
  %v1086 = vadd.f32 %v1055, %v1085
  %v1087 = vand.u32 %v406, 4294901760
  %1088 = vmatmul.f32.gmra.mxu0 %v1087
  %v1089 = vpop.f32.mrf.mxu0
  %v1090 = vadd.f32 %v1059, %v1089
  %v1091 = vand.u32 %v409, 4294901760
  %1092 = vmatmul.f32.gmra.mxu0 %v1091
  %v1093 = vpop.f32.mrf.mxu0
  %v1094 = vadd.f32 %v1063, %v1093
  %1095 = vdwg.mxu0
  %v1097 = vsel %vm322, %v626, 0
  %v1100 = vsel %vm322, %v630, 0
  %v1103 = vsel %vm322, %v634, 0
  %v1106 = vsel %vm322, %v856, 0
  %v1109 = vsel %vm322, %v860, 0
  %v1112 = vsel %vm322, %v864, 0
  %1114 = vmatpush.xpose.msra.mxu0 0.0
  %1115 = vmatpush.xpose.msra.mxu0 0.0
  %1116 = vmatpush.xpose.msra.mxu0 0.0
  %1117 = vmatpush.xpose.msra.mxu0 0.0
  %1118 = vmatpush.xpose.msra.mxu0 0.0
  %1119 = vmatpush.xpose.msra.mxu0 0.0
  %1120 = vmatpush.xpose.msra.mxu0 0.0
  %1121 = vmatpush.xpose.msra.mxu0 0.0
  %1122 = vmatpush.xpose.msra.mxu0 0.0
  %1123 = vmatpush.xpose.msra.mxu0 0.0
  %1124 = vmatpush.xpose.msra.mxu0 0.0
  %1125 = vmatpush.xpose.msra.mxu0 0.0
  %1126 = vmatpush.xpose.msra.mxu0 0.0
  %v1127 = vand.u32 %v1112, 4294901760
  %1128 = vmatpush.xpose.msra.mxu0 %v1127
  %v1129 = vand.u32 %v1109, 4294901760
  %1130 = vmatpush.xpose.msra.mxu0 %v1129
  %v1131 = vand.u32 %v1106, 4294901760
  %1132 = vmatpush.xpose.msra.mxu0 %v1131
  %v1133 = vand.u32 %v1097, 4294901760
  %v1134 = vsub.f32 %v1097, %v1133
  %v1135 = vand.u32 %v1134, 4294901760
  %v1136 = vsub.f32 %v1134, %v1135
  %v1137 = vand.u32 %v1136, 4294901760
  %1138 = vmatmul.f32.gmra.mxu0 %v1137
  %v1139 = vpop.f32.mrf.mxu0
  %v1140 = vadd.f32 %v319, %v1139
  %v1141 = vand.u32 %v1100, 4294901760
  %v1142 = vsub.f32 %v1100, %v1141
  %v1143 = vand.u32 %v1142, 4294901760
  %v1144 = vsub.f32 %v1142, %v1143
  %v1145 = vand.u32 %v1144, 4294901760
  %1146 = vmatmul.f32.gmra.mxu0 %v1145
  %v1147 = vpop.f32.mrf.mxu0
  %v1148 = vadd.f32 %v320, %v1147
  %v1149 = vand.u32 %v1103, 4294901760
  %v1150 = vsub.f32 %v1103, %v1149
  %v1151 = vand.u32 %v1150, 4294901760
  %v1152 = vsub.f32 %v1150, %v1151
  %v1153 = vand.u32 %v1152, 4294901760
  %1154 = vmatmul.f32.gmra.mxu0 %v1153
  %v1155 = vpop.f32.mrf.mxu0
  %v1156 = vadd.f32 %v321, %v1155
  %1157 = vdwg.mxu0
  %1158 = vmatpush.xpose.msra.mxu0 0.0
  %1159 = vmatpush.xpose.msra.mxu0 0.0
  %1160 = vmatpush.xpose.msra.mxu0 0.0
  %1161 = vmatpush.xpose.msra.mxu0 0.0
  %1162 = vmatpush.xpose.msra.mxu0 0.0
  %1163 = vmatpush.xpose.msra.mxu0 0.0
  %1164 = vmatpush.xpose.msra.mxu0 0.0
  %1165 = vmatpush.xpose.msra.mxu0 0.0
  %1166 = vmatpush.xpose.msra.mxu0 0.0
  %1167 = vmatpush.xpose.msra.mxu0 0.0
  %1168 = vmatpush.xpose.msra.mxu0 0.0
  %1169 = vmatpush.xpose.msra.mxu0 0.0
  %1170 = vmatpush.xpose.msra.mxu0 0.0
  %v1171 = vand.u32 %v1112, 4294901760
  %v1172 = vsub.f32 %v1112, %v1171
  %v1173 = vand.u32 %v1172, 4294901760
  %v1174 = vsub.f32 %v1172, %v1173
  %v1175 = vand.u32 %v1174, 4294901760
  %1176 = vmatpush.xpose.msra.mxu0 %v1175
  %v1177 = vand.u32 %v1109, 4294901760
  %v1178 = vsub.f32 %v1109, %v1177
  %v1179 = vand.u32 %v1178, 4294901760
  %v1180 = vsub.f32 %v1178, %v1179
  %v1181 = vand.u32 %v1180, 4294901760
  %1182 = vmatpush.xpose.msra.mxu0 %v1181
  %v1183 = vand.u32 %v1106, 4294901760
  %v1184 = vsub.f32 %v1106, %v1183
  %v1185 = vand.u32 %v1184, 4294901760
  %v1186 = vsub.f32 %v1184, %v1185
  %v1187 = vand.u32 %v1186, 4294901760
  %1188 = vmatpush.xpose.msra.mxu0 %v1187
  %v1189 = vand.u32 %v1097, 4294901760
  %1190 = vmatmul.f32.gmra.mxu0 %v1189
  %v1191 = vpop.f32.mrf.mxu0
  %v1192 = vadd.f32 %v1140, %v1191
  %v1193 = vand.u32 %v1100, 4294901760
  %1194 = vmatmul.f32.gmra.mxu0 %v1193
  %v1195 = vpop.f32.mrf.mxu0
  %v1196 = vadd.f32 %v1148, %v1195
  %v1197 = vand.u32 %v1103, 4294901760
  %1198 = vmatmul.f32.gmra.mxu0 %v1197
  %v1199 = vpop.f32.mrf.mxu0
  %v1200 = vadd.f32 %v1156, %v1199
  %1201 = vdwg.mxu0
  %1202 = vmatpush.xpose.msra.mxu0 0.0
  %1203 = vmatpush.xpose.msra.mxu0 0.0
  %1204 = vmatpush.xpose.msra.mxu0 0.0
  %1205 = vmatpush.xpose.msra.mxu0 0.0
  %1206 = vmatpush.xpose.msra.mxu0 0.0
  %1207 = vmatpush.xpose.msra.mxu0 0.0
  %1208 = vmatpush.xpose.msra.mxu0 0.0
  %1209 = vmatpush.xpose.msra.mxu0 0.0
  %1210 = vmatpush.xpose.msra.mxu0 0.0
  %1211 = vmatpush.xpose.msra.mxu0 0.0
  %1212 = vmatpush.xpose.msra.mxu0 0.0
  %1213 = vmatpush.xpose.msra.mxu0 0.0
  %1214 = vmatpush.xpose.msra.mxu0 0.0
  %v1215 = vand.u32 %v1112, 4294901760
  %v1216 = vsub.f32 %v1112, %v1215
  %1217 = vmatpush.xpose.msra.mxu0 %v1216
  %v1218 = vand.u32 %v1109, 4294901760
  %v1219 = vsub.f32 %v1109, %v1218
  %1220 = vmatpush.xpose.msra.mxu0 %v1219
  %v1221 = vand.u32 %v1106, 4294901760
  %v1222 = vsub.f32 %v1106, %v1221
  %1223 = vmatpush.xpose.msra.mxu0 %v1222
  %v1224 = vand.u32 %v1097, 4294901760
  %v1225 = vsub.f32 %v1097, %v1224
  %1226 = vmatmul.f32.gmra.mxu0 %v1225
  %v1227 = vpop.f32.mrf.mxu0
  %v1228 = vadd.f32 %v1192, %v1227
  %v1229 = vand.u32 %v1100, 4294901760
  %v1230 = vsub.f32 %v1100, %v1229
  %1231 = vmatmul.f32.gmra.mxu0 %v1230
  %v1232 = vpop.f32.mrf.mxu0
  %v1233 = vadd.f32 %v1196, %v1232
  %v1234 = vand.u32 %v1103, 4294901760
  %v1235 = vsub.f32 %v1103, %v1234
  %1236 = vmatmul.f32.gmra.mxu0 %v1235
  %v1237 = vpop.f32.mrf.mxu0
  %v1238 = vadd.f32 %v1200, %v1237
  %1239 = vdwg.mxu0
  %1240 = vmatpush.xpose.msra.mxu0 0.0
  %1241 = vmatpush.xpose.msra.mxu0 0.0
  %1242 = vmatpush.xpose.msra.mxu0 0.0
  %1243 = vmatpush.xpose.msra.mxu0 0.0
  %1244 = vmatpush.xpose.msra.mxu0 0.0
  %1245 = vmatpush.xpose.msra.mxu0 0.0
  %1246 = vmatpush.xpose.msra.mxu0 0.0
  %1247 = vmatpush.xpose.msra.mxu0 0.0
  %1248 = vmatpush.xpose.msra.mxu0 0.0
  %1249 = vmatpush.xpose.msra.mxu0 0.0
  %1250 = vmatpush.xpose.msra.mxu0 0.0
  %1251 = vmatpush.xpose.msra.mxu0 0.0
  %1252 = vmatpush.xpose.msra.mxu0 0.0
  %v1253 = vand.u32 %v1112, 4294901760
  %1254 = vmatpush.xpose.msra.mxu0 %v1253
  %v1255 = vand.u32 %v1109, 4294901760
  %1256 = vmatpush.xpose.msra.mxu0 %v1255
  %v1257 = vand.u32 %v1106, 4294901760
  %1258 = vmatpush.xpose.msra.mxu0 %v1257
  %v1259 = vand.u32 %v1097, 4294901760
  %v1260 = vsub.f32 %v1097, %v1259
  %v1261 = vand.u32 %v1260, 4294901760
  %1262 = vmatmul.f32.gmra.mxu0 %v1261
  %v1263 = vpop.f32.mrf.mxu0
  %v1264 = vadd.f32 %v1228, %v1263
  %v1265 = vand.u32 %v1100, 4294901760
  %v1266 = vsub.f32 %v1100, %v1265
  %v1267 = vand.u32 %v1266, 4294901760
  %1268 = vmatmul.f32.gmra.mxu0 %v1267
  %v1269 = vpop.f32.mrf.mxu0
  %v1270 = vadd.f32 %v1233, %v1269
  %v1271 = vand.u32 %v1103, 4294901760
  %v1272 = vsub.f32 %v1103, %v1271
  %v1273 = vand.u32 %v1272, 4294901760
  %1274 = vmatmul.f32.gmra.mxu0 %v1273
  %v1275 = vpop.f32.mrf.mxu0
  %v1276 = vadd.f32 %v1238, %v1275
  %1277 = vdwg.mxu0
  %1278 = vmatpush.xpose.msra.mxu0 0.0
  %1279 = vmatpush.xpose.msra.mxu0 0.0
  %1280 = vmatpush.xpose.msra.mxu0 0.0
  %1281 = vmatpush.xpose.msra.mxu0 0.0
  %1282 = vmatpush.xpose.msra.mxu0 0.0
  %1283 = vmatpush.xpose.msra.mxu0 0.0
  %1284 = vmatpush.xpose.msra.mxu0 0.0
  %1285 = vmatpush.xpose.msra.mxu0 0.0
  %1286 = vmatpush.xpose.msra.mxu0 0.0
  %1287 = vmatpush.xpose.msra.mxu0 0.0
  %1288 = vmatpush.xpose.msra.mxu0 0.0
  %1289 = vmatpush.xpose.msra.mxu0 0.0
  %1290 = vmatpush.xpose.msra.mxu0 0.0
  %v1291 = vand.u32 %v1112, 4294901760
  %v1292 = vsub.f32 %v1112, %v1291
  %v1293 = vand.u32 %v1292, 4294901760
  %1294 = vmatpush.xpose.msra.mxu0 %v1293
  %v1295 = vand.u32 %v1109, 4294901760
  %v1296 = vsub.f32 %v1109, %v1295
  %v1297 = vand.u32 %v1296, 4294901760
  %1298 = vmatpush.xpose.msra.mxu0 %v1297
  %v1299 = vand.u32 %v1106, 4294901760
  %v1300 = vsub.f32 %v1106, %v1299
  %v1301 = vand.u32 %v1300, 4294901760
  %1302 = vmatpush.xpose.msra.mxu0 %v1301
  %v1303 = vand.u32 %v1097, 4294901760
  %1304 = vmatmul.f32.gmra.mxu0 %v1303
  %v1305 = vpop.f32.mrf.mxu0
  %v1306 = vadd.f32 %v1264, %v1305
  %v1307 = vand.u32 %v1100, 4294901760
  %1308 = vmatmul.f32.gmra.mxu0 %v1307
  %v1309 = vpop.f32.mrf.mxu0
  %v1310 = vadd.f32 %v1270, %v1309
  %v1311 = vand.u32 %v1103, 4294901760
  %1312 = vmatmul.f32.gmra.mxu0 %v1311
  %v1313 = vpop.f32.mrf.mxu0
  %v1314 = vadd.f32 %v1276, %v1313
  %1315 = vdwg.mxu0
  %1316 = vmatpush.xpose.msra.mxu0 0.0
  %1317 = vmatpush.xpose.msra.mxu0 0.0
  %1318 = vmatpush.xpose.msra.mxu0 0.0
  %1319 = vmatpush.xpose.msra.mxu0 0.0
  %1320 = vmatpush.xpose.msra.mxu0 0.0
  %1321 = vmatpush.xpose.msra.mxu0 0.0
  %1322 = vmatpush.xpose.msra.mxu0 0.0
  %1323 = vmatpush.xpose.msra.mxu0 0.0
  %1324 = vmatpush.xpose.msra.mxu0 0.0
  %1325 = vmatpush.xpose.msra.mxu0 0.0
  %1326 = vmatpush.xpose.msra.mxu0 0.0
  %1327 = vmatpush.xpose.msra.mxu0 0.0
  %1328 = vmatpush.xpose.msra.mxu0 0.0
  %v1329 = vand.u32 %v1112, 4294901760
  %1330 = vmatpush.xpose.msra.mxu0 %v1329
  %v1331 = vand.u32 %v1109, 4294901760
  %1332 = vmatpush.xpose.msra.mxu0 %v1331
  %v1333 = vand.u32 %v1106, 4294901760
  %1334 = vmatpush.xpose.msra.mxu0 %v1333
  %v1335 = vand.u32 %v1097, 4294901760
  %1336 = vmatmul.f32.gmra.mxu0 %v1335
  %v1337 = vpop.f32.mrf.mxu0
  %v1338 = vadd.f32 %v1306, %v1337
  %v1339 = vand.u32 %v1100, 4294901760
  %1340 = vmatmul.f32.gmra.mxu0 %v1339
  %v1341 = vpop.f32.mrf.mxu0
  %v1342 = vadd.f32 %v1310, %v1341
  %v1343 = vand.u32 %v1103, 4294901760
  %1344 = vmatmul.f32.gmra.mxu0 %v1343
  %v1345 = vpop.f32.mrf.mxu0
  %v1346 = vadd.f32 %v1314, %v1345
  %1347 = vdwg.mxu0
  %vm1348 = vcmask 195584
  %v1349 = vsel %vm1348, %v1338, -inf
  %1350 = vmax.xlane.f32.xlu0 %v1349
  %v1351 = vpop.xlane.xlu0 %1350
  %v1352 = vsel %vm1348, %v1342, -inf
  %1353 = vmax.xlane.f32.xlu0 %v1352
  %v1354 = vpop.xlane.xlu0 %1353
  %v1355 = vsel %vm1348, %v1346, -inf
  %1356 = vmax.xlane.f32.xlu0 %v1355
  %v1357 = vpop.xlane.xlu0 %1356
  %v1358 = vsub.f32 %v1338, %v1351
  %v1359 = vsub.f32 %v1342, %v1354
  %v1360 = vsub.f32 %v1346, %v1357
  %v1361 = vmul.f32 %v1358, 1.442695
  %v1362 = vpow.pop %v1361
  %v1363 = vmul.f32 %v1359, 1.442695
  %v1364 = vpow.pop %v1363
  %v1365 = vmul.f32 %v1360, 1.442695
  %v1366 = vpow.pop %v1365
  %v1367 = vsel %vm1348, %v1362, 0.0
  %1368 = vadd.xlane.f32.xlu0 %v1367
  %v1369 = vpop.xlane.xlu0 %1368
  %v1370 = vsel %vm1348, %v1364, 0.0
  %1371 = vadd.xlane.f32.xlu0 %v1370
  %v1372 = vpop.xlane.xlu0 %1371
  %v1373 = vsel %vm1348, %v1366, 0.0
  %1374 = vadd.xlane.f32.xlu0 %v1373
  %v1375 = vpop.xlane.xlu0 %1374
  %v1376 = vrcp.pop %v1369
  %v1377 = vmul.f32 %v1369, %v1376
  %v1378 = vsub.f32 1.0, %v1377
  %v1379 = vmul.f32 %v1376, %v1378
  %v1380 = vadd.f32 %v1376, %v1379
  %vm1381 = vweird.f32 %v1369
  %vm1382 = vweird.f32 %v1376
  %vm1383 = vmor %vm1381, %vm1382
  %v1384 = vsel %vm1383, %v1376, %v1380
  %v1385 = vand.u32 2147483647, %v1369
  %vm1386 = vcmp.eq.f32.partialorder %v1385, 8.507059e+37
  %v1387 = vand.u32 %v1369, 2147483648
  %v1388 = vor.u32 1.1754944e-38, %v1387
  %v1389 = vsel %vm1386, %v1388, %v1384
  %v1390 = vmul.f32 1.0, %v1389
  %v1391 = vrcp.pop %v1372
  %v1392 = vmul.f32 %v1372, %v1391
  %v1393 = vsub.f32 1.0, %v1392
  %v1394 = vmul.f32 %v1391, %v1393
  %v1395 = vadd.f32 %v1391, %v1394
  %vm1396 = vweird.f32 %v1372
  %vm1397 = vweird.f32 %v1391
  %vm1398 = vmor %vm1396, %vm1397
  %v1399 = vsel %vm1398, %v1391, %v1395
  %v1400 = vand.u32 2147483647, %v1372
  %vm1401 = vcmp.eq.f32.partialorder %v1400, 8.507059e+37
  %v1402 = vand.u32 %v1372, 2147483648
  %v1403 = vor.u32 1.1754944e-38, %v1402
  %v1404 = vsel %vm1401, %v1403, %v1399
  %v1405 = vmul.f32 1.0, %v1404
  %v1406 = vrcp.pop %v1375
  %v1407 = vmul.f32 %v1375, %v1406
  %v1408 = vsub.f32 1.0, %v1407
  %v1409 = vmul.f32 %v1406, %v1408
  %v1410 = vadd.f32 %v1406, %v1409
  %vm1411 = vweird.f32 %v1375
  %vm1412 = vweird.f32 %v1406
  %vm1413 = vmor %vm1411, %vm1412
  %v1414 = vsel %vm1413, %v1406, %v1410
  %v1415 = vand.u32 2147483647, %v1375
  %vm1416 = vcmp.eq.f32.partialorder %v1415, 8.507059e+37
  %v1417 = vand.u32 %v1375, 2147483648
  %v1418 = vor.u32 1.1754944e-38, %v1417
  %v1419 = vsel %vm1416, %v1418, %v1414
  %v1420 = vmul.f32 1.0, %v1419
  %v1421 = vmul.f32 %v1362, %v1390
  %v1422 = vmul.f32 %v1364, %v1405
  %v1423 = vmul.f32 %v1366, %v1420
  %v1424 = vld [vmem:[%s10] sm:$0x1]
  %v1426 = vperm.slane %v1424, 0
  %v1429 = vsel %vm1348, %v1421, 0
  %v1432 = vsel %vm1348, %v1422, 0
  %v1435 = vsel %vm1348, %v1423, 0
  %1437 = vmatpush.msra.mxu0 0.0
  %1438 = vmatpush.msra.mxu0 0.0
  %1439 = vmatpush.msra.mxu0 0.0
  %1440 = vmatpush.msra.mxu0 0.0
  %1441 = vmatpush.msra.mxu0 0.0
  %1442 = vmatpush.msra.mxu0 0.0
  %1443 = vmatpush.msra.mxu0 0.0
  %1444 = vmatpush.msra.mxu0 0.0
  %1445 = vmatpush.msra.mxu0 0.0
  %1446 = vmatpush.msra.mxu0 0.0
  %1447 = vmatpush.msra.mxu0 0.0
  %1448 = vmatpush.msra.mxu0 0.0
  %1449 = vmatpush.msra.mxu0 0.0
  %v1450 = vand.u32 %v1094, 4294901760
  %1451 = vmatpush.msra.mxu0 %v1450
  %v1452 = vand.u32 %v1090, 4294901760
  %1453 = vmatpush.msra.mxu0 %v1452
  %v1454 = vand.u32 %v1086, 4294901760
  %1455 = vmatpush.msra.mxu0 %v1454
  %v1456 = vand.u32 %v1429, 4294901760
  %v1457 = vsub.f32 %v1429, %v1456
  %v1458 = vand.u32 %v1457, 4294901760
  %v1459 = vsub.f32 %v1457, %v1458
  %v1460 = vand.u32 %v1459, 4294901760
  %1461 = vmatmul.f32.gmra.mxu0 %v1460
  %v1462 = vpop.f32.mrf.mxu0
  %v1463 = vadd.f32 %v1426, %v1462
  %v1464 = vand.u32 %v1432, 4294901760
  %v1465 = vsub.f32 %v1432, %v1464
  %v1466 = vand.u32 %v1465, 4294901760
  %v1467 = vsub.f32 %v1465, %v1466
  %v1468 = vand.u32 %v1467, 4294901760
  %1469 = vmatmul.f32.gmra.mxu0 %v1468
  %v1470 = vpop.f32.mrf.mxu0
  %v1471 = vadd.f32 %v1426, %v1470
  %v1472 = vand.u32 %v1435, 4294901760
  %v1473 = vsub.f32 %v1435, %v1472
  %v1474 = vand.u32 %v1473, 4294901760
  %v1475 = vsub.f32 %v1473, %v1474
  %v1476 = vand.u32 %v1475, 4294901760
  %1477 = vmatmul.f32.gmra.mxu0 %v1476
  %v1478 = vpop.f32.mrf.mxu0
  %v1479 = vadd.f32 %v1426, %v1478
  %1480 = vdwg.mxu0
  %1481 = vmatpush.msra.mxu0 0.0
  %1482 = vmatpush.msra.mxu0 0.0
  %1483 = vmatpush.msra.mxu0 0.0
  %1484 = vmatpush.msra.mxu0 0.0
  %1485 = vmatpush.msra.mxu0 0.0
  %1486 = vmatpush.msra.mxu0 0.0
  %1487 = vmatpush.msra.mxu0 0.0
  %1488 = vmatpush.msra.mxu0 0.0
  %1489 = vmatpush.msra.mxu0 0.0
  %1490 = vmatpush.msra.mxu0 0.0
  %1491 = vmatpush.msra.mxu0 0.0
  %1492 = vmatpush.msra.mxu0 0.0
  %1493 = vmatpush.msra.mxu0 0.0
  %v1494 = vand.u32 %v1094, 4294901760
  %v1495 = vsub.f32 %v1094, %v1494
  %v1496 = vand.u32 %v1495, 4294901760
  %v1497 = vsub.f32 %v1495, %v1496
  %v1498 = vand.u32 %v1497, 4294901760
  %1499 = vmatpush.msra.mxu0 %v1498
  %v1500 = vand.u32 %v1090, 4294901760
  %v1501 = vsub.f32 %v1090, %v1500
  %v1502 = vand.u32 %v1501, 4294901760
  %v1503 = vsub.f32 %v1501, %v1502
  %v1504 = vand.u32 %v1503, 4294901760
  %1505 = vmatpush.msra.mxu0 %v1504
  %v1506 = vand.u32 %v1086, 4294901760
  %v1507 = vsub.f32 %v1086, %v1506
  %v1508 = vand.u32 %v1507, 4294901760
  %v1509 = vsub.f32 %v1507, %v1508
  %v1510 = vand.u32 %v1509, 4294901760
  %1511 = vmatpush.msra.mxu0 %v1510
  %v1512 = vand.u32 %v1429, 4294901760
  %1513 = vmatmul.f32.gmra.mxu0 %v1512
  %v1514 = vpop.f32.mrf.mxu0
  %v1515 = vadd.f32 %v1463, %v1514
  %v1516 = vand.u32 %v1432, 4294901760
  %1517 = vmatmul.f32.gmra.mxu0 %v1516
  %v1518 = vpop.f32.mrf.mxu0
  %v1519 = vadd.f32 %v1471, %v1518
  %v1520 = vand.u32 %v1435, 4294901760
  %1521 = vmatmul.f32.gmra.mxu0 %v1520
  %v1522 = vpop.f32.mrf.mxu0
  %v1523 = vadd.f32 %v1479, %v1522
  %1524 = vdwg.mxu0
  %1525 = vmatpush.msra.mxu0 0.0
  %1526 = vmatpush.msra.mxu0 0.0
  %1527 = vmatpush.msra.mxu0 0.0
  %1528 = vmatpush.msra.mxu0 0.0
  %1529 = vmatpush.msra.mxu0 0.0
  %1530 = vmatpush.msra.mxu0 0.0
  %1531 = vmatpush.msra.mxu0 0.0
  %1532 = vmatpush.msra.mxu0 0.0
  %1533 = vmatpush.msra.mxu0 0.0
  %1534 = vmatpush.msra.mxu0 0.0
  %1535 = vmatpush.msra.mxu0 0.0
  %1536 = vmatpush.msra.mxu0 0.0
  %1537 = vmatpush.msra.mxu0 0.0
  %v1538 = vand.u32 %v1094, 4294901760
  %v1539 = vsub.f32 %v1094, %v1538
  %1540 = vmatpush.msra.mxu0 %v1539
  %v1541 = vand.u32 %v1090, 4294901760
  %v1542 = vsub.f32 %v1090, %v1541
  %1543 = vmatpush.msra.mxu0 %v1542
  %v1544 = vand.u32 %v1086, 4294901760
  %v1545 = vsub.f32 %v1086, %v1544
  %1546 = vmatpush.msra.mxu0 %v1545
  %v1547 = vand.u32 %v1429, 4294901760
  %v1548 = vsub.f32 %v1429, %v1547
  %1549 = vmatmul.f32.gmra.mxu0 %v1548
  %v1550 = vpop.f32.mrf.mxu0
  %v1551 = vadd.f32 %v1515, %v1550
  %v1552 = vand.u32 %v1432, 4294901760
  %v1553 = vsub.f32 %v1432, %v1552
  %1554 = vmatmul.f32.gmra.mxu0 %v1553
  %v1555 = vpop.f32.mrf.mxu0
  %v1556 = vadd.f32 %v1519, %v1555
  %v1557 = vand.u32 %v1435, 4294901760
  %v1558 = vsub.f32 %v1435, %v1557
  %1559 = vmatmul.f32.gmra.mxu0 %v1558
  %v1560 = vpop.f32.mrf.mxu0
  %v1561 = vadd.f32 %v1523, %v1560
  %1562 = vdwg.mxu0
  %1563 = vmatpush.msra.mxu0 0.0
  %1564 = vmatpush.msra.mxu0 0.0
  %1565 = vmatpush.msra.mxu0 0.0
  %1566 = vmatpush.msra.mxu0 0.0
  %1567 = vmatpush.msra.mxu0 0.0
  %1568 = vmatpush.msra.mxu0 0.0
  %1569 = vmatpush.msra.mxu0 0.0
  %1570 = vmatpush.msra.mxu0 0.0
  %1571 = vmatpush.msra.mxu0 0.0
  %1572 = vmatpush.msra.mxu0 0.0
  %1573 = vmatpush.msra.mxu0 0.0
  %1574 = vmatpush.msra.mxu0 0.0
  %1575 = vmatpush.msra.mxu0 0.0
  %v1576 = vand.u32 %v1094, 4294901760
  %1577 = vmatpush.msra.mxu0 %v1576
  %v1578 = vand.u32 %v1090, 4294901760
  %1579 = vmatpush.msra.mxu0 %v1578
  %v1580 = vand.u32 %v1086, 4294901760
  %1581 = vmatpush.msra.mxu0 %v1580
  %v1582 = vand.u32 %v1429, 4294901760
  %v1583 = vsub.f32 %v1429, %v1582
  %v1584 = vand.u32 %v1583, 4294901760
  %1585 = vmatmul.f32.gmra.mxu0 %v1584
  %v1586 = vpop.f32.mrf.mxu0
  %v1587 = vadd.f32 %v1551, %v1586
  %v1588 = vand.u32 %v1432, 4294901760
  %v1589 = vsub.f32 %v1432, %v1588
  %v1590 = vand.u32 %v1589, 4294901760
  %1591 = vmatmul.f32.gmra.mxu0 %v1590
  %v1592 = vpop.f32.mrf.mxu0
  %v1593 = vadd.f32 %v1556, %v1592
  %v1594 = vand.u32 %v1435, 4294901760
  %v1595 = vsub.f32 %v1435, %v1594
  %v1596 = vand.u32 %v1595, 4294901760
  %1597 = vmatmul.f32.gmra.mxu0 %v1596
  %v1598 = vpop.f32.mrf.mxu0
  %v1599 = vadd.f32 %v1561, %v1598
  %1600 = vdwg.mxu0
  %1601 = vmatpush.msra.mxu0 0.0
  %1602 = vmatpush.msra.mxu0 0.0
  %1603 = vmatpush.msra.mxu0 0.0
  %1604 = vmatpush.msra.mxu0 0.0
  %1605 = vmatpush.msra.mxu0 0.0
  %1606 = vmatpush.msra.mxu0 0.0
  %1607 = vmatpush.msra.mxu0 0.0
  %1608 = vmatpush.msra.mxu0 0.0
  %1609 = vmatpush.msra.mxu0 0.0
  %1610 = vmatpush.msra.mxu0 0.0
  %1611 = vmatpush.msra.mxu0 0.0
  %1612 = vmatpush.msra.mxu0 0.0
  %1613 = vmatpush.msra.mxu0 0.0
  %v1614 = vand.u32 %v1094, 4294901760
  %v1615 = vsub.f32 %v1094, %v1614
  %v1616 = vand.u32 %v1615, 4294901760
  %1617 = vmatpush.msra.mxu0 %v1616
  %v1618 = vand.u32 %v1090, 4294901760
  %v1619 = vsub.f32 %v1090, %v1618
  %v1620 = vand.u32 %v1619, 4294901760
  %1621 = vmatpush.msra.mxu0 %v1620
  %v1622 = vand.u32 %v1086, 4294901760
  %v1623 = vsub.f32 %v1086, %v1622
  %v1624 = vand.u32 %v1623, 4294901760
  %1625 = vmatpush.msra.mxu0 %v1624
  %v1626 = vand.u32 %v1429, 4294901760
  %1627 = vmatmul.f32.gmra.mxu0 %v1626
  %v1628 = vpop.f32.mrf.mxu0
  %v1629 = vadd.f32 %v1587, %v1628
  %v1630 = vand.u32 %v1432, 4294901760
  %1631 = vmatmul.f32.gmra.mxu0 %v1630
  %v1632 = vpop.f32.mrf.mxu0
  %v1633 = vadd.f32 %v1593, %v1632
  %v1634 = vand.u32 %v1435, 4294901760
  %1635 = vmatmul.f32.gmra.mxu0 %v1634
  %v1636 = vpop.f32.mrf.mxu0
  %v1637 = vadd.f32 %v1599, %v1636
  %1638 = vdwg.mxu0
  %1639 = vmatpush.msra.mxu0 0.0
  %1640 = vmatpush.msra.mxu0 0.0
  %1641 = vmatpush.msra.mxu0 0.0
  %1642 = vmatpush.msra.mxu0 0.0
  %1643 = vmatpush.msra.mxu0 0.0
  %1644 = vmatpush.msra.mxu0 0.0
  %1645 = vmatpush.msra.mxu0 0.0
  %1646 = vmatpush.msra.mxu0 0.0
  %1647 = vmatpush.msra.mxu0 0.0
  %1648 = vmatpush.msra.mxu0 0.0
  %1649 = vmatpush.msra.mxu0 0.0
  %1650 = vmatpush.msra.mxu0 0.0
  %1651 = vmatpush.msra.mxu0 0.0
  %v1652 = vand.u32 %v1094, 4294901760
  %1653 = vmatpush.msra.mxu0 %v1652
  %v1654 = vand.u32 %v1090, 4294901760
  %1655 = vmatpush.msra.mxu0 %v1654
  %v1656 = vand.u32 %v1086, 4294901760
  %1657 = vmatpush.msra.mxu0 %v1656
  %v1658 = vand.u32 %v1429, 4294901760
  %1659 = vmatmul.f32.gmra.mxu0 %v1658
  %v1660 = vpop.f32.mrf.mxu0
  %v1661 = vadd.f32 %v1629, %v1660
  %v1662 = vand.u32 %v1432, 4294901760
  %1663 = vmatmul.f32.gmra.mxu0 %v1662
  %v1664 = vpop.f32.mrf.mxu0
  %v1665 = vadd.f32 %v1633, %v1664
  %v1666 = vand.u32 %v1435, 4294901760
  %1667 = vmatmul.f32.gmra.mxu0 %v1666
  %v1668 = vpop.f32.mrf.mxu0
  %v1669 = vadd.f32 %v1637, %v1668
  %1670 = vdwg.mxu0
  %v1671 = vadd.f32 %v309, %v1661
  %v1672 = vadd.f32 %v313, %v1665
  %v1673 = vadd.f32 %v317, %v1669
  %v1674 = vsel %vm322, %v1671, 0.0
  %1675 = vadd.xlane.f32.xlu0 %v1674
  %v1676 = vpop.xlane.xlu0 %1675
  %v1677 = vsel %vm322, %v1672, 0.0
  %1678 = vadd.xlane.f32.xlu0 %v1677
  %v1679 = vpop.xlane.xlu0 %1678
  %v1680 = vsel %vm322, %v1673, 0.0
  %1681 = vadd.xlane.f32.xlu0 %v1680
  %v1682 = vpop.xlane.xlu0 %1681
  %v1683 = vmul.f32 %v1676, %v338
  %v1684 = vmul.f32 %v1679, %v338
  %v1685 = vmul.f32 %v1682, %v338
  %v1686 = vsub.f32 %v1671, %v1683
  %v1687 = vsub.f32 %v1672, %v1684
  %v1688 = vsub.f32 %v1673, %v1685
  %v1689 = vmul.f32 %v1686, %v1686
  %v1690 = vmul.f32 %v1687, %v1687
  %v1691 = vmul.f32 %v1688, %v1688
  %v1692 = vsel %vm322, %v1689, 0.0
  %1693 = vadd.xlane.f32.xlu0 %v1692
  %v1694 = vpop.xlane.xlu0 %1693
  %v1695 = vsel %vm322, %v1690, 0.0
  %1696 = vadd.xlane.f32.xlu0 %v1695
  %v1697 = vpop.xlane.xlu0 %1696
  %v1698 = vsel %vm322, %v1691, 0.0
  %1699 = vadd.xlane.f32.xlu0 %v1698
  %v1700 = vpop.xlane.xlu0 %1699
  %v1701 = vmul.f32 %v1694, %v338
  %v1702 = vmul.f32 %v1697, %v338
  %v1703 = vmul.f32 %v1700, %v338
  %v1704 = vadd.f32 %v1701, 1e-05
  %v1705 = vadd.f32 %v1702, 1e-05
  %v1706 = vadd.f32 %v1703, 1e-05
  %v1707 = vrsqrt.pop %v1704
  %v1708 = vmul.f32 %v1707, %v1704
  %v1709 = vmul.f32 %v1708, %v1707
  %v1710 = vmul.f32 0.5, %v1709
  %v1711 = vsub.f32 1.5, %v1710
  %v1712 = vmul.f32 %v1707, %v1711
  %vm1713 = vweird.f32 %v1704
  %vm1714 = vweird.f32 %v1707
  %vm1715 = vmor %vm1713, %vm1714
  %v1716 = vsel %vm1715, %v1707, %v1712
  %v1717 = vrsqrt.pop %v1705
  %v1718 = vmul.f32 %v1717, %v1705
  %v1719 = vmul.f32 %v1718, %v1717
  %v1720 = vmul.f32 0.5, %v1719
  %v1721 = vsub.f32 1.5, %v1720
  %v1722 = vmul.f32 %v1717, %v1721
  %vm1723 = vweird.f32 %v1705
  %vm1724 = vweird.f32 %v1717
  %vm1725 = vmor %vm1723, %vm1724
  %v1726 = vsel %vm1725, %v1717, %v1722
  %v1727 = vrsqrt.pop %v1706
  %v1728 = vmul.f32 %v1727, %v1706
  %v1729 = vmul.f32 %v1728, %v1727
  %v1730 = vmul.f32 0.5, %v1729
  %v1731 = vsub.f32 1.5, %v1730
  %v1732 = vmul.f32 %v1727, %v1731
  %vm1733 = vweird.f32 %v1706
  %vm1734 = vweird.f32 %v1727
  %vm1735 = vmor %vm1733, %vm1734
  %v1736 = vsel %vm1735, %v1727, %v1732
  %v1737 = vmul.f32 %v1686, %v1716
  %v1738 = vmul.f32 %v1687, %v1726
  %v1739 = vmul.f32 %v1688, %v1736
  %v1740 = vld [vmem:[%s11] sm:$0xff]
  %v1741 = vld [vmem:[%s11 + $0x8] sm:$0xf]
  %v1742 = vld [vmem:[%s12] sm:$0x1]
  %v1744 = vperm.slane %v1742, 0
  %v1747 = vsel %vm322, %v1737, 0
  %v1750 = vsel %vm322, %v1738, 0
  %v1753 = vsel %vm322, %v1739, 0
  %v1756 = vsel %vm411, %v1741, 0
  %1758 = vmatpush.msra.mxu0 0.0
  %1759 = vmatpush.msra.mxu0 0.0
  %1760 = vmatpush.msra.mxu0 0.0
  %1761 = vmatpush.msra.mxu0 0.0
  %1762 = vmatpush.msra.mxu0 0.0
  %1763 = vmatpush.msra.mxu0 0.0
  %1764 = vmatpush.msra.mxu0 0.0
  %1765 = vmatpush.msra.mxu0 0.0
  %1766 = vmatpush.msra.mxu0 0.0
  %1767 = vmatpush.msra.mxu0 0.0
  %1768 = vmatpush.msra.mxu0 0.0
  %1769 = vmatpush.msra.mxu0 0.0
  %1770 = vmatpush.msra.mxu0 0.0
  %1771 = vmatpush.msra.mxu0 0.0
  %v1772 = vand.u32 %v1756, 4294901760
  %1773 = vmatpush.msra.mxu0 %v1772
  %v1774 = vand.u32 %v1740, 4294901760
  %1775 = vmatpush.msra.mxu0 %v1774
  %v1776 = vand.u32 %v1747, 4294901760
  %v1777 = vsub.f32 %v1747, %v1776
  %v1778 = vand.u32 %v1777, 4294901760
  %v1779 = vsub.f32 %v1777, %v1778
  %v1780 = vand.u32 %v1779, 4294901760
  %1781 = vmatmul.f32.gmra.mxu0 %v1780
  %v1782 = vpop.f32.mrf.mxu0
  %v1783 = vadd.f32 %v1744, %v1782
  %v1784 = vand.u32 %v1750, 4294901760
  %v1785 = vsub.f32 %v1750, %v1784
  %v1786 = vand.u32 %v1785, 4294901760
  %v1787 = vsub.f32 %v1785, %v1786
  %v1788 = vand.u32 %v1787, 4294901760
  %1789 = vmatmul.f32.gmra.mxu0 %v1788
  %v1790 = vpop.f32.mrf.mxu0
  %v1791 = vadd.f32 %v1744, %v1790
  %v1792 = vand.u32 %v1753, 4294901760
  %v1793 = vsub.f32 %v1753, %v1792
  %v1794 = vand.u32 %v1793, 4294901760
  %v1795 = vsub.f32 %v1793, %v1794
  %v1796 = vand.u32 %v1795, 4294901760
  %1797 = vmatmul.f32.gmra.mxu0 %v1796
  %v1798 = vpop.f32.mrf.mxu0
  %v1799 = vadd.f32 %v1744, %v1798
  %1800 = vdwg.mxu0
  %1801 = vmatpush.msra.mxu0 0.0
  %1802 = vmatpush.msra.mxu0 0.0
  %1803 = vmatpush.msra.mxu0 0.0
  %1804 = vmatpush.msra.mxu0 0.0
  %1805 = vmatpush.msra.mxu0 0.0
  %1806 = vmatpush.msra.mxu0 0.0
  %1807 = vmatpush.msra.mxu0 0.0
  %1808 = vmatpush.msra.mxu0 0.0
  %1809 = vmatpush.msra.mxu0 0.0
  %1810 = vmatpush.msra.mxu0 0.0
  %1811 = vmatpush.msra.mxu0 0.0
  %1812 = vmatpush.msra.mxu0 0.0
  %1813 = vmatpush.msra.mxu0 0.0
  %1814 = vmatpush.msra.mxu0 0.0
  %v1815 = vand.u32 %v1756, 4294901760
  %v1816 = vsub.f32 %v1756, %v1815
  %v1817 = vand.u32 %v1816, 4294901760
  %v1818 = vsub.f32 %v1816, %v1817
  %v1819 = vand.u32 %v1818, 4294901760
  %1820 = vmatpush.msra.mxu0 %v1819
  %v1821 = vand.u32 %v1740, 4294901760
  %v1822 = vsub.f32 %v1740, %v1821
  %v1823 = vand.u32 %v1822, 4294901760
  %v1824 = vsub.f32 %v1822, %v1823
  %v1825 = vand.u32 %v1824, 4294901760
  %1826 = vmatpush.msra.mxu0 %v1825
  %v1827 = vand.u32 %v1747, 4294901760
  %1828 = vmatmul.f32.gmra.mxu0 %v1827
  %v1829 = vpop.f32.mrf.mxu0
  %v1830 = vadd.f32 %v1783, %v1829
  %v1831 = vand.u32 %v1750, 4294901760
  %1832 = vmatmul.f32.gmra.mxu0 %v1831
  %v1833 = vpop.f32.mrf.mxu0
  %v1834 = vadd.f32 %v1791, %v1833
  %v1835 = vand.u32 %v1753, 4294901760
  %1836 = vmatmul.f32.gmra.mxu0 %v1835
  %v1837 = vpop.f32.mrf.mxu0
  %v1838 = vadd.f32 %v1799, %v1837
  %1839 = vdwg.mxu0
  %1840 = vmatpush.msra.mxu0 0.0
  %1841 = vmatpush.msra.mxu0 0.0
  %1842 = vmatpush.msra.mxu0 0.0
  %1843 = vmatpush.msra.mxu0 0.0
  %1844 = vmatpush.msra.mxu0 0.0
  %1845 = vmatpush.msra.mxu0 0.0
  %1846 = vmatpush.msra.mxu0 0.0
  %1847 = vmatpush.msra.mxu0 0.0
  %1848 = vmatpush.msra.mxu0 0.0
  %1849 = vmatpush.msra.mxu0 0.0
  %1850 = vmatpush.msra.mxu0 0.0
  %1851 = vmatpush.msra.mxu0 0.0
  %1852 = vmatpush.msra.mxu0 0.0
  %1853 = vmatpush.msra.mxu0 0.0
  %v1854 = vand.u32 %v1756, 4294901760
  %v1855 = vsub.f32 %v1756, %v1854
  %1856 = vmatpush.msra.mxu0 %v1855
  %v1857 = vand.u32 %v1740, 4294901760
  %v1858 = vsub.f32 %v1740, %v1857
  %1859 = vmatpush.msra.mxu0 %v1858
  %v1860 = vand.u32 %v1747, 4294901760
  %v1861 = vsub.f32 %v1747, %v1860
  %1862 = vmatmul.f32.gmra.mxu0 %v1861
  %v1863 = vpop.f32.mrf.mxu0
  %v1864 = vadd.f32 %v1830, %v1863
  %v1865 = vand.u32 %v1750, 4294901760
  %v1866 = vsub.f32 %v1750, %v1865
  %1867 = vmatmul.f32.gmra.mxu0 %v1866
  %v1868 = vpop.f32.mrf.mxu0
  %v1869 = vadd.f32 %v1834, %v1868
  %v1870 = vand.u32 %v1753, 4294901760
  %v1871 = vsub.f32 %v1753, %v1870
  %1872 = vmatmul.f32.gmra.mxu0 %v1871
  %v1873 = vpop.f32.mrf.mxu0
  %v1874 = vadd.f32 %v1838, %v1873
  %1875 = vdwg.mxu0
  %1876 = vmatpush.msra.mxu0 0.0
  %1877 = vmatpush.msra.mxu0 0.0
  %1878 = vmatpush.msra.mxu0 0.0
  %1879 = vmatpush.msra.mxu0 0.0
  %1880 = vmatpush.msra.mxu0 0.0
  %1881 = vmatpush.msra.mxu0 0.0
  %1882 = vmatpush.msra.mxu0 0.0
  %1883 = vmatpush.msra.mxu0 0.0
  %1884 = vmatpush.msra.mxu0 0.0
  %1885 = vmatpush.msra.mxu0 0.0
  %1886 = vmatpush.msra.mxu0 0.0
  %1887 = vmatpush.msra.mxu0 0.0
  %1888 = vmatpush.msra.mxu0 0.0
  %1889 = vmatpush.msra.mxu0 0.0
  %v1890 = vand.u32 %v1756, 4294901760
  %1891 = vmatpush.msra.mxu0 %v1890
  %v1892 = vand.u32 %v1740, 4294901760
  %1893 = vmatpush.msra.mxu0 %v1892
  %v1894 = vand.u32 %v1747, 4294901760
  %v1895 = vsub.f32 %v1747, %v1894
  %v1896 = vand.u32 %v1895, 4294901760
  %1897 = vmatmul.f32.gmra.mxu0 %v1896
  %v1898 = vpop.f32.mrf.mxu0
  %v1899 = vadd.f32 %v1864, %v1898
  %v1900 = vand.u32 %v1750, 4294901760
  %v1901 = vsub.f32 %v1750, %v1900
  %v1902 = vand.u32 %v1901, 4294901760
  %1903 = vmatmul.f32.gmra.mxu0 %v1902
  %v1904 = vpop.f32.mrf.mxu0
  %v1905 = vadd.f32 %v1869, %v1904
  %v1906 = vand.u32 %v1753, 4294901760
  %v1907 = vsub.f32 %v1753, %v1906
  %v1908 = vand.u32 %v1907, 4294901760
  %1909 = vmatmul.f32.gmra.mxu0 %v1908
  %v1910 = vpop.f32.mrf.mxu0
  %v1911 = vadd.f32 %v1874, %v1910
  %1912 = vdwg.mxu0
  %1913 = vmatpush.msra.mxu0 0.0
  %1914 = vmatpush.msra.mxu0 0.0
  %1915 = vmatpush.msra.mxu0 0.0
  %1916 = vmatpush.msra.mxu0 0.0
  %1917 = vmatpush.msra.mxu0 0.0
  %1918 = vmatpush.msra.mxu0 0.0
  %1919 = vmatpush.msra.mxu0 0.0
  %1920 = vmatpush.msra.mxu0 0.0
  %1921 = vmatpush.msra.mxu0 0.0
  %1922 = vmatpush.msra.mxu0 0.0
  %1923 = vmatpush.msra.mxu0 0.0
  %1924 = vmatpush.msra.mxu0 0.0
  %1925 = vmatpush.msra.mxu0 0.0
  %1926 = vmatpush.msra.mxu0 0.0
  %v1927 = vand.u32 %v1756, 4294901760
  %v1928 = vsub.f32 %v1756, %v1927
  %v1929 = vand.u32 %v1928, 4294901760
  %1930 = vmatpush.msra.mxu0 %v1929
  %v1931 = vand.u32 %v1740, 4294901760
  %v1932 = vsub.f32 %v1740, %v1931
  %v1933 = vand.u32 %v1932, 4294901760
  %1934 = vmatpush.msra.mxu0 %v1933
  %v1935 = vand.u32 %v1747, 4294901760
  %1936 = vmatmul.f32.gmra.mxu0 %v1935
  %v1937 = vpop.f32.mrf.mxu0
  %v1938 = vadd.f32 %v1899, %v1937
  %v1939 = vand.u32 %v1750, 4294901760
  %1940 = vmatmul.f32.gmra.mxu0 %v1939
  %v1941 = vpop.f32.mrf.mxu0
  %v1942 = vadd.f32 %v1905, %v1941
  %v1943 = vand.u32 %v1753, 4294901760
  %1944 = vmatmul.f32.gmra.mxu0 %v1943
  %v1945 = vpop.f32.mrf.mxu0
  %v1946 = vadd.f32 %v1911, %v1945
  %1947 = vdwg.mxu0
  %1948 = vmatpush.msra.mxu0 0.0
  %1949 = vmatpush.msra.mxu0 0.0
  %1950 = vmatpush.msra.mxu0 0.0
  %1951 = vmatpush.msra.mxu0 0.0
  %1952 = vmatpush.msra.mxu0 0.0
  %1953 = vmatpush.msra.mxu0 0.0
  %1954 = vmatpush.msra.mxu0 0.0
  %1955 = vmatpush.msra.mxu0 0.0
  %1956 = vmatpush.msra.mxu0 0.0
  %1957 = vmatpush.msra.mxu0 0.0
  %1958 = vmatpush.msra.mxu0 0.0
  %1959 = vmatpush.msra.mxu0 0.0
  %1960 = vmatpush.msra.mxu0 0.0
  %1961 = vmatpush.msra.mxu0 0.0
  %v1962 = vand.u32 %v1756, 4294901760
  %1963 = vmatpush.msra.mxu0 %v1962
  %v1964 = vand.u32 %v1740, 4294901760
  %1965 = vmatpush.msra.mxu0 %v1964
  %v1966 = vand.u32 %v1747, 4294901760
  %1967 = vmatmul.f32.gmra.mxu0 %v1966
  %v1968 = vpop.f32.mrf.mxu0
  %v1969 = vadd.f32 %v1938, %v1968
  %v1970 = vand.u32 %v1750, 4294901760
  %1971 = vmatmul.f32.gmra.mxu0 %v1970
  %v1972 = vpop.f32.mrf.mxu0
  %v1973 = vadd.f32 %v1942, %v1972
  %v1974 = vand.u32 %v1753, 4294901760
  %1975 = vmatmul.f32.gmra.mxu0 %v1974
  %v1976 = vpop.f32.mrf.mxu0
  %v1977 = vadd.f32 %v1946, %v1976
  %1978 = vdwg.mxu0
  %v1979 = vmax.f32 %v1969, 0.0
  %v1980 = vmax.f32 %v1973, 0.0
  %v1981 = vmax.f32 %v1977, 0.0
  %v1982 = vld [vmem:[%s13] sm:$0xff]
  %v1983 = vld [vmem:[%s13 + $0x8] sm:$0xff]
  %v1984 = vld [vmem:[%s13 + $0x10] sm:$0xff]
  %v1985 = vld [vmem:[%s13 + $0x18] sm:$0xff]
  %v1986 = vld [vmem:[%s13 + $0x20] sm:$0xff]
  %v1987 = vld [vmem:[%s13 + $0x28] sm:$0xff]
  %v1988 = vld [vmem:[%s13 + $0x30] sm:$0xff]
  %v1989 = vld [vmem:[%s13 + $0x38] sm:$0xff]
  %v1990 = vld [vmem:[%s13 + $0x40] sm:$0xff]
  %v1991 = vld [vmem:[%s13 + $0x48] sm:$0xff]
  %v1992 = vld [vmem:[%s13 + $0x50] sm:$0xff]
  %v1993 = vld [vmem:[%s13 + $0x58] sm:$0xff]
  %v1994 = vld [vmem:[%s13 + $0x60] sm:$0xff]
  %v1995 = vld [vmem:[%s13 + $0x68] sm:$0xff]
  %v1996 = vld [vmem:[%s13 + $0x70] sm:$0xff]
  %v1997 = vld [vmem:[%s13 + $0x78] sm:$0xff]
  %v1998 = vld [vmem:[%s14] sm:$0x1]
  %v2000 = vperm.slane %v1998, 0
  %v2002 = vand.u32 %v1997, 4294901760
  %2003 = vmatpush.msra.mxu0 %v2002
  %v2004 = vand.u32 %v1996, 4294901760
  %2005 = vmatpush.msra.mxu0 %v2004
  %v2006 = vand.u32 %v1995, 4294901760
  %2007 = vmatpush.msra.mxu0 %v2006
  %v2008 = vand.u32 %v1994, 4294901760
  %2009 = vmatpush.msra.mxu0 %v2008
  %v2010 = vand.u32 %v1993, 4294901760
  %2011 = vmatpush.msra.mxu0 %v2010
  %v2012 = vand.u32 %v1992, 4294901760
  %2013 = vmatpush.msra.mxu0 %v2012
  %v2014 = vand.u32 %v1991, 4294901760
  %2015 = vmatpush.msra.mxu0 %v2014
  %v2016 = vand.u32 %v1990, 4294901760
  %2017 = vmatpush.msra.mxu0 %v2016
  %v2018 = vand.u32 %v1989, 4294901760
  %2019 = vmatpush.msra.mxu0 %v2018
  %v2020 = vand.u32 %v1988, 4294901760
  %2021 = vmatpush.msra.mxu0 %v2020
  %v2022 = vand.u32 %v1987, 4294901760
  %2023 = vmatpush.msra.mxu0 %v2022
  %v2024 = vand.u32 %v1986, 4294901760
  %2025 = vmatpush.msra.mxu0 %v2024
  %v2026 = vand.u32 %v1985, 4294901760
  %2027 = vmatpush.msra.mxu0 %v2026
  %v2028 = vand.u32 %v1984, 4294901760
  %2029 = vmatpush.msra.mxu0 %v2028
  %v2030 = vand.u32 %v1983, 4294901760
  %2031 = vmatpush.msra.mxu0 %v2030
  %v2032 = vand.u32 %v1982, 4294901760
  %2033 = vmatpush.msra.mxu0 %v2032
  %v2034 = vand.u32 %v1979, 4294901760
  %v2035 = vsub.f32 %v1979, %v2034
  %v2036 = vand.u32 %v2035, 4294901760
  %v2037 = vsub.f32 %v2035, %v2036
  %v2038 = vand.u32 %v2037, 4294901760
  %2039 = vmatmul.f32.gmra.mxu0 %v2038
  %v2040 = vpop.f32.mrf.mxu0
  %v2041 = vadd.f32 %v2000, %v2040
  %v2042 = vand.u32 %v1980, 4294901760
  %v2043 = vsub.f32 %v1980, %v2042
  %v2044 = vand.u32 %v2043, 4294901760
  %v2045 = vsub.f32 %v2043, %v2044
  %v2046 = vand.u32 %v2045, 4294901760
  %2047 = vmatmul.f32.gmra.mxu0 %v2046
  %v2048 = vpop.f32.mrf.mxu0
  %v2049 = vadd.f32 %v2000, %v2048
  %v2050 = vand.u32 %v1981, 4294901760
  %v2051 = vsub.f32 %v1981, %v2050
  %v2052 = vand.u32 %v2051, 4294901760
  %v2053 = vsub.f32 %v2051, %v2052
  %v2054 = vand.u32 %v2053, 4294901760
  %2055 = vmatmul.f32.gmra.mxu0 %v2054
  %v2056 = vpop.f32.mrf.mxu0
  %v2057 = vadd.f32 %v2000, %v2056
  %2058 = vdwg.mxu0
  %v2059 = vand.u32 %v1997, 4294901760
  %v2060 = vsub.f32 %v1997, %v2059
  %v2061 = vand.u32 %v2060, 4294901760
  %v2062 = vsub.f32 %v2060, %v2061
  %v2063 = vand.u32 %v2062, 4294901760
  %2064 = vmatpush.msra.mxu0 %v2063
  %v2065 = vand.u32 %v1996, 4294901760
  %v2066 = vsub.f32 %v1996, %v2065
  %v2067 = vand.u32 %v2066, 4294901760
  %v2068 = vsub.f32 %v2066, %v2067
  %v2069 = vand.u32 %v2068, 4294901760
  %2070 = vmatpush.msra.mxu0 %v2069
  %v2071 = vand.u32 %v1995, 4294901760
  %v2072 = vsub.f32 %v1995, %v2071
  %v2073 = vand.u32 %v2072, 4294901760
  %v2074 = vsub.f32 %v2072, %v2073
  %v2075 = vand.u32 %v2074, 4294901760
  %2076 = vmatpush.msra.mxu0 %v2075
  %v2077 = vand.u32 %v1994, 4294901760
  %v2078 = vsub.f32 %v1994, %v2077
  %v2079 = vand.u32 %v2078, 4294901760
  %v2080 = vsub.f32 %v2078, %v2079
  %v2081 = vand.u32 %v2080, 4294901760
  %2082 = vmatpush.msra.mxu0 %v2081
  %v2083 = vand.u32 %v1993, 4294901760
  %v2084 = vsub.f32 %v1993, %v2083
  %v2085 = vand.u32 %v2084, 4294901760
  %v2086 = vsub.f32 %v2084, %v2085
  %v2087 = vand.u32 %v2086, 4294901760
  %2088 = vmatpush.msra.mxu0 %v2087
  %v2089 = vand.u32 %v1992, 4294901760
  %v2090 = vsub.f32 %v1992, %v2089
  %v2091 = vand.u32 %v2090, 4294901760
  %v2092 = vsub.f32 %v2090, %v2091
  %v2093 = vand.u32 %v2092, 4294901760
  %2094 = vmatpush.msra.mxu0 %v2093
  %v2095 = vand.u32 %v1991, 4294901760
  %v2096 = vsub.f32 %v1991, %v2095
  %v2097 = vand.u32 %v2096, 4294901760
  %v2098 = vsub.f32 %v2096, %v2097
  %v2099 = vand.u32 %v2098, 4294901760
  %2100 = vmatpush.msra.mxu0 %v2099
  %v2101 = vand.u32 %v1990, 4294901760
  %v2102 = vsub.f32 %v1990, %v2101
  %v2103 = vand.u32 %v2102, 4294901760
  %v2104 = vsub.f32 %v2102, %v2103
  %v2105 = vand.u32 %v2104, 4294901760
  %2106 = vmatpush.msra.mxu0 %v2105
  %v2107 = vand.u32 %v1989, 4294901760
  %v2108 = vsub.f32 %v1989, %v2107
  %v2109 = vand.u32 %v2108, 4294901760
  %v2110 = vsub.f32 %v2108, %v2109
  %v2111 = vand.u32 %v2110, 4294901760
  %2112 = vmatpush.msra.mxu0 %v2111
  %v2113 = vand.u32 %v1988, 4294901760
  %v2114 = vsub.f32 %v1988, %v2113
  %v2115 = vand.u32 %v2114, 4294901760
  %v2116 = vsub.f32 %v2114, %v2115
  %v2117 = vand.u32 %v2116, 4294901760
  %2118 = vmatpush.msra.mxu0 %v2117
  %v2119 = vand.u32 %v1987, 4294901760
  %v2120 = vsub.f32 %v1987, %v2119
  %v2121 = vand.u32 %v2120, 4294901760
  %v2122 = vsub.f32 %v2120, %v2121
  %v2123 = vand.u32 %v2122, 4294901760
  %2124 = vmatpush.msra.mxu0 %v2123
  %v2125 = vand.u32 %v1986, 4294901760
  %v2126 = vsub.f32 %v1986, %v2125
  %v2127 = vand.u32 %v2126, 4294901760
  %v2128 = vsub.f32 %v2126, %v2127
  %v2129 = vand.u32 %v2128, 4294901760
  %2130 = vmatpush.msra.mxu0 %v2129
  %v2131 = vand.u32 %v1985, 4294901760
  %v2132 = vsub.f32 %v1985, %v2131
  %v2133 = vand.u32 %v2132, 4294901760
  %v2134 = vsub.f32 %v2132, %v2133
  %v2135 = vand.u32 %v2134, 4294901760
  %2136 = vmatpush.msra.mxu0 %v2135
  %v2137 = vand.u32 %v1984, 4294901760
  %v2138 = vsub.f32 %v1984, %v2137
  %v2139 = vand.u32 %v2138, 4294901760
  %v2140 = vsub.f32 %v2138, %v2139
  %v2141 = vand.u32 %v2140, 4294901760
  %2142 = vmatpush.msra.mxu0 %v2141
  %v2143 = vand.u32 %v1983, 4294901760
  %v2144 = vsub.f32 %v1983, %v2143
  %v2145 = vand.u32 %v2144, 4294901760
  %v2146 = vsub.f32 %v2144, %v2145
  %v2147 = vand.u32 %v2146, 4294901760
  %2148 = vmatpush.msra.mxu0 %v2147
  %v2149 = vand.u32 %v1982, 4294901760
  %v2150 = vsub.f32 %v1982, %v2149
  %v2151 = vand.u32 %v2150, 4294901760
  %v2152 = vsub.f32 %v2150, %v2151
  %v2153 = vand.u32 %v2152, 4294901760
  %2154 = vmatpush.msra.mxu0 %v2153
  %v2155 = vand.u32 %v1979, 4294901760
  %2156 = vmatmul.f32.gmra.mxu0 %v2155
  %v2157 = vpop.f32.mrf.mxu0
  %v2158 = vadd.f32 %v2041, %v2157
  %v2159 = vand.u32 %v1980, 4294901760
  %2160 = vmatmul.f32.gmra.mxu0 %v2159
  %v2161 = vpop.f32.mrf.mxu0
  %v2162 = vadd.f32 %v2049, %v2161
  %v2163 = vand.u32 %v1981, 4294901760
  %2164 = vmatmul.f32.gmra.mxu0 %v2163
  %v2165 = vpop.f32.mrf.mxu0
  %v2166 = vadd.f32 %v2057, %v2165
  %2167 = vdwg.mxu0
  %v2168 = vand.u32 %v1997, 4294901760
  %v2169 = vsub.f32 %v1997, %v2168
  %2170 = vmatpush.msra.mxu0 %v2169
  %v2171 = vand.u32 %v1996, 4294901760
  %v2172 = vsub.f32 %v1996, %v2171
  %2173 = vmatpush.msra.mxu0 %v2172
  %v2174 = vand.u32 %v1995, 4294901760
  %v2175 = vsub.f32 %v1995, %v2174
  %2176 = vmatpush.msra.mxu0 %v2175
  %v2177 = vand.u32 %v1994, 4294901760
  %v2178 = vsub.f32 %v1994, %v2177
  %2179 = vmatpush.msra.mxu0 %v2178
  %v2180 = vand.u32 %v1993, 4294901760
  %v2181 = vsub.f32 %v1993, %v2180
  %2182 = vmatpush.msra.mxu0 %v2181
  %v2183 = vand.u32 %v1992, 4294901760
  %v2184 = vsub.f32 %v1992, %v2183
  %2185 = vmatpush.msra.mxu0 %v2184
  %v2186 = vand.u32 %v1991, 4294901760
  %v2187 = vsub.f32 %v1991, %v2186
  %2188 = vmatpush.msra.mxu0 %v2187
  %v2189 = vand.u32 %v1990, 4294901760
  %v2190 = vsub.f32 %v1990, %v2189
  %2191 = vmatpush.msra.mxu0 %v2190
  %v2192 = vand.u32 %v1989, 4294901760
  %v2193 = vsub.f32 %v1989, %v2192
  %2194 = vmatpush.msra.mxu0 %v2193
  %v2195 = vand.u32 %v1988, 4294901760
  %v2196 = vsub.f32 %v1988, %v2195
  %2197 = vmatpush.msra.mxu0 %v2196
  %v2198 = vand.u32 %v1987, 4294901760
  %v2199 = vsub.f32 %v1987, %v2198
  %2200 = vmatpush.msra.mxu0 %v2199
  %v2201 = vand.u32 %v1986, 4294901760
  %v2202 = vsub.f32 %v1986, %v2201
  %2203 = vmatpush.msra.mxu0 %v2202
  %v2204 = vand.u32 %v1985, 4294901760
  %v2205 = vsub.f32 %v1985, %v2204
  %2206 = vmatpush.msra.mxu0 %v2205
  %v2207 = vand.u32 %v1984, 4294901760
  %v2208 = vsub.f32 %v1984, %v2207
  %2209 = vmatpush.msra.mxu0 %v2208
  %v2210 = vand.u32 %v1983, 4294901760
  %v2211 = vsub.f32 %v1983, %v2210
  %2212 = vmatpush.msra.mxu0 %v2211
  %v2213 = vand.u32 %v1982, 4294901760
  %v2214 = vsub.f32 %v1982, %v2213
  %2215 = vmatpush.msra.mxu0 %v2214
  %v2216 = vand.u32 %v1979, 4294901760
  %v2217 = vsub.f32 %v1979, %v2216
  %2218 = vmatmul.f32.gmra.mxu0 %v2217
  %v2219 = vpop.f32.mrf.mxu0
  %v2220 = vadd.f32 %v2158, %v2219
  %v2221 = vand.u32 %v1980, 4294901760
  %v2222 = vsub.f32 %v1980, %v2221
  %2223 = vmatmul.f32.gmra.mxu0 %v2222
  %v2224 = vpop.f32.mrf.mxu0
  %v2225 = vadd.f32 %v2162, %v2224
  %v2226 = vand.u32 %v1981, 4294901760
  %v2227 = vsub.f32 %v1981, %v2226
  %2228 = vmatmul.f32.gmra.mxu0 %v2227
  %v2229 = vpop.f32.mrf.mxu0
  %v2230 = vadd.f32 %v2166, %v2229
  %2231 = vdwg.mxu0
  %v2232 = vand.u32 %v1997, 4294901760
  %2233 = vmatpush.msra.mxu0 %v2232
  %v2234 = vand.u32 %v1996, 4294901760
  %2235 = vmatpush.msra.mxu0 %v2234
  %v2236 = vand.u32 %v1995, 4294901760
  %2237 = vmatpush.msra.mxu0 %v2236
  %v2238 = vand.u32 %v1994, 4294901760
  %2239 = vmatpush.msra.mxu0 %v2238
  %v2240 = vand.u32 %v1993, 4294901760
  %2241 = vmatpush.msra.mxu0 %v2240
  %v2242 = vand.u32 %v1992, 4294901760
  %2243 = vmatpush.msra.mxu0 %v2242
  %v2244 = vand.u32 %v1991, 4294901760
  %2245 = vmatpush.msra.mxu0 %v2244
  %v2246 = vand.u32 %v1990, 4294901760
  %2247 = vmatpush.msra.mxu0 %v2246
  %v2248 = vand.u32 %v1989, 4294901760
  %2249 = vmatpush.msra.mxu0 %v2248
  %v2250 = vand.u32 %v1988, 4294901760
  %2251 = vmatpush.msra.mxu0 %v2250
  %v2252 = vand.u32 %v1987, 4294901760
  %2253 = vmatpush.msra.mxu0 %v2252
  %v2254 = vand.u32 %v1986, 4294901760
  %2255 = vmatpush.msra.mxu0 %v2254
  %v2256 = vand.u32 %v1985, 4294901760
  %2257 = vmatpush.msra.mxu0 %v2256
  %v2258 = vand.u32 %v1984, 4294901760
  %2259 = vmatpush.msra.mxu0 %v2258
  %v2260 = vand.u32 %v1983, 4294901760
  %2261 = vmatpush.msra.mxu0 %v2260
  %v2262 = vand.u32 %v1982, 4294901760
  %2263 = vmatpush.msra.mxu0 %v2262
  %v2264 = vand.u32 %v1979, 4294901760
  %v2265 = vsub.f32 %v1979, %v2264
  %v2266 = vand.u32 %v2265, 4294901760
  %2267 = vmatmul.f32.gmra.mxu0 %v2266
  %v2268 = vpop.f32.mrf.mxu0
  %v2269 = vadd.f32 %v2220, %v2268
  %v2270 = vand.u32 %v1980, 4294901760
  %v2271 = vsub.f32 %v1980, %v2270
  %v2272 = vand.u32 %v2271, 4294901760
  %2273 = vmatmul.f32.gmra.mxu0 %v2272
  %v2274 = vpop.f32.mrf.mxu0
  %v2275 = vadd.f32 %v2225, %v2274
  %v2276 = vand.u32 %v1981, 4294901760
  %v2277 = vsub.f32 %v1981, %v2276
  %v2278 = vand.u32 %v2277, 4294901760
  %2279 = vmatmul.f32.gmra.mxu0 %v2278
  %v2280 = vpop.f32.mrf.mxu0
  %v2281 = vadd.f32 %v2230, %v2280
  %2282 = vdwg.mxu0
  %v2283 = vand.u32 %v1997, 4294901760
  %v2284 = vsub.f32 %v1997, %v2283
  %v2285 = vand.u32 %v2284, 4294901760
  %2286 = vmatpush.msra.mxu0 %v2285
  %v2287 = vand.u32 %v1996, 4294901760
  %v2288 = vsub.f32 %v1996, %v2287
  %v2289 = vand.u32 %v2288, 4294901760
  %2290 = vmatpush.msra.mxu0 %v2289
  %v2291 = vand.u32 %v1995, 4294901760
  %v2292 = vsub.f32 %v1995, %v2291
  %v2293 = vand.u32 %v2292, 4294901760
  %2294 = vmatpush.msra.mxu0 %v2293
  %v2295 = vand.u32 %v1994, 4294901760
  %v2296 = vsub.f32 %v1994, %v2295
  %v2297 = vand.u32 %v2296, 4294901760
  %2298 = vmatpush.msra.mxu0 %v2297
  %v2299 = vand.u32 %v1993, 4294901760
  %v2300 = vsub.f32 %v1993, %v2299
  %v2301 = vand.u32 %v2300, 4294901760
  %2302 = vmatpush.msra.mxu0 %v2301
  %v2303 = vand.u32 %v1992, 4294901760
  %v2304 = vsub.f32 %v1992, %v2303
  %v2305 = vand.u32 %v2304, 4294901760
  %2306 = vmatpush.msra.mxu0 %v2305
  %v2307 = vand.u32 %v1991, 4294901760
  %v2308 = vsub.f32 %v1991, %v2307
  %v2309 = vand.u32 %v2308, 4294901760
  %2310 = vmatpush.msra.mxu0 %v2309
  %v2311 = vand.u32 %v1990, 4294901760
  %v2312 = vsub.f32 %v1990, %v2311
  %v2313 = vand.u32 %v2312, 4294901760
  %2314 = vmatpush.msra.mxu0 %v2313
  %v2315 = vand.u32 %v1989, 4294901760
  %v2316 = vsub.f32 %v1989, %v2315
  %v2317 = vand.u32 %v2316, 4294901760
  %2318 = vmatpush.msra.mxu0 %v2317
  %v2319 = vand.u32 %v1988, 4294901760
  %v2320 = vsub.f32 %v1988, %v2319
  %v2321 = vand.u32 %v2320, 4294901760
  %2322 = vmatpush.msra.mxu0 %v2321
  %v2323 = vand.u32 %v1987, 4294901760
  %v2324 = vsub.f32 %v1987, %v2323
  %v2325 = vand.u32 %v2324, 4294901760
  %2326 = vmatpush.msra.mxu0 %v2325
  %v2327 = vand.u32 %v1986, 4294901760
  %v2328 = vsub.f32 %v1986, %v2327
  %v2329 = vand.u32 %v2328, 4294901760
  %2330 = vmatpush.msra.mxu0 %v2329
  %v2331 = vand.u32 %v1985, 4294901760
  %v2332 = vsub.f32 %v1985, %v2331
  %v2333 = vand.u32 %v2332, 4294901760
  %2334 = vmatpush.msra.mxu0 %v2333
  %v2335 = vand.u32 %v1984, 4294901760
  %v2336 = vsub.f32 %v1984, %v2335
  %v2337 = vand.u32 %v2336, 4294901760
  %2338 = vmatpush.msra.mxu0 %v2337
  %v2339 = vand.u32 %v1983, 4294901760
  %v2340 = vsub.f32 %v1983, %v2339
  %v2341 = vand.u32 %v2340, 4294901760
  %2342 = vmatpush.msra.mxu0 %v2341
  %v2343 = vand.u32 %v1982, 4294901760
  %v2344 = vsub.f32 %v1982, %v2343
  %v2345 = vand.u32 %v2344, 4294901760
  %2346 = vmatpush.msra.mxu0 %v2345
  %v2347 = vand.u32 %v1979, 4294901760
  %2348 = vmatmul.f32.gmra.mxu0 %v2347
  %v2349 = vpop.f32.mrf.mxu0
  %v2350 = vadd.f32 %v2269, %v2349
  %v2351 = vand.u32 %v1980, 4294901760
  %2352 = vmatmul.f32.gmra.mxu0 %v2351
  %v2353 = vpop.f32.mrf.mxu0
  %v2354 = vadd.f32 %v2275, %v2353
  %v2355 = vand.u32 %v1981, 4294901760
  %2356 = vmatmul.f32.gmra.mxu0 %v2355
  %v2357 = vpop.f32.mrf.mxu0
  %v2358 = vadd.f32 %v2281, %v2357
  %2359 = vdwg.mxu0
  %v2360 = vand.u32 %v1997, 4294901760
  %2361 = vmatpush.msra.mxu0 %v2360
  %v2362 = vand.u32 %v1996, 4294901760
  %2363 = vmatpush.msra.mxu0 %v2362
  %v2364 = vand.u32 %v1995, 4294901760
  %2365 = vmatpush.msra.mxu0 %v2364
  %v2366 = vand.u32 %v1994, 4294901760
  %2367 = vmatpush.msra.mxu0 %v2366
  %v2368 = vand.u32 %v1993, 4294901760
  %2369 = vmatpush.msra.mxu0 %v2368
  %v2370 = vand.u32 %v1992, 4294901760
  %2371 = vmatpush.msra.mxu0 %v2370
  %v2372 = vand.u32 %v1991, 4294901760
  %2373 = vmatpush.msra.mxu0 %v2372
  %v2374 = vand.u32 %v1990, 4294901760
  %2375 = vmatpush.msra.mxu0 %v2374
  %v2376 = vand.u32 %v1989, 4294901760
  %2377 = vmatpush.msra.mxu0 %v2376
  %v2378 = vand.u32 %v1988, 4294901760
  %2379 = vmatpush.msra.mxu0 %v2378
  %v2380 = vand.u32 %v1987, 4294901760
  %2381 = vmatpush.msra.mxu0 %v2380
  %v2382 = vand.u32 %v1986, 4294901760
  %2383 = vmatpush.msra.mxu0 %v2382
  %v2384 = vand.u32 %v1985, 4294901760
  %2385 = vmatpush.msra.mxu0 %v2384
  %v2386 = vand.u32 %v1984, 4294901760
  %2387 = vmatpush.msra.mxu0 %v2386
  %v2388 = vand.u32 %v1983, 4294901760
  %2389 = vmatpush.msra.mxu0 %v2388
  %v2390 = vand.u32 %v1982, 4294901760
  %2391 = vmatpush.msra.mxu0 %v2390
  %v2392 = vand.u32 %v1979, 4294901760
  %2393 = vmatmul.f32.gmra.mxu0 %v2392
  %v2394 = vpop.f32.mrf.mxu0
  %v2395 = vadd.f32 %v2350, %v2394
  %v2396 = vand.u32 %v1980, 4294901760
  %2397 = vmatmul.f32.gmra.mxu0 %v2396
  %v2398 = vpop.f32.mrf.mxu0
  %v2399 = vadd.f32 %v2354, %v2398
  %v2400 = vand.u32 %v1981, 4294901760
  %2401 = vmatmul.f32.gmra.mxu0 %v2400
  %v2402 = vpop.f32.mrf.mxu0
  %v2403 = vadd.f32 %v2358, %v2402
  %2404 = vdwg.mxu0
  %v2405 = vadd.f32 %v1671, %v2395
  %v2406 = vadd.f32 %v1672, %v2399
  %v2407 = vadd.f32 %v1673, %v2403
  %v2408 = vsel %vm322, %v2405, 0.0
  %2409 = vadd.xlane.f32.xlu0 %v2408
  %v2410 = vpop.xlane.xlu0 %2409
  %v2411 = vsel %vm322, %v2406, 0.0
  %2412 = vadd.xlane.f32.xlu0 %v2411
  %v2413 = vpop.xlane.xlu0 %2412
  %v2414 = vsel %vm322, %v2407, 0.0
  %2415 = vadd.xlane.f32.xlu0 %v2414
  %v2416 = vpop.xlane.xlu0 %2415
  %v2417 = vmul.f32 %v2410, %v338
  %v2418 = vmul.f32 %v2413, %v338
  %v2419 = vmul.f32 %v2416, %v338
  %v2420 = vsub.f32 %v2405, %v2417
  %v2421 = vsub.f32 %v2406, %v2418
  %v2422 = vsub.f32 %v2407, %v2419
  %v2423 = vmul.f32 %v2420, %v2420
  %v2424 = vmul.f32 %v2421, %v2421
  %v2425 = vmul.f32 %v2422, %v2422
  %v2426 = vsel %vm322, %v2423, 0.0
  %2427 = vadd.xlane.f32.xlu0 %v2426
  %v2428 = vpop.xlane.xlu0 %2427
  %v2429 = vsel %vm322, %v2424, 0.0
  %2430 = vadd.xlane.f32.xlu0 %v2429
  %v2431 = vpop.xlane.xlu0 %2430
  %v2432 = vsel %vm322, %v2425, 0.0
  %2433 = vadd.xlane.f32.xlu0 %v2432
  %v2434 = vpop.xlane.xlu0 %2433
  %v2435 = vmul.f32 %v2428, %v338
  %v2436 = vmul.f32 %v2431, %v338
  %v2437 = vmul.f32 %v2434, %v338
  %v2438 = vadd.f32 %v2435, 1e-05
  %v2439 = vadd.f32 %v2436, 1e-05
  %v2440 = vadd.f32 %v2437, 1e-05
  %v2441 = vrsqrt.pop %v2438
  %v2442 = vmul.f32 %v2441, %v2438
  %v2443 = vmul.f32 %v2442, %v2441
  %v2444 = vmul.f32 0.5, %v2443
  %v2445 = vsub.f32 1.5, %v2444
  %v2446 = vmul.f32 %v2441, %v2445
  %vm2447 = vweird.f32 %v2438
  %vm2448 = vweird.f32 %v2441
  %vm2449 = vmor %vm2447, %vm2448
  %v2450 = vsel %vm2449, %v2441, %v2446
  %v2451 = vrsqrt.pop %v2439
  %v2452 = vmul.f32 %v2451, %v2439
  %v2453 = vmul.f32 %v2452, %v2451
  %v2454 = vmul.f32 0.5, %v2453
  %v2455 = vsub.f32 1.5, %v2454
  %v2456 = vmul.f32 %v2451, %v2455
  %vm2457 = vweird.f32 %v2439
  %vm2458 = vweird.f32 %v2451
  %vm2459 = vmor %vm2457, %vm2458
  %v2460 = vsel %vm2459, %v2451, %v2456
  %v2461 = vrsqrt.pop %v2440
  %v2462 = vmul.f32 %v2461, %v2440
  %v2463 = vmul.f32 %v2462, %v2461
  %v2464 = vmul.f32 0.5, %v2463
  %v2465 = vsub.f32 1.5, %v2464
  %v2466 = vmul.f32 %v2461, %v2465
  %vm2467 = vweird.f32 %v2440
  %vm2468 = vweird.f32 %v2461
  %vm2469 = vmor %vm2467, %vm2468
  %v2470 = vsel %vm2469, %v2461, %v2466
  %v2471 = vmul.f32 %v2420, %v2450
  %v2472 = vmul.f32 %v2421, %v2460
  %v2473 = vmul.f32 %v2422, %v2470
  %s2474 = scalar_lea.vmem %s4, 16
  %v2475 = vld [vmem:[%s2474] sm:$0xff]
  %v2476 = vld [vmem:[%s2474 + $0x8] sm:$0xf]
  %s2477 = scalar_lea.vmem %s5, 1
  %v2478 = vld [vmem:[%s2477] sm:$0x1]
  %v2480 = vperm.slane %v2478, 0
  %v2483 = vsel %vm322, %v2471, 0
  %v2486 = vsel %vm322, %v2472, 0
  %v2489 = vsel %vm322, %v2473, 0
  %v2492 = vsel %vm411, %v2476, 0
  %2494 = vmatpush.msra.mxu0 0.0
  %2495 = vmatpush.msra.mxu0 0.0
  %2496 = vmatpush.msra.mxu0 0.0
  %2497 = vmatpush.msra.mxu0 0.0
  %2498 = vmatpush.msra.mxu0 0.0
  %2499 = vmatpush.msra.mxu0 0.0
  %2500 = vmatpush.msra.mxu0 0.0
  %2501 = vmatpush.msra.mxu0 0.0
  %2502 = vmatpush.msra.mxu0 0.0
  %2503 = vmatpush.msra.mxu0 0.0
  %2504 = vmatpush.msra.mxu0 0.0
  %2505 = vmatpush.msra.mxu0 0.0
  %2506 = vmatpush.msra.mxu0 0.0
  %2507 = vmatpush.msra.mxu0 0.0
  %v2508 = vand.u32 %v2492, 4294901760
  %2509 = vmatpush.msra.mxu0 %v2508
  %v2510 = vand.u32 %v2475, 4294901760
  %2511 = vmatpush.msra.mxu0 %v2510
  %v2512 = vand.u32 %v2483, 4294901760
  %v2513 = vsub.f32 %v2483, %v2512
  %v2514 = vand.u32 %v2513, 4294901760
  %v2515 = vsub.f32 %v2513, %v2514
  %v2516 = vand.u32 %v2515, 4294901760
  %2517 = vmatmul.f32.gmra.mxu0 %v2516
  %v2518 = vpop.f32.mrf.mxu0
  %v2519 = vadd.f32 %v2480, %v2518
  %v2520 = vand.u32 %v2486, 4294901760
  %v2521 = vsub.f32 %v2486, %v2520
  %v2522 = vand.u32 %v2521, 4294901760
  %v2523 = vsub.f32 %v2521, %v2522
  %v2524 = vand.u32 %v2523, 4294901760
  %2525 = vmatmul.f32.gmra.mxu0 %v2524
  %v2526 = vpop.f32.mrf.mxu0
  %v2527 = vadd.f32 %v2480, %v2526
  %v2528 = vand.u32 %v2489, 4294901760
  %v2529 = vsub.f32 %v2489, %v2528
  %v2530 = vand.u32 %v2529, 4294901760
  %v2531 = vsub.f32 %v2529, %v2530
  %v2532 = vand.u32 %v2531, 4294901760
  %2533 = vmatmul.f32.gmra.mxu0 %v2532
  %v2534 = vpop.f32.mrf.mxu0
  %v2535 = vadd.f32 %v2480, %v2534
  %2536 = vdwg.mxu0
  %2537 = vmatpush.msra.mxu0 0.0
  %2538 = vmatpush.msra.mxu0 0.0
  %2539 = vmatpush.msra.mxu0 0.0
  %2540 = vmatpush.msra.mxu0 0.0
  %2541 = vmatpush.msra.mxu0 0.0
  %2542 = vmatpush.msra.mxu0 0.0
  %2543 = vmatpush.msra.mxu0 0.0
  %2544 = vmatpush.msra.mxu0 0.0
  %2545 = vmatpush.msra.mxu0 0.0
  %2546 = vmatpush.msra.mxu0 0.0
  %2547 = vmatpush.msra.mxu0 0.0
  %2548 = vmatpush.msra.mxu0 0.0
  %2549 = vmatpush.msra.mxu0 0.0
  %2550 = vmatpush.msra.mxu0 0.0
  %v2551 = vand.u32 %v2492, 4294901760
  %v2552 = vsub.f32 %v2492, %v2551
  %v2553 = vand.u32 %v2552, 4294901760
  %v2554 = vsub.f32 %v2552, %v2553
  %v2555 = vand.u32 %v2554, 4294901760
  %2556 = vmatpush.msra.mxu0 %v2555
  %v2557 = vand.u32 %v2475, 4294901760
  %v2558 = vsub.f32 %v2475, %v2557
  %v2559 = vand.u32 %v2558, 4294901760
  %v2560 = vsub.f32 %v2558, %v2559
  %v2561 = vand.u32 %v2560, 4294901760
  %2562 = vmatpush.msra.mxu0 %v2561
  %v2563 = vand.u32 %v2483, 4294901760
  %2564 = vmatmul.f32.gmra.mxu0 %v2563
  %v2565 = vpop.f32.mrf.mxu0
  %v2566 = vadd.f32 %v2519, %v2565
  %v2567 = vand.u32 %v2486, 4294901760
  %2568 = vmatmul.f32.gmra.mxu0 %v2567
  %v2569 = vpop.f32.mrf.mxu0
  %v2570 = vadd.f32 %v2527, %v2569
  %v2571 = vand.u32 %v2489, 4294901760
  %2572 = vmatmul.f32.gmra.mxu0 %v2571
  %v2573 = vpop.f32.mrf.mxu0
  %v2574 = vadd.f32 %v2535, %v2573
  %2575 = vdwg.mxu0
  %2576 = vmatpush.msra.mxu0 0.0
  %2577 = vmatpush.msra.mxu0 0.0
  %2578 = vmatpush.msra.mxu0 0.0
  %2579 = vmatpush.msra.mxu0 0.0
  %2580 = vmatpush.msra.mxu0 0.0
  %2581 = vmatpush.msra.mxu0 0.0
  %2582 = vmatpush.msra.mxu0 0.0
  %2583 = vmatpush.msra.mxu0 0.0
  %2584 = vmatpush.msra.mxu0 0.0
  %2585 = vmatpush.msra.mxu0 0.0
  %2586 = vmatpush.msra.mxu0 0.0
  %2587 = vmatpush.msra.mxu0 0.0
  %2588 = vmatpush.msra.mxu0 0.0
  %2589 = vmatpush.msra.mxu0 0.0
  %v2590 = vand.u32 %v2492, 4294901760
  %v2591 = vsub.f32 %v2492, %v2590
  %2592 = vmatpush.msra.mxu0 %v2591
  %v2593 = vand.u32 %v2475, 4294901760
  %v2594 = vsub.f32 %v2475, %v2593
  %2595 = vmatpush.msra.mxu0 %v2594
  %v2596 = vand.u32 %v2483, 4294901760
  %v2597 = vsub.f32 %v2483, %v2596
  %2598 = vmatmul.f32.gmra.mxu0 %v2597
  %v2599 = vpop.f32.mrf.mxu0
  %v2600 = vadd.f32 %v2566, %v2599
  %v2601 = vand.u32 %v2486, 4294901760
  %v2602 = vsub.f32 %v2486, %v2601
  %2603 = vmatmul.f32.gmra.mxu0 %v2602
  %v2604 = vpop.f32.mrf.mxu0
  %v2605 = vadd.f32 %v2570, %v2604
  %v2606 = vand.u32 %v2489, 4294901760
  %v2607 = vsub.f32 %v2489, %v2606
  %2608 = vmatmul.f32.gmra.mxu0 %v2607
  %v2609 = vpop.f32.mrf.mxu0
  %v2610 = vadd.f32 %v2574, %v2609
  %2611 = vdwg.mxu0
  %2612 = vmatpush.msra.mxu0 0.0
  %2613 = vmatpush.msra.mxu0 0.0
  %2614 = vmatpush.msra.mxu0 0.0
  %2615 = vmatpush.msra.mxu0 0.0
  %2616 = vmatpush.msra.mxu0 0.0
  %2617 = vmatpush.msra.mxu0 0.0
  %2618 = vmatpush.msra.mxu0 0.0
  %2619 = vmatpush.msra.mxu0 0.0
  %2620 = vmatpush.msra.mxu0 0.0
  %2621 = vmatpush.msra.mxu0 0.0
  %2622 = vmatpush.msra.mxu0 0.0
  %2623 = vmatpush.msra.mxu0 0.0
  %2624 = vmatpush.msra.mxu0 0.0
  %2625 = vmatpush.msra.mxu0 0.0
  %v2626 = vand.u32 %v2492, 4294901760
  %2627 = vmatpush.msra.mxu0 %v2626
  %v2628 = vand.u32 %v2475, 4294901760
  %2629 = vmatpush.msra.mxu0 %v2628
  %v2630 = vand.u32 %v2483, 4294901760
  %v2631 = vsub.f32 %v2483, %v2630
  %v2632 = vand.u32 %v2631, 4294901760
  %2633 = vmatmul.f32.gmra.mxu0 %v2632
  %v2634 = vpop.f32.mrf.mxu0
  %v2635 = vadd.f32 %v2600, %v2634
  %v2636 = vand.u32 %v2486, 4294901760
  %v2637 = vsub.f32 %v2486, %v2636
  %v2638 = vand.u32 %v2637, 4294901760
  %2639 = vmatmul.f32.gmra.mxu0 %v2638
  %v2640 = vpop.f32.mrf.mxu0
  %v2641 = vadd.f32 %v2605, %v2640
  %v2642 = vand.u32 %v2489, 4294901760
  %v2643 = vsub.f32 %v2489, %v2642
  %v2644 = vand.u32 %v2643, 4294901760
  %2645 = vmatmul.f32.gmra.mxu0 %v2644
  %v2646 = vpop.f32.mrf.mxu0
  %v2647 = vadd.f32 %v2610, %v2646
  %2648 = vdwg.mxu0
  %2649 = vmatpush.msra.mxu0 0.0
  %2650 = vmatpush.msra.mxu0 0.0
  %2651 = vmatpush.msra.mxu0 0.0
  %2652 = vmatpush.msra.mxu0 0.0
  %2653 = vmatpush.msra.mxu0 0.0
  %2654 = vmatpush.msra.mxu0 0.0
  %2655 = vmatpush.msra.mxu0 0.0
  %2656 = vmatpush.msra.mxu0 0.0
  %2657 = vmatpush.msra.mxu0 0.0
  %2658 = vmatpush.msra.mxu0 0.0
  %2659 = vmatpush.msra.mxu0 0.0
  %2660 = vmatpush.msra.mxu0 0.0
  %2661 = vmatpush.msra.mxu0 0.0
  %2662 = vmatpush.msra.mxu0 0.0
  %v2663 = vand.u32 %v2492, 4294901760
  %v2664 = vsub.f32 %v2492, %v2663
  %v2665 = vand.u32 %v2664, 4294901760
  %2666 = vmatpush.msra.mxu0 %v2665
  %v2667 = vand.u32 %v2475, 4294901760
  %v2668 = vsub.f32 %v2475, %v2667
  %v2669 = vand.u32 %v2668, 4294901760
  %2670 = vmatpush.msra.mxu0 %v2669
  %v2671 = vand.u32 %v2483, 4294901760
  %2672 = vmatmul.f32.gmra.mxu0 %v2671
  %v2673 = vpop.f32.mrf.mxu0
  %v2674 = vadd.f32 %v2635, %v2673
  %v2675 = vand.u32 %v2486, 4294901760
  %2676 = vmatmul.f32.gmra.mxu0 %v2675
  %v2677 = vpop.f32.mrf.mxu0
  %v2678 = vadd.f32 %v2641, %v2677
  %v2679 = vand.u32 %v2489, 4294901760
  %2680 = vmatmul.f32.gmra.mxu0 %v2679
  %v2681 = vpop.f32.mrf.mxu0
  %v2682 = vadd.f32 %v2647, %v2681
  %2683 = vdwg.mxu0
  %2684 = vmatpush.msra.mxu0 0.0
  %2685 = vmatpush.msra.mxu0 0.0
  %2686 = vmatpush.msra.mxu0 0.0
  %2687 = vmatpush.msra.mxu0 0.0
  %2688 = vmatpush.msra.mxu0 0.0
  %2689 = vmatpush.msra.mxu0 0.0
  %2690 = vmatpush.msra.mxu0 0.0
  %2691 = vmatpush.msra.mxu0 0.0
  %2692 = vmatpush.msra.mxu0 0.0
  %2693 = vmatpush.msra.mxu0 0.0
  %2694 = vmatpush.msra.mxu0 0.0
  %2695 = vmatpush.msra.mxu0 0.0
  %2696 = vmatpush.msra.mxu0 0.0
  %2697 = vmatpush.msra.mxu0 0.0
  %v2698 = vand.u32 %v2492, 4294901760
  %2699 = vmatpush.msra.mxu0 %v2698
  %v2700 = vand.u32 %v2475, 4294901760
  %2701 = vmatpush.msra.mxu0 %v2700
  %v2702 = vand.u32 %v2483, 4294901760
  %2703 = vmatmul.f32.gmra.mxu0 %v2702
  %v2704 = vpop.f32.mrf.mxu0
  %v2705 = vadd.f32 %v2674, %v2704
  %v2706 = vand.u32 %v2486, 4294901760
  %2707 = vmatmul.f32.gmra.mxu0 %v2706
  %v2708 = vpop.f32.mrf.mxu0
  %v2709 = vadd.f32 %v2678, %v2708
  %v2710 = vand.u32 %v2489, 4294901760
  %2711 = vmatmul.f32.gmra.mxu0 %v2710
  %v2712 = vpop.f32.mrf.mxu0
  %v2713 = vadd.f32 %v2682, %v2712
  %2714 = vdwg.mxu0
  %s2715 = scalar_lea.vmem %s6, 16
  %v2716 = vld [vmem:[%s2715] sm:$0xff]
  %v2717 = vld [vmem:[%s2715 + $0x8] sm:$0xf]
  %s2718 = scalar_lea.vmem %s7, 1
  %v2719 = vld [vmem:[%s2718] sm:$0x1]
  %v2721 = vperm.slane %v2719, 0
  %v2724 = vsel %vm411, %v2717, 0
  %2726 = vmatpush.msra.mxu0 0.0
  %2727 = vmatpush.msra.mxu0 0.0
  %2728 = vmatpush.msra.mxu0 0.0
  %2729 = vmatpush.msra.mxu0 0.0
  %2730 = vmatpush.msra.mxu0 0.0
  %2731 = vmatpush.msra.mxu0 0.0
  %2732 = vmatpush.msra.mxu0 0.0
  %2733 = vmatpush.msra.mxu0 0.0
  %2734 = vmatpush.msra.mxu0 0.0
  %2735 = vmatpush.msra.mxu0 0.0
  %2736 = vmatpush.msra.mxu0 0.0
  %2737 = vmatpush.msra.mxu0 0.0
  %2738 = vmatpush.msra.mxu0 0.0
  %2739 = vmatpush.msra.mxu0 0.0
  %v2740 = vand.u32 %v2724, 4294901760
  %2741 = vmatpush.msra.mxu0 %v2740
  %v2742 = vand.u32 %v2716, 4294901760
  %2743 = vmatpush.msra.mxu0 %v2742
  %v2744 = vand.u32 %v2483, 4294901760
  %v2745 = vsub.f32 %v2483, %v2744
  %v2746 = vand.u32 %v2745, 4294901760
  %v2747 = vsub.f32 %v2745, %v2746
  %v2748 = vand.u32 %v2747, 4294901760
  %2749 = vmatmul.f32.gmra.mxu0 %v2748
  %v2750 = vpop.f32.mrf.mxu0
  %v2751 = vadd.f32 %v2721, %v2750
  %v2752 = vand.u32 %v2486, 4294901760
  %v2753 = vsub.f32 %v2486, %v2752
  %v2754 = vand.u32 %v2753, 4294901760
  %v2755 = vsub.f32 %v2753, %v2754
  %v2756 = vand.u32 %v2755, 4294901760
  %2757 = vmatmul.f32.gmra.mxu0 %v2756
  %v2758 = vpop.f32.mrf.mxu0
  %v2759 = vadd.f32 %v2721, %v2758
  %v2760 = vand.u32 %v2489, 4294901760
  %v2761 = vsub.f32 %v2489, %v2760
  %v2762 = vand.u32 %v2761, 4294901760
  %v2763 = vsub.f32 %v2761, %v2762
  %v2764 = vand.u32 %v2763, 4294901760
  %2765 = vmatmul.f32.gmra.mxu0 %v2764
  %v2766 = vpop.f32.mrf.mxu0
  %v2767 = vadd.f32 %v2721, %v2766
  %2768 = vdwg.mxu0
  %2769 = vmatpush.msra.mxu0 0.0
  %2770 = vmatpush.msra.mxu0 0.0
  %2771 = vmatpush.msra.mxu0 0.0
  %2772 = vmatpush.msra.mxu0 0.0
  %2773 = vmatpush.msra.mxu0 0.0
  %2774 = vmatpush.msra.mxu0 0.0
  %2775 = vmatpush.msra.mxu0 0.0
  %2776 = vmatpush.msra.mxu0 0.0
  %2777 = vmatpush.msra.mxu0 0.0
  %2778 = vmatpush.msra.mxu0 0.0
  %2779 = vmatpush.msra.mxu0 0.0
  %2780 = vmatpush.msra.mxu0 0.0
  %2781 = vmatpush.msra.mxu0 0.0
  %2782 = vmatpush.msra.mxu0 0.0
  %v2783 = vand.u32 %v2724, 4294901760
  %v2784 = vsub.f32 %v2724, %v2783
  %v2785 = vand.u32 %v2784, 4294901760
  %v2786 = vsub.f32 %v2784, %v2785
  %v2787 = vand.u32 %v2786, 4294901760
  %2788 = vmatpush.msra.mxu0 %v2787
  %v2789 = vand.u32 %v2716, 4294901760
  %v2790 = vsub.f32 %v2716, %v2789
  %v2791 = vand.u32 %v2790, 4294901760
  %v2792 = vsub.f32 %v2790, %v2791
  %v2793 = vand.u32 %v2792, 4294901760
  %2794 = vmatpush.msra.mxu0 %v2793
  %v2795 = vand.u32 %v2483, 4294901760
  %2796 = vmatmul.f32.gmra.mxu0 %v2795
  %v2797 = vpop.f32.mrf.mxu0
  %v2798 = vadd.f32 %v2751, %v2797
  %v2799 = vand.u32 %v2486, 4294901760
  %2800 = vmatmul.f32.gmra.mxu0 %v2799
  %v2801 = vpop.f32.mrf.mxu0
  %v2802 = vadd.f32 %v2759, %v2801
  %v2803 = vand.u32 %v2489, 4294901760
  %2804 = vmatmul.f32.gmra.mxu0 %v2803
  %v2805 = vpop.f32.mrf.mxu0
  %v2806 = vadd.f32 %v2767, %v2805
  %2807 = vdwg.mxu0
  %2808 = vmatpush.msra.mxu0 0.0
  %2809 = vmatpush.msra.mxu0 0.0
  %2810 = vmatpush.msra.mxu0 0.0
  %2811 = vmatpush.msra.mxu0 0.0
  %2812 = vmatpush.msra.mxu0 0.0
  %2813 = vmatpush.msra.mxu0 0.0
  %2814 = vmatpush.msra.mxu0 0.0
  %2815 = vmatpush.msra.mxu0 0.0
  %2816 = vmatpush.msra.mxu0 0.0
  %2817 = vmatpush.msra.mxu0 0.0
  %2818 = vmatpush.msra.mxu0 0.0
  %2819 = vmatpush.msra.mxu0 0.0
  %2820 = vmatpush.msra.mxu0 0.0
  %2821 = vmatpush.msra.mxu0 0.0
  %v2822 = vand.u32 %v2724, 4294901760
  %v2823 = vsub.f32 %v2724, %v2822
  %2824 = vmatpush.msra.mxu0 %v2823
  %v2825 = vand.u32 %v2716, 4294901760
  %v2826 = vsub.f32 %v2716, %v2825
  %2827 = vmatpush.msra.mxu0 %v2826
  %v2828 = vand.u32 %v2483, 4294901760
  %v2829 = vsub.f32 %v2483, %v2828
  %2830 = vmatmul.f32.gmra.mxu0 %v2829
  %v2831 = vpop.f32.mrf.mxu0
  %v2832 = vadd.f32 %v2798, %v2831
  %v2833 = vand.u32 %v2486, 4294901760
  %v2834 = vsub.f32 %v2486, %v2833
  %2835 = vmatmul.f32.gmra.mxu0 %v2834
  %v2836 = vpop.f32.mrf.mxu0
  %v2837 = vadd.f32 %v2802, %v2836
  %v2838 = vand.u32 %v2489, 4294901760
  %v2839 = vsub.f32 %v2489, %v2838
  %2840 = vmatmul.f32.gmra.mxu0 %v2839
  %v2841 = vpop.f32.mrf.mxu0
  %v2842 = vadd.f32 %v2806, %v2841
  %2843 = vdwg.mxu0
  %2844 = vmatpush.msra.mxu0 0.0
  %2845 = vmatpush.msra.mxu0 0.0
  %2846 = vmatpush.msra.mxu0 0.0
  %2847 = vmatpush.msra.mxu0 0.0
  %2848 = vmatpush.msra.mxu0 0.0
  %2849 = vmatpush.msra.mxu0 0.0
  %2850 = vmatpush.msra.mxu0 0.0
  %2851 = vmatpush.msra.mxu0 0.0
  %2852 = vmatpush.msra.mxu0 0.0
  %2853 = vmatpush.msra.mxu0 0.0
  %2854 = vmatpush.msra.mxu0 0.0
  %2855 = vmatpush.msra.mxu0 0.0
  %2856 = vmatpush.msra.mxu0 0.0
  %2857 = vmatpush.msra.mxu0 0.0
  %v2858 = vand.u32 %v2724, 4294901760
  %2859 = vmatpush.msra.mxu0 %v2858
  %v2860 = vand.u32 %v2716, 4294901760
  %2861 = vmatpush.msra.mxu0 %v2860
  %v2862 = vand.u32 %v2483, 4294901760
  %v2863 = vsub.f32 %v2483, %v2862
  %v2864 = vand.u32 %v2863, 4294901760
  %2865 = vmatmul.f32.gmra.mxu0 %v2864
  %v2866 = vpop.f32.mrf.mxu0
  %v2867 = vadd.f32 %v2832, %v2866
  %v2868 = vand.u32 %v2486, 4294901760
  %v2869 = vsub.f32 %v2486, %v2868
  %v2870 = vand.u32 %v2869, 4294901760
  %2871 = vmatmul.f32.gmra.mxu0 %v2870
  %v2872 = vpop.f32.mrf.mxu0
  %v2873 = vadd.f32 %v2837, %v2872
  %v2874 = vand.u32 %v2489, 4294901760
  %v2875 = vsub.f32 %v2489, %v2874
  %v2876 = vand.u32 %v2875, 4294901760
  %2877 = vmatmul.f32.gmra.mxu0 %v2876
  %v2878 = vpop.f32.mrf.mxu0
  %v2879 = vadd.f32 %v2842, %v2878
  %2880 = vdwg.mxu0
  %2881 = vmatpush.msra.mxu0 0.0
  %2882 = vmatpush.msra.mxu0 0.0
  %2883 = vmatpush.msra.mxu0 0.0
  %2884 = vmatpush.msra.mxu0 0.0
  %2885 = vmatpush.msra.mxu0 0.0
  %2886 = vmatpush.msra.mxu0 0.0
  %2887 = vmatpush.msra.mxu0 0.0
  %2888 = vmatpush.msra.mxu0 0.0
  %2889 = vmatpush.msra.mxu0 0.0
  %2890 = vmatpush.msra.mxu0 0.0
  %2891 = vmatpush.msra.mxu0 0.0
  %2892 = vmatpush.msra.mxu0 0.0
  %2893 = vmatpush.msra.mxu0 0.0
  %2894 = vmatpush.msra.mxu0 0.0
  %v2895 = vand.u32 %v2724, 4294901760
  %v2896 = vsub.f32 %v2724, %v2895
  %v2897 = vand.u32 %v2896, 4294901760
  %2898 = vmatpush.msra.mxu0 %v2897
  %v2899 = vand.u32 %v2716, 4294901760
  %v2900 = vsub.f32 %v2716, %v2899
  %v2901 = vand.u32 %v2900, 4294901760
  %2902 = vmatpush.msra.mxu0 %v2901
  %v2903 = vand.u32 %v2483, 4294901760
  %2904 = vmatmul.f32.gmra.mxu0 %v2903
  %v2905 = vpop.f32.mrf.mxu0
  %v2906 = vadd.f32 %v2867, %v2905
  %v2907 = vand.u32 %v2486, 4294901760
  %2908 = vmatmul.f32.gmra.mxu0 %v2907
  %v2909 = vpop.f32.mrf.mxu0
  %v2910 = vadd.f32 %v2873, %v2909
  %v2911 = vand.u32 %v2489, 4294901760
  %2912 = vmatmul.f32.gmra.mxu0 %v2911
  %v2913 = vpop.f32.mrf.mxu0
  %v2914 = vadd.f32 %v2879, %v2913
  %2915 = vdwg.mxu0
  %2916 = vmatpush.msra.mxu0 0.0
  %2917 = vmatpush.msra.mxu0 0.0
  %2918 = vmatpush.msra.mxu0 0.0
  %2919 = vmatpush.msra.mxu0 0.0
  %2920 = vmatpush.msra.mxu0 0.0
  %2921 = vmatpush.msra.mxu0 0.0
  %2922 = vmatpush.msra.mxu0 0.0
  %2923 = vmatpush.msra.mxu0 0.0
  %2924 = vmatpush.msra.mxu0 0.0
  %2925 = vmatpush.msra.mxu0 0.0
  %2926 = vmatpush.msra.mxu0 0.0
  %2927 = vmatpush.msra.mxu0 0.0
  %2928 = vmatpush.msra.mxu0 0.0
  %2929 = vmatpush.msra.mxu0 0.0
  %v2930 = vand.u32 %v2724, 4294901760
  %2931 = vmatpush.msra.mxu0 %v2930
  %v2932 = vand.u32 %v2716, 4294901760
  %2933 = vmatpush.msra.mxu0 %v2932
  %v2934 = vand.u32 %v2483, 4294901760
  %2935 = vmatmul.f32.gmra.mxu0 %v2934
  %v2936 = vpop.f32.mrf.mxu0
  %v2937 = vadd.f32 %v2906, %v2936
  %v2938 = vand.u32 %v2486, 4294901760
  %2939 = vmatmul.f32.gmra.mxu0 %v2938
  %v2940 = vpop.f32.mrf.mxu0
  %v2941 = vadd.f32 %v2910, %v2940
  %v2942 = vand.u32 %v2489, 4294901760
  %2943 = vmatmul.f32.gmra.mxu0 %v2942
  %v2944 = vpop.f32.mrf.mxu0
  %v2945 = vadd.f32 %v2914, %v2944
  %2946 = vdwg.mxu0
  %s2947 = scalar_lea.vmem %s8, 16
  %v2948 = vld [vmem:[%s2947] sm:$0xff]
  %v2949 = vld [vmem:[%s2947 + $0x8] sm:$0xf]
  %s2950 = scalar_lea.vmem %s9, 1
  %v2951 = vld [vmem:[%s2950] sm:$0x1]
  %v2953 = vperm.slane %v2951, 0
  %v2956 = vsel %vm411, %v2949, 0
  %2958 = vmatpush.msra.mxu0 0.0
  %2959 = vmatpush.msra.mxu0 0.0
  %2960 = vmatpush.msra.mxu0 0.0
  %2961 = vmatpush.msra.mxu0 0.0
  %2962 = vmatpush.msra.mxu0 0.0
  %2963 = vmatpush.msra.mxu0 0.0
  %2964 = vmatpush.msra.mxu0 0.0
  %2965 = vmatpush.msra.mxu0 0.0
  %2966 = vmatpush.msra.mxu0 0.0
  %2967 = vmatpush.msra.mxu0 0.0
  %2968 = vmatpush.msra.mxu0 0.0
  %2969 = vmatpush.msra.mxu0 0.0
  %2970 = vmatpush.msra.mxu0 0.0
  %2971 = vmatpush.msra.mxu0 0.0
  %v2972 = vand.u32 %v2956, 4294901760
  %2973 = vmatpush.msra.mxu0 %v2972
  %v2974 = vand.u32 %v2948, 4294901760
  %2975 = vmatpush.msra.mxu0 %v2974
  %v2976 = vand.u32 %v2483, 4294901760
  %v2977 = vsub.f32 %v2483, %v2976
  %v2978 = vand.u32 %v2977, 4294901760
  %v2979 = vsub.f32 %v2977, %v2978
  %v2980 = vand.u32 %v2979, 4294901760
  %2981 = vmatmul.f32.gmra.mxu0 %v2980
  %v2982 = vpop.f32.mrf.mxu0
  %v2983 = vadd.f32 %v2953, %v2982
  %v2984 = vand.u32 %v2486, 4294901760
  %v2985 = vsub.f32 %v2486, %v2984
  %v2986 = vand.u32 %v2985, 4294901760
  %v2987 = vsub.f32 %v2985, %v2986
  %v2988 = vand.u32 %v2987, 4294901760
  %2989 = vmatmul.f32.gmra.mxu0 %v2988
  %v2990 = vpop.f32.mrf.mxu0
  %v2991 = vadd.f32 %v2953, %v2990
  %v2992 = vand.u32 %v2489, 4294901760
  %v2993 = vsub.f32 %v2489, %v2992
  %v2994 = vand.u32 %v2993, 4294901760
  %v2995 = vsub.f32 %v2993, %v2994
  %v2996 = vand.u32 %v2995, 4294901760
  %2997 = vmatmul.f32.gmra.mxu0 %v2996
  %v2998 = vpop.f32.mrf.mxu0
  %v2999 = vadd.f32 %v2953, %v2998
  %3000 = vdwg.mxu0
  %3001 = vmatpush.msra.mxu0 0.0
  %3002 = vmatpush.msra.mxu0 0.0
  %3003 = vmatpush.msra.mxu0 0.0
  %3004 = vmatpush.msra.mxu0 0.0
  %3005 = vmatpush.msra.mxu0 0.0
  %3006 = vmatpush.msra.mxu0 0.0
  %3007 = vmatpush.msra.mxu0 0.0
  %3008 = vmatpush.msra.mxu0 0.0
  %3009 = vmatpush.msra.mxu0 0.0
  %3010 = vmatpush.msra.mxu0 0.0
  %3011 = vmatpush.msra.mxu0 0.0
  %3012 = vmatpush.msra.mxu0 0.0
  %3013 = vmatpush.msra.mxu0 0.0
  %3014 = vmatpush.msra.mxu0 0.0
  %v3015 = vand.u32 %v2956, 4294901760
  %v3016 = vsub.f32 %v2956, %v3015
  %v3017 = vand.u32 %v3016, 4294901760
  %v3018 = vsub.f32 %v3016, %v3017
  %v3019 = vand.u32 %v3018, 4294901760
  %3020 = vmatpush.msra.mxu0 %v3019
  %v3021 = vand.u32 %v2948, 4294901760
  %v3022 = vsub.f32 %v2948, %v3021
  %v3023 = vand.u32 %v3022, 4294901760
  %v3024 = vsub.f32 %v3022, %v3023
  %v3025 = vand.u32 %v3024, 4294901760
  %3026 = vmatpush.msra.mxu0 %v3025
  %v3027 = vand.u32 %v2483, 4294901760
  %3028 = vmatmul.f32.gmra.mxu0 %v3027
  %v3029 = vpop.f32.mrf.mxu0
  %v3030 = vadd.f32 %v2983, %v3029
  %v3031 = vand.u32 %v2486, 4294901760
  %3032 = vmatmul.f32.gmra.mxu0 %v3031
  %v3033 = vpop.f32.mrf.mxu0
  %v3034 = vadd.f32 %v2991, %v3033
  %v3035 = vand.u32 %v2489, 4294901760
  %3036 = vmatmul.f32.gmra.mxu0 %v3035
  %v3037 = vpop.f32.mrf.mxu0
  %v3038 = vadd.f32 %v2999, %v3037
  %3039 = vdwg.mxu0
  %3040 = vmatpush.msra.mxu0 0.0
  %3041 = vmatpush.msra.mxu0 0.0
  %3042 = vmatpush.msra.mxu0 0.0
  %3043 = vmatpush.msra.mxu0 0.0
  %3044 = vmatpush.msra.mxu0 0.0
  %3045 = vmatpush.msra.mxu0 0.0
  %3046 = vmatpush.msra.mxu0 0.0
  %3047 = vmatpush.msra.mxu0 0.0
  %3048 = vmatpush.msra.mxu0 0.0
  %3049 = vmatpush.msra.mxu0 0.0
  %3050 = vmatpush.msra.mxu0 0.0
  %3051 = vmatpush.msra.mxu0 0.0
  %3052 = vmatpush.msra.mxu0 0.0
  %3053 = vmatpush.msra.mxu0 0.0
  %v3054 = vand.u32 %v2956, 4294901760
  %v3055 = vsub.f32 %v2956, %v3054
  %3056 = vmatpush.msra.mxu0 %v3055
  %v3057 = vand.u32 %v2948, 4294901760
  %v3058 = vsub.f32 %v2948, %v3057
  %3059 = vmatpush.msra.mxu0 %v3058
  %v3060 = vand.u32 %v2483, 4294901760
  %v3061 = vsub.f32 %v2483, %v3060
  %3062 = vmatmul.f32.gmra.mxu0 %v3061
  %v3063 = vpop.f32.mrf.mxu0
  %v3064 = vadd.f32 %v3030, %v3063
  %v3065 = vand.u32 %v2486, 4294901760
  %v3066 = vsub.f32 %v2486, %v3065
  %3067 = vmatmul.f32.gmra.mxu0 %v3066
  %v3068 = vpop.f32.mrf.mxu0
  %v3069 = vadd.f32 %v3034, %v3068
  %v3070 = vand.u32 %v2489, 4294901760
  %v3071 = vsub.f32 %v2489, %v3070
  %3072 = vmatmul.f32.gmra.mxu0 %v3071
  %v3073 = vpop.f32.mrf.mxu0
  %v3074 = vadd.f32 %v3038, %v3073
  %3075 = vdwg.mxu0
  %3076 = vmatpush.msra.mxu0 0.0
  %3077 = vmatpush.msra.mxu0 0.0
  %3078 = vmatpush.msra.mxu0 0.0
  %3079 = vmatpush.msra.mxu0 0.0
  %3080 = vmatpush.msra.mxu0 0.0
  %3081 = vmatpush.msra.mxu0 0.0
  %3082 = vmatpush.msra.mxu0 0.0
  %3083 = vmatpush.msra.mxu0 0.0
  %3084 = vmatpush.msra.mxu0 0.0
  %3085 = vmatpush.msra.mxu0 0.0
  %3086 = vmatpush.msra.mxu0 0.0
  %3087 = vmatpush.msra.mxu0 0.0
  %3088 = vmatpush.msra.mxu0 0.0
  %3089 = vmatpush.msra.mxu0 0.0
  %v3090 = vand.u32 %v2956, 4294901760
  %3091 = vmatpush.msra.mxu0 %v3090
  %v3092 = vand.u32 %v2948, 4294901760
  %3093 = vmatpush.msra.mxu0 %v3092
  %v3094 = vand.u32 %v2483, 4294901760
  %v3095 = vsub.f32 %v2483, %v3094
  %v3096 = vand.u32 %v3095, 4294901760
  %3097 = vmatmul.f32.gmra.mxu0 %v3096
  %v3098 = vpop.f32.mrf.mxu0
  %v3099 = vadd.f32 %v3064, %v3098
  %v3100 = vand.u32 %v2486, 4294901760
  %v3101 = vsub.f32 %v2486, %v3100
  %v3102 = vand.u32 %v3101, 4294901760
  %3103 = vmatmul.f32.gmra.mxu0 %v3102
  %v3104 = vpop.f32.mrf.mxu0
  %v3105 = vadd.f32 %v3069, %v3104
  %v3106 = vand.u32 %v2489, 4294901760
  %v3107 = vsub.f32 %v2489, %v3106
  %v3108 = vand.u32 %v3107, 4294901760
  %3109 = vmatmul.f32.gmra.mxu0 %v3108
  %v3110 = vpop.f32.mrf.mxu0
  %v3111 = vadd.f32 %v3074, %v3110
  %3112 = vdwg.mxu0
  %3113 = vmatpush.msra.mxu0 0.0
  %3114 = vmatpush.msra.mxu0 0.0
  %3115 = vmatpush.msra.mxu0 0.0
  %3116 = vmatpush.msra.mxu0 0.0
  %3117 = vmatpush.msra.mxu0 0.0
  %3118 = vmatpush.msra.mxu0 0.0
  %3119 = vmatpush.msra.mxu0 0.0
  %3120 = vmatpush.msra.mxu0 0.0
  %3121 = vmatpush.msra.mxu0 0.0
  %3122 = vmatpush.msra.mxu0 0.0
  %3123 = vmatpush.msra.mxu0 0.0
  %3124 = vmatpush.msra.mxu0 0.0
  %3125 = vmatpush.msra.mxu0 0.0
  %3126 = vmatpush.msra.mxu0 0.0
  %v3127 = vand.u32 %v2956, 4294901760
  %v3128 = vsub.f32 %v2956, %v3127
  %v3129 = vand.u32 %v3128, 4294901760
  %3130 = vmatpush.msra.mxu0 %v3129
  %v3131 = vand.u32 %v2948, 4294901760
  %v3132 = vsub.f32 %v2948, %v3131
  %v3133 = vand.u32 %v3132, 4294901760
  %3134 = vmatpush.msra.mxu0 %v3133
  %v3135 = vand.u32 %v2483, 4294901760
  %3136 = vmatmul.f32.gmra.mxu0 %v3135
  %v3137 = vpop.f32.mrf.mxu0
  %v3138 = vadd.f32 %v3099, %v3137
  %v3139 = vand.u32 %v2486, 4294901760
  %3140 = vmatmul.f32.gmra.mxu0 %v3139
  %v3141 = vpop.f32.mrf.mxu0
  %v3142 = vadd.f32 %v3105, %v3141
  %v3143 = vand.u32 %v2489, 4294901760
  %3144 = vmatmul.f32.gmra.mxu0 %v3143
  %v3145 = vpop.f32.mrf.mxu0
  %v3146 = vadd.f32 %v3111, %v3145
  %3147 = vdwg.mxu0
  %3148 = vmatpush.msra.mxu0 0.0
  %3149 = vmatpush.msra.mxu0 0.0
  %3150 = vmatpush.msra.mxu0 0.0
  %3151 = vmatpush.msra.mxu0 0.0
  %3152 = vmatpush.msra.mxu0 0.0
  %3153 = vmatpush.msra.mxu0 0.0
  %3154 = vmatpush.msra.mxu0 0.0
  %3155 = vmatpush.msra.mxu0 0.0
  %3156 = vmatpush.msra.mxu0 0.0
  %3157 = vmatpush.msra.mxu0 0.0
  %3158 = vmatpush.msra.mxu0 0.0
  %3159 = vmatpush.msra.mxu0 0.0
  %3160 = vmatpush.msra.mxu0 0.0
  %3161 = vmatpush.msra.mxu0 0.0
  %v3162 = vand.u32 %v2956, 4294901760
  %3163 = vmatpush.msra.mxu0 %v3162
  %v3164 = vand.u32 %v2948, 4294901760
  %3165 = vmatpush.msra.mxu0 %v3164
  %v3166 = vand.u32 %v2483, 4294901760
  %3167 = vmatmul.f32.gmra.mxu0 %v3166
  %v3168 = vpop.f32.mrf.mxu0
  %v3169 = vadd.f32 %v3138, %v3168
  %v3170 = vand.u32 %v2486, 4294901760
  %3171 = vmatmul.f32.gmra.mxu0 %v3170
  %v3172 = vpop.f32.mrf.mxu0
  %v3173 = vadd.f32 %v3142, %v3172
  %v3174 = vand.u32 %v2489, 4294901760
  %3175 = vmatmul.f32.gmra.mxu0 %v3174
  %v3176 = vpop.f32.mrf.mxu0
  %v3177 = vadd.f32 %v3146, %v3176
  %3178 = vdwg.mxu0
  %v3180 = vsel %vm322, %v2705, 0
  %v3183 = vsel %vm322, %v2709, 0
  %v3186 = vsel %vm322, %v2713, 0
  %v3189 = vsel %vm322, %v2937, 0
  %v3192 = vsel %vm322, %v2941, 0
  %v3195 = vsel %vm322, %v2945, 0
  %3197 = vmatpush.xpose.msra.mxu0 0.0
  %3198 = vmatpush.xpose.msra.mxu0 0.0
  %3199 = vmatpush.xpose.msra.mxu0 0.0
  %3200 = vmatpush.xpose.msra.mxu0 0.0
  %3201 = vmatpush.xpose.msra.mxu0 0.0
  %3202 = vmatpush.xpose.msra.mxu0 0.0
  %3203 = vmatpush.xpose.msra.mxu0 0.0
  %3204 = vmatpush.xpose.msra.mxu0 0.0
  %3205 = vmatpush.xpose.msra.mxu0 0.0
  %3206 = vmatpush.xpose.msra.mxu0 0.0
  %3207 = vmatpush.xpose.msra.mxu0 0.0
  %3208 = vmatpush.xpose.msra.mxu0 0.0
  %3209 = vmatpush.xpose.msra.mxu0 0.0
  %v3210 = vand.u32 %v3195, 4294901760
  %3211 = vmatpush.xpose.msra.mxu0 %v3210
  %v3212 = vand.u32 %v3192, 4294901760
  %3213 = vmatpush.xpose.msra.mxu0 %v3212
  %v3214 = vand.u32 %v3189, 4294901760
  %3215 = vmatpush.xpose.msra.mxu0 %v3214
  %v3216 = vand.u32 %v3180, 4294901760
  %v3217 = vsub.f32 %v3180, %v3216
  %v3218 = vand.u32 %v3217, 4294901760
  %v3219 = vsub.f32 %v3217, %v3218
  %v3220 = vand.u32 %v3219, 4294901760
  %3221 = vmatmul.f32.gmra.mxu0 %v3220
  %v3222 = vpop.f32.mrf.mxu0
  %v3223 = vadd.f32 %v319, %v3222
  %v3224 = vand.u32 %v3183, 4294901760
  %v3225 = vsub.f32 %v3183, %v3224
  %v3226 = vand.u32 %v3225, 4294901760
  %v3227 = vsub.f32 %v3225, %v3226
  %v3228 = vand.u32 %v3227, 4294901760
  %3229 = vmatmul.f32.gmra.mxu0 %v3228
  %v3230 = vpop.f32.mrf.mxu0
  %v3231 = vadd.f32 %v320, %v3230
  %v3232 = vand.u32 %v3186, 4294901760
  %v3233 = vsub.f32 %v3186, %v3232
  %v3234 = vand.u32 %v3233, 4294901760
  %v3235 = vsub.f32 %v3233, %v3234
  %v3236 = vand.u32 %v3235, 4294901760
  %3237 = vmatmul.f32.gmra.mxu0 %v3236
  %v3238 = vpop.f32.mrf.mxu0
  %v3239 = vadd.f32 %v321, %v3238
  %3240 = vdwg.mxu0
  %3241 = vmatpush.xpose.msra.mxu0 0.0
  %3242 = vmatpush.xpose.msra.mxu0 0.0
  %3243 = vmatpush.xpose.msra.mxu0 0.0
  %3244 = vmatpush.xpose.msra.mxu0 0.0
  %3245 = vmatpush.xpose.msra.mxu0 0.0
  %3246 = vmatpush.xpose.msra.mxu0 0.0
  %3247 = vmatpush.xpose.msra.mxu0 0.0
  %3248 = vmatpush.xpose.msra.mxu0 0.0
  %3249 = vmatpush.xpose.msra.mxu0 0.0
  %3250 = vmatpush.xpose.msra.mxu0 0.0
  %3251 = vmatpush.xpose.msra.mxu0 0.0
  %3252 = vmatpush.xpose.msra.mxu0 0.0
  %3253 = vmatpush.xpose.msra.mxu0 0.0
  %v3254 = vand.u32 %v3195, 4294901760
  %v3255 = vsub.f32 %v3195, %v3254
  %v3256 = vand.u32 %v3255, 4294901760
  %v3257 = vsub.f32 %v3255, %v3256
  %v3258 = vand.u32 %v3257, 4294901760
  %3259 = vmatpush.xpose.msra.mxu0 %v3258
  %v3260 = vand.u32 %v3192, 4294901760
  %v3261 = vsub.f32 %v3192, %v3260
  %v3262 = vand.u32 %v3261, 4294901760
  %v3263 = vsub.f32 %v3261, %v3262
  %v3264 = vand.u32 %v3263, 4294901760
  %3265 = vmatpush.xpose.msra.mxu0 %v3264
  %v3266 = vand.u32 %v3189, 4294901760
  %v3267 = vsub.f32 %v3189, %v3266
  %v3268 = vand.u32 %v3267, 4294901760
  %v3269 = vsub.f32 %v3267, %v3268
  %v3270 = vand.u32 %v3269, 4294901760
  %3271 = vmatpush.xpose.msra.mxu0 %v3270
  %v3272 = vand.u32 %v3180, 4294901760
  %3273 = vmatmul.f32.gmra.mxu0 %v3272
  %v3274 = vpop.f32.mrf.mxu0
  %v3275 = vadd.f32 %v3223, %v3274
  %v3276 = vand.u32 %v3183, 4294901760
  %3277 = vmatmul.f32.gmra.mxu0 %v3276
  %v3278 = vpop.f32.mrf.mxu0
  %v3279 = vadd.f32 %v3231, %v3278
  %v3280 = vand.u32 %v3186, 4294901760
  %3281 = vmatmul.f32.gmra.mxu0 %v3280
  %v3282 = vpop.f32.mrf.mxu0
  %v3283 = vadd.f32 %v3239, %v3282
  %3284 = vdwg.mxu0
  %3285 = vmatpush.xpose.msra.mxu0 0.0
  %3286 = vmatpush.xpose.msra.mxu0 0.0
  %3287 = vmatpush.xpose.msra.mxu0 0.0
  %3288 = vmatpush.xpose.msra.mxu0 0.0
  %3289 = vmatpush.xpose.msra.mxu0 0.0
  %3290 = vmatpush.xpose.msra.mxu0 0.0
  %3291 = vmatpush.xpose.msra.mxu0 0.0
  %3292 = vmatpush.xpose.msra.mxu0 0.0
  %3293 = vmatpush.xpose.msra.mxu0 0.0
  %3294 = vmatpush.xpose.msra.mxu0 0.0
  %3295 = vmatpush.xpose.msra.mxu0 0.0
  %3296 = vmatpush.xpose.msra.mxu0 0.0
  %3297 = vmatpush.xpose.msra.mxu0 0.0
  %v3298 = vand.u32 %v3195, 4294901760
  %v3299 = vsub.f32 %v3195, %v3298
  %3300 = vmatpush.xpose.msra.mxu0 %v3299
  %v3301 = vand.u32 %v3192, 4294901760
  %v3302 = vsub.f32 %v3192, %v3301
  %3303 = vmatpush.xpose.msra.mxu0 %v3302
  %v3304 = vand.u32 %v3189, 4294901760
  %v3305 = vsub.f32 %v3189, %v3304
  %3306 = vmatpush.xpose.msra.mxu0 %v3305
  %v3307 = vand.u32 %v3180, 4294901760
  %v3308 = vsub.f32 %v3180, %v3307
  %3309 = vmatmul.f32.gmra.mxu0 %v3308
  %v3310 = vpop.f32.mrf.mxu0
  %v3311 = vadd.f32 %v3275, %v3310
  %v3312 = vand.u32 %v3183, 4294901760
  %v3313 = vsub.f32 %v3183, %v3312
  %3314 = vmatmul.f32.gmra.mxu0 %v3313
  %v3315 = vpop.f32.mrf.mxu0
  %v3316 = vadd.f32 %v3279, %v3315
  %v3317 = vand.u32 %v3186, 4294901760
  %v3318 = vsub.f32 %v3186, %v3317
  %3319 = vmatmul.f32.gmra.mxu0 %v3318
  %v3320 = vpop.f32.mrf.mxu0
  %v3321 = vadd.f32 %v3283, %v3320
  %3322 = vdwg.mxu0
  %3323 = vmatpush.xpose.msra.mxu0 0.0
  %3324 = vmatpush.xpose.msra.mxu0 0.0
  %3325 = vmatpush.xpose.msra.mxu0 0.0
  %3326 = vmatpush.xpose.msra.mxu0 0.0
  %3327 = vmatpush.xpose.msra.mxu0 0.0
  %3328 = vmatpush.xpose.msra.mxu0 0.0
  %3329 = vmatpush.xpose.msra.mxu0 0.0
  %3330 = vmatpush.xpose.msra.mxu0 0.0
  %3331 = vmatpush.xpose.msra.mxu0 0.0
  %3332 = vmatpush.xpose.msra.mxu0 0.0
  %3333 = vmatpush.xpose.msra.mxu0 0.0
  %3334 = vmatpush.xpose.msra.mxu0 0.0
  %3335 = vmatpush.xpose.msra.mxu0 0.0
  %v3336 = vand.u32 %v3195, 4294901760
  %3337 = vmatpush.xpose.msra.mxu0 %v3336
  %v3338 = vand.u32 %v3192, 4294901760
  %3339 = vmatpush.xpose.msra.mxu0 %v3338
  %v3340 = vand.u32 %v3189, 4294901760
  %3341 = vmatpush.xpose.msra.mxu0 %v3340
  %v3342 = vand.u32 %v3180, 4294901760
  %v3343 = vsub.f32 %v3180, %v3342
  %v3344 = vand.u32 %v3343, 4294901760
  %3345 = vmatmul.f32.gmra.mxu0 %v3344
  %v3346 = vpop.f32.mrf.mxu0
  %v3347 = vadd.f32 %v3311, %v3346
  %v3348 = vand.u32 %v3183, 4294901760
  %v3349 = vsub.f32 %v3183, %v3348
  %v3350 = vand.u32 %v3349, 4294901760
  %3351 = vmatmul.f32.gmra.mxu0 %v3350
  %v3352 = vpop.f32.mrf.mxu0
  %v3353 = vadd.f32 %v3316, %v3352
  %v3354 = vand.u32 %v3186, 4294901760
  %v3355 = vsub.f32 %v3186, %v3354
  %v3356 = vand.u32 %v3355, 4294901760
  %3357 = vmatmul.f32.gmra.mxu0 %v3356
  %v3358 = vpop.f32.mrf.mxu0
  %v3359 = vadd.f32 %v3321, %v3358
  %3360 = vdwg.mxu0
  %3361 = vmatpush.xpose.msra.mxu0 0.0
  %3362 = vmatpush.xpose.msra.mxu0 0.0
  %3363 = vmatpush.xpose.msra.mxu0 0.0
  %3364 = vmatpush.xpose.msra.mxu0 0.0
  %3365 = vmatpush.xpose.msra.mxu0 0.0
  %3366 = vmatpush.xpose.msra.mxu0 0.0
  %3367 = vmatpush.xpose.msra.mxu0 0.0
  %3368 = vmatpush.xpose.msra.mxu0 0.0
  %3369 = vmatpush.xpose.msra.mxu0 0.0
  %3370 = vmatpush.xpose.msra.mxu0 0.0
  %3371 = vmatpush.xpose.msra.mxu0 0.0
  %3372 = vmatpush.xpose.msra.mxu0 0.0
  %3373 = vmatpush.xpose.msra.mxu0 0.0
  %v3374 = vand.u32 %v3195, 4294901760
  %v3375 = vsub.f32 %v3195, %v3374
  %v3376 = vand.u32 %v3375, 4294901760
  %3377 = vmatpush.xpose.msra.mxu0 %v3376
  %v3378 = vand.u32 %v3192, 4294901760
  %v3379 = vsub.f32 %v3192, %v3378
  %v3380 = vand.u32 %v3379, 4294901760
  %3381 = vmatpush.xpose.msra.mxu0 %v3380
  %v3382 = vand.u32 %v3189, 4294901760
  %v3383 = vsub.f32 %v3189, %v3382
  %v3384 = vand.u32 %v3383, 4294901760
  %3385 = vmatpush.xpose.msra.mxu0 %v3384
  %v3386 = vand.u32 %v3180, 4294901760
  %3387 = vmatmul.f32.gmra.mxu0 %v3386
  %v3388 = vpop.f32.mrf.mxu0
  %v3389 = vadd.f32 %v3347, %v3388
  %v3390 = vand.u32 %v3183, 4294901760
  %3391 = vmatmul.f32.gmra.mxu0 %v3390
  %v3392 = vpop.f32.mrf.mxu0
  %v3393 = vadd.f32 %v3353, %v3392
  %v3394 = vand.u32 %v3186, 4294901760
  %3395 = vmatmul.f32.gmra.mxu0 %v3394
  %v3396 = vpop.f32.mrf.mxu0
  %v3397 = vadd.f32 %v3359, %v3396
  %3398 = vdwg.mxu0
  %3399 = vmatpush.xpose.msra.mxu0 0.0
  %3400 = vmatpush.xpose.msra.mxu0 0.0
  %3401 = vmatpush.xpose.msra.mxu0 0.0
  %3402 = vmatpush.xpose.msra.mxu0 0.0
  %3403 = vmatpush.xpose.msra.mxu0 0.0
  %3404 = vmatpush.xpose.msra.mxu0 0.0
  %3405 = vmatpush.xpose.msra.mxu0 0.0
  %3406 = vmatpush.xpose.msra.mxu0 0.0
  %3407 = vmatpush.xpose.msra.mxu0 0.0
  %3408 = vmatpush.xpose.msra.mxu0 0.0
  %3409 = vmatpush.xpose.msra.mxu0 0.0
  %3410 = vmatpush.xpose.msra.mxu0 0.0
  %3411 = vmatpush.xpose.msra.mxu0 0.0
  %v3412 = vand.u32 %v3195, 4294901760
  %3413 = vmatpush.xpose.msra.mxu0 %v3412
  %v3414 = vand.u32 %v3192, 4294901760
  %3415 = vmatpush.xpose.msra.mxu0 %v3414
  %v3416 = vand.u32 %v3189, 4294901760
  %3417 = vmatpush.xpose.msra.mxu0 %v3416
  %v3418 = vand.u32 %v3180, 4294901760
  %3419 = vmatmul.f32.gmra.mxu0 %v3418
  %v3420 = vpop.f32.mrf.mxu0
  %v3421 = vadd.f32 %v3389, %v3420
  %v3422 = vand.u32 %v3183, 4294901760
  %3423 = vmatmul.f32.gmra.mxu0 %v3422
  %v3424 = vpop.f32.mrf.mxu0
  %v3425 = vadd.f32 %v3393, %v3424
  %v3426 = vand.u32 %v3186, 4294901760
  %3427 = vmatmul.f32.gmra.mxu0 %v3426
  %v3428 = vpop.f32.mrf.mxu0
  %v3429 = vadd.f32 %v3397, %v3428
  %3430 = vdwg.mxu0
  %v3431 = vsel %vm1348, %v3421, -inf
  %3432 = vmax.xlane.f32.xlu0 %v3431
  %v3433 = vpop.xlane.xlu0 %3432
  %v3434 = vsel %vm1348, %v3425, -inf
  %3435 = vmax.xlane.f32.xlu0 %v3434
  %v3436 = vpop.xlane.xlu0 %3435
  %v3437 = vsel %vm1348, %v3429, -inf
  %3438 = vmax.xlane.f32.xlu0 %v3437
  %v3439 = vpop.xlane.xlu0 %3438
  %v3440 = vsub.f32 %v3421, %v3433
  %v3441 = vsub.f32 %v3425, %v3436
  %v3442 = vsub.f32 %v3429, %v3439
  %v3443 = vmul.f32 %v3440, 1.442695
  %v3444 = vpow.pop %v3443
  %v3445 = vmul.f32 %v3441, 1.442695
  %v3446 = vpow.pop %v3445
  %v3447 = vmul.f32 %v3442, 1.442695
  %v3448 = vpow.pop %v3447
  %v3449 = vsel %vm1348, %v3444, 0.0
  %3450 = vadd.xlane.f32.xlu0 %v3449
  %v3451 = vpop.xlane.xlu0 %3450
  %v3452 = vsel %vm1348, %v3446, 0.0
  %3453 = vadd.xlane.f32.xlu0 %v3452
  %v3454 = vpop.xlane.xlu0 %3453
  %v3455 = vsel %vm1348, %v3448, 0.0
  %3456 = vadd.xlane.f32.xlu0 %v3455
  %v3457 = vpop.xlane.xlu0 %3456
  %v3458 = vrcp.pop %v3451
  %v3459 = vmul.f32 %v3451, %v3458
  %v3460 = vsub.f32 1.0, %v3459
  %v3461 = vmul.f32 %v3458, %v3460
  %v3462 = vadd.f32 %v3458, %v3461
  %vm3463 = vweird.f32 %v3451
  %vm3464 = vweird.f32 %v3458
  %vm3465 = vmor %vm3463, %vm3464
  %v3466 = vsel %vm3465, %v3458, %v3462
  %v3467 = vand.u32 2147483647, %v3451
  %vm3468 = vcmp.eq.f32.partialorder %v3467, 8.507059e+37
  %v3469 = vand.u32 %v3451, 2147483648
  %v3470 = vor.u32 1.1754944e-38, %v3469
  %v3471 = vsel %vm3468, %v3470, %v3466
  %v3472 = vmul.f32 1.0, %v3471
  %v3473 = vrcp.pop %v3454
  %v3474 = vmul.f32 %v3454, %v3473
  %v3475 = vsub.f32 1.0, %v3474
  %v3476 = vmul.f32 %v3473, %v3475
  %v3477 = vadd.f32 %v3473, %v3476
  %vm3478 = vweird.f32 %v3454
  %vm3479 = vweird.f32 %v3473
  %vm3480 = vmor %vm3478, %vm3479
  %v3481 = vsel %vm3480, %v3473, %v3477
  %v3482 = vand.u32 2147483647, %v3454
  %vm3483 = vcmp.eq.f32.partialorder %v3482, 8.507059e+37
  %v3484 = vand.u32 %v3454, 2147483648
  %v3485 = vor.u32 1.1754944e-38, %v3484
  %v3486 = vsel %vm3483, %v3485, %v3481
  %v3487 = vmul.f32 1.0, %v3486
  %v3488 = vrcp.pop %v3457
  %v3489 = vmul.f32 %v3457, %v3488
  %v3490 = vsub.f32 1.0, %v3489
  %v3491 = vmul.f32 %v3488, %v3490
  %v3492 = vadd.f32 %v3488, %v3491
  %vm3493 = vweird.f32 %v3457
  %vm3494 = vweird.f32 %v3488
  %vm3495 = vmor %vm3493, %vm3494
  %v3496 = vsel %vm3495, %v3488, %v3492
  %v3497 = vand.u32 2147483647, %v3457
  %vm3498 = vcmp.eq.f32.partialorder %v3497, 8.507059e+37
  %v3499 = vand.u32 %v3457, 2147483648
  %v3500 = vor.u32 1.1754944e-38, %v3499
  %v3501 = vsel %vm3498, %v3500, %v3496
  %v3502 = vmul.f32 1.0, %v3501
  %v3503 = vmul.f32 %v3444, %v3472
  %v3504 = vmul.f32 %v3446, %v3487
  %v3505 = vmul.f32 %v3448, %v3502
  %s3506 = scalar_lea.vmem %s10, 1
  %v3507 = vld [vmem:[%s3506] sm:$0x1]
  %v3509 = vperm.slane %v3507, 0
  %v3512 = vsel %vm1348, %v3503, 0
  %v3515 = vsel %vm1348, %v3504, 0
  %v3518 = vsel %vm1348, %v3505, 0
  %3520 = vmatpush.msra.mxu0 0.0
  %3521 = vmatpush.msra.mxu0 0.0
  %3522 = vmatpush.msra.mxu0 0.0
  %3523 = vmatpush.msra.mxu0 0.0
  %3524 = vmatpush.msra.mxu0 0.0
  %3525 = vmatpush.msra.mxu0 0.0
  %3526 = vmatpush.msra.mxu0 0.0
  %3527 = vmatpush.msra.mxu0 0.0
  %3528 = vmatpush.msra.mxu0 0.0
  %3529 = vmatpush.msra.mxu0 0.0
  %3530 = vmatpush.msra.mxu0 0.0
  %3531 = vmatpush.msra.mxu0 0.0
  %3532 = vmatpush.msra.mxu0 0.0
  %v3533 = vand.u32 %v3177, 4294901760
  %3534 = vmatpush.msra.mxu0 %v3533
  %v3535 = vand.u32 %v3173, 4294901760
  %3536 = vmatpush.msra.mxu0 %v3535
  %v3537 = vand.u32 %v3169, 4294901760
  %3538 = vmatpush.msra.mxu0 %v3537
  %v3539 = vand.u32 %v3512, 4294901760
  %v3540 = vsub.f32 %v3512, %v3539
  %v3541 = vand.u32 %v3540, 4294901760
  %v3542 = vsub.f32 %v3540, %v3541
  %v3543 = vand.u32 %v3542, 4294901760
  %3544 = vmatmul.f32.gmra.mxu0 %v3543
  %v3545 = vpop.f32.mrf.mxu0
  %v3546 = vadd.f32 %v3509, %v3545
  %v3547 = vand.u32 %v3515, 4294901760
  %v3548 = vsub.f32 %v3515, %v3547
  %v3549 = vand.u32 %v3548, 4294901760
  %v3550 = vsub.f32 %v3548, %v3549
  %v3551 = vand.u32 %v3550, 4294901760
  %3552 = vmatmul.f32.gmra.mxu0 %v3551
  %v3553 = vpop.f32.mrf.mxu0
  %v3554 = vadd.f32 %v3509, %v3553
  %v3555 = vand.u32 %v3518, 4294901760
  %v3556 = vsub.f32 %v3518, %v3555
  %v3557 = vand.u32 %v3556, 4294901760
  %v3558 = vsub.f32 %v3556, %v3557
  %v3559 = vand.u32 %v3558, 4294901760
  %3560 = vmatmul.f32.gmra.mxu0 %v3559
  %v3561 = vpop.f32.mrf.mxu0
  %v3562 = vadd.f32 %v3509, %v3561
  %3563 = vdwg.mxu0
  %3564 = vmatpush.msra.mxu0 0.0
  %3565 = vmatpush.msra.mxu0 0.0
  %3566 = vmatpush.msra.mxu0 0.0
  %3567 = vmatpush.msra.mxu0 0.0
  %3568 = vmatpush.msra.mxu0 0.0
  %3569 = vmatpush.msra.mxu0 0.0
  %3570 = vmatpush.msra.mxu0 0.0
  %3571 = vmatpush.msra.mxu0 0.0
  %3572 = vmatpush.msra.mxu0 0.0
  %3573 = vmatpush.msra.mxu0 0.0
  %3574 = vmatpush.msra.mxu0 0.0
  %3575 = vmatpush.msra.mxu0 0.0
  %3576 = vmatpush.msra.mxu0 0.0
  %v3577 = vand.u32 %v3177, 4294901760
  %v3578 = vsub.f32 %v3177, %v3577
  %v3579 = vand.u32 %v3578, 4294901760
  %v3580 = vsub.f32 %v3578, %v3579
  %v3581 = vand.u32 %v3580, 4294901760
  %3582 = vmatpush.msra.mxu0 %v3581
  %v3583 = vand.u32 %v3173, 4294901760
  %v3584 = vsub.f32 %v3173, %v3583
  %v3585 = vand.u32 %v3584, 4294901760
  %v3586 = vsub.f32 %v3584, %v3585
  %v3587 = vand.u32 %v3586, 4294901760
  %3588 = vmatpush.msra.mxu0 %v3587
  %v3589 = vand.u32 %v3169, 4294901760
  %v3590 = vsub.f32 %v3169, %v3589
  %v3591 = vand.u32 %v3590, 4294901760
  %v3592 = vsub.f32 %v3590, %v3591
  %v3593 = vand.u32 %v3592, 4294901760
  %3594 = vmatpush.msra.mxu0 %v3593
  %v3595 = vand.u32 %v3512, 4294901760
  %3596 = vmatmul.f32.gmra.mxu0 %v3595
  %v3597 = vpop.f32.mrf.mxu0
  %v3598 = vadd.f32 %v3546, %v3597
  %v3599 = vand.u32 %v3515, 4294901760
  %3600 = vmatmul.f32.gmra.mxu0 %v3599
  %v3601 = vpop.f32.mrf.mxu0
  %v3602 = vadd.f32 %v3554, %v3601
  %v3603 = vand.u32 %v3518, 4294901760
  %3604 = vmatmul.f32.gmra.mxu0 %v3603
  %v3605 = vpop.f32.mrf.mxu0
  %v3606 = vadd.f32 %v3562, %v3605
  %3607 = vdwg.mxu0
  %3608 = vmatpush.msra.mxu0 0.0
  %3609 = vmatpush.msra.mxu0 0.0
  %3610 = vmatpush.msra.mxu0 0.0
  %3611 = vmatpush.msra.mxu0 0.0
  %3612 = vmatpush.msra.mxu0 0.0
  %3613 = vmatpush.msra.mxu0 0.0
  %3614 = vmatpush.msra.mxu0 0.0
  %3615 = vmatpush.msra.mxu0 0.0
  %3616 = vmatpush.msra.mxu0 0.0
  %3617 = vmatpush.msra.mxu0 0.0
  %3618 = vmatpush.msra.mxu0 0.0
  %3619 = vmatpush.msra.mxu0 0.0
  %3620 = vmatpush.msra.mxu0 0.0
  %v3621 = vand.u32 %v3177, 4294901760
  %v3622 = vsub.f32 %v3177, %v3621
  %3623 = vmatpush.msra.mxu0 %v3622
  %v3624 = vand.u32 %v3173, 4294901760
  %v3625 = vsub.f32 %v3173, %v3624
  %3626 = vmatpush.msra.mxu0 %v3625
  %v3627 = vand.u32 %v3169, 4294901760
  %v3628 = vsub.f32 %v3169, %v3627
  %3629 = vmatpush.msra.mxu0 %v3628
  %v3630 = vand.u32 %v3512, 4294901760
  %v3631 = vsub.f32 %v3512, %v3630
  %3632 = vmatmul.f32.gmra.mxu0 %v3631
  %v3633 = vpop.f32.mrf.mxu0
  %v3634 = vadd.f32 %v3598, %v3633
  %v3635 = vand.u32 %v3515, 4294901760
  %v3636 = vsub.f32 %v3515, %v3635
  %3637 = vmatmul.f32.gmra.mxu0 %v3636
  %v3638 = vpop.f32.mrf.mxu0
  %v3639 = vadd.f32 %v3602, %v3638
  %v3640 = vand.u32 %v3518, 4294901760
  %v3641 = vsub.f32 %v3518, %v3640
  %3642 = vmatmul.f32.gmra.mxu0 %v3641
  %v3643 = vpop.f32.mrf.mxu0
  %v3644 = vadd.f32 %v3606, %v3643
  %3645 = vdwg.mxu0
  %3646 = vmatpush.msra.mxu0 0.0
  %3647 = vmatpush.msra.mxu0 0.0
  %3648 = vmatpush.msra.mxu0 0.0
  %3649 = vmatpush.msra.mxu0 0.0
  %3650 = vmatpush.msra.mxu0 0.0
  %3651 = vmatpush.msra.mxu0 0.0
  %3652 = vmatpush.msra.mxu0 0.0
  %3653 = vmatpush.msra.mxu0 0.0
  %3654 = vmatpush.msra.mxu0 0.0
  %3655 = vmatpush.msra.mxu0 0.0
  %3656 = vmatpush.msra.mxu0 0.0
  %3657 = vmatpush.msra.mxu0 0.0
  %3658 = vmatpush.msra.mxu0 0.0
  %v3659 = vand.u32 %v3177, 4294901760
  %3660 = vmatpush.msra.mxu0 %v3659
  %v3661 = vand.u32 %v3173, 4294901760
  %3662 = vmatpush.msra.mxu0 %v3661
  %v3663 = vand.u32 %v3169, 4294901760
  %3664 = vmatpush.msra.mxu0 %v3663
  %v3665 = vand.u32 %v3512, 4294901760
  %v3666 = vsub.f32 %v3512, %v3665
  %v3667 = vand.u32 %v3666, 4294901760
  %3668 = vmatmul.f32.gmra.mxu0 %v3667
  %v3669 = vpop.f32.mrf.mxu0
  %v3670 = vadd.f32 %v3634, %v3669
  %v3671 = vand.u32 %v3515, 4294901760
  %v3672 = vsub.f32 %v3515, %v3671
  %v3673 = vand.u32 %v3672, 4294901760
  %3674 = vmatmul.f32.gmra.mxu0 %v3673
  %v3675 = vpop.f32.mrf.mxu0
  %v3676 = vadd.f32 %v3639, %v3675
  %v3677 = vand.u32 %v3518, 4294901760
  %v3678 = vsub.f32 %v3518, %v3677
  %v3679 = vand.u32 %v3678, 4294901760
  %3680 = vmatmul.f32.gmra.mxu0 %v3679
  %v3681 = vpop.f32.mrf.mxu0
  %v3682 = vadd.f32 %v3644, %v3681
  %3683 = vdwg.mxu0
  %3684 = vmatpush.msra.mxu0 0.0
  %3685 = vmatpush.msra.mxu0 0.0
  %3686 = vmatpush.msra.mxu0 0.0
  %3687 = vmatpush.msra.mxu0 0.0
  %3688 = vmatpush.msra.mxu0 0.0
  %3689 = vmatpush.msra.mxu0 0.0
  %3690 = vmatpush.msra.mxu0 0.0
  %3691 = vmatpush.msra.mxu0 0.0
  %3692 = vmatpush.msra.mxu0 0.0
  %3693 = vmatpush.msra.mxu0 0.0
  %3694 = vmatpush.msra.mxu0 0.0
  %3695 = vmatpush.msra.mxu0 0.0
  %3696 = vmatpush.msra.mxu0 0.0
  %v3697 = vand.u32 %v3177, 4294901760
  %v3698 = vsub.f32 %v3177, %v3697
  %v3699 = vand.u32 %v3698, 4294901760
  %3700 = vmatpush.msra.mxu0 %v3699
  %v3701 = vand.u32 %v3173, 4294901760
  %v3702 = vsub.f32 %v3173, %v3701
  %v3703 = vand.u32 %v3702, 4294901760
  %3704 = vmatpush.msra.mxu0 %v3703
  %v3705 = vand.u32 %v3169, 4294901760
  %v3706 = vsub.f32 %v3169, %v3705
  %v3707 = vand.u32 %v3706, 4294901760
  %3708 = vmatpush.msra.mxu0 %v3707
  %v3709 = vand.u32 %v3512, 4294901760
  %3710 = vmatmul.f32.gmra.mxu0 %v3709
  %v3711 = vpop.f32.mrf.mxu0
  %v3712 = vadd.f32 %v3670, %v3711
  %v3713 = vand.u32 %v3515, 4294901760
  %3714 = vmatmul.f32.gmra.mxu0 %v3713
  %v3715 = vpop.f32.mrf.mxu0
  %v3716 = vadd.f32 %v3676, %v3715
  %v3717 = vand.u32 %v3518, 4294901760
  %3718 = vmatmul.f32.gmra.mxu0 %v3717
  %v3719 = vpop.f32.mrf.mxu0
  %v3720 = vadd.f32 %v3682, %v3719
  %3721 = vdwg.mxu0
  %3722 = vmatpush.msra.mxu0 0.0
  %3723 = vmatpush.msra.mxu0 0.0
  %3724 = vmatpush.msra.mxu0 0.0
  %3725 = vmatpush.msra.mxu0 0.0
  %3726 = vmatpush.msra.mxu0 0.0
  %3727 = vmatpush.msra.mxu0 0.0
  %3728 = vmatpush.msra.mxu0 0.0
  %3729 = vmatpush.msra.mxu0 0.0
  %3730 = vmatpush.msra.mxu0 0.0
  %3731 = vmatpush.msra.mxu0 0.0
  %3732 = vmatpush.msra.mxu0 0.0
  %3733 = vmatpush.msra.mxu0 0.0
  %3734 = vmatpush.msra.mxu0 0.0
  %v3735 = vand.u32 %v3177, 4294901760
  %3736 = vmatpush.msra.mxu0 %v3735
  %v3737 = vand.u32 %v3173, 4294901760
  %3738 = vmatpush.msra.mxu0 %v3737
  %v3739 = vand.u32 %v3169, 4294901760
  %3740 = vmatpush.msra.mxu0 %v3739
  %v3741 = vand.u32 %v3512, 4294901760
  %3742 = vmatmul.f32.gmra.mxu0 %v3741
  %v3743 = vpop.f32.mrf.mxu0
  %v3744 = vadd.f32 %v3712, %v3743
  %v3745 = vand.u32 %v3515, 4294901760
  %3746 = vmatmul.f32.gmra.mxu0 %v3745
  %v3747 = vpop.f32.mrf.mxu0
  %v3748 = vadd.f32 %v3716, %v3747
  %v3749 = vand.u32 %v3518, 4294901760
  %3750 = vmatmul.f32.gmra.mxu0 %v3749
  %v3751 = vpop.f32.mrf.mxu0
  %v3752 = vadd.f32 %v3720, %v3751
  %3753 = vdwg.mxu0
  %v3754 = vadd.f32 %v2405, %v3744
  %v3755 = vadd.f32 %v2406, %v3748
  %v3756 = vadd.f32 %v2407, %v3752
  %v3757 = vsel %vm322, %v3754, 0.0
  %3758 = vadd.xlane.f32.xlu0 %v3757
  %v3759 = vpop.xlane.xlu0 %3758
  %v3760 = vsel %vm322, %v3755, 0.0
  %3761 = vadd.xlane.f32.xlu0 %v3760
  %v3762 = vpop.xlane.xlu0 %3761
  %v3763 = vsel %vm322, %v3756, 0.0
  %3764 = vadd.xlane.f32.xlu0 %v3763
  %v3765 = vpop.xlane.xlu0 %3764
  %v3766 = vmul.f32 %v3759, %v338
  %v3767 = vmul.f32 %v3762, %v338
  %v3768 = vmul.f32 %v3765, %v338
  %v3769 = vsub.f32 %v3754, %v3766
  %v3770 = vsub.f32 %v3755, %v3767
  %v3771 = vsub.f32 %v3756, %v3768
  %v3772 = vmul.f32 %v3769, %v3769
  %v3773 = vmul.f32 %v3770, %v3770
  %v3774 = vmul.f32 %v3771, %v3771
  %v3775 = vsel %vm322, %v3772, 0.0
  %3776 = vadd.xlane.f32.xlu0 %v3775
  %v3777 = vpop.xlane.xlu0 %3776
  %v3778 = vsel %vm322, %v3773, 0.0
  %3779 = vadd.xlane.f32.xlu0 %v3778
  %v3780 = vpop.xlane.xlu0 %3779
  %v3781 = vsel %vm322, %v3774, 0.0
  %3782 = vadd.xlane.f32.xlu0 %v3781
  %v3783 = vpop.xlane.xlu0 %3782
  %v3784 = vmul.f32 %v3777, %v338
  %v3785 = vmul.f32 %v3780, %v338
  %v3786 = vmul.f32 %v3783, %v338
  %v3787 = vadd.f32 %v3784, 1e-05
  %v3788 = vadd.f32 %v3785, 1e-05
  %v3789 = vadd.f32 %v3786, 1e-05
  %v3790 = vrsqrt.pop %v3787
  %v3791 = vmul.f32 %v3790, %v3787
  %v3792 = vmul.f32 %v3791, %v3790
  %v3793 = vmul.f32 0.5, %v3792
  %v3794 = vsub.f32 1.5, %v3793
  %v3795 = vmul.f32 %v3790, %v3794
  %vm3796 = vweird.f32 %v3787
  %vm3797 = vweird.f32 %v3790
  %vm3798 = vmor %vm3796, %vm3797
  %v3799 = vsel %vm3798, %v3790, %v3795
  %v3800 = vrsqrt.pop %v3788
  %v3801 = vmul.f32 %v3800, %v3788
  %v3802 = vmul.f32 %v3801, %v3800
  %v3803 = vmul.f32 0.5, %v3802
  %v3804 = vsub.f32 1.5, %v3803
  %v3805 = vmul.f32 %v3800, %v3804
  %vm3806 = vweird.f32 %v3788
  %vm3807 = vweird.f32 %v3800
  %vm3808 = vmor %vm3806, %vm3807
  %v3809 = vsel %vm3808, %v3800, %v3805
  %v3810 = vrsqrt.pop %v3789
  %v3811 = vmul.f32 %v3810, %v3789
  %v3812 = vmul.f32 %v3811, %v3810
  %v3813 = vmul.f32 0.5, %v3812
  %v3814 = vsub.f32 1.5, %v3813
  %v3815 = vmul.f32 %v3810, %v3814
  %vm3816 = vweird.f32 %v3789
  %vm3817 = vweird.f32 %v3810
  %vm3818 = vmor %vm3816, %vm3817
  %v3819 = vsel %vm3818, %v3810, %v3815
  %v3820 = vmul.f32 %v3769, %v3799
  %v3821 = vmul.f32 %v3770, %v3809
  %v3822 = vmul.f32 %v3771, %v3819
  %s3823 = scalar_lea.vmem %s11, 16
  %v3824 = vld [vmem:[%s3823] sm:$0xff]
  %v3825 = vld [vmem:[%s3823 + $0x8] sm:$0xf]
  %s3826 = scalar_lea.vmem %s12, 1
  %v3827 = vld [vmem:[%s3826] sm:$0x1]
  %v3829 = vperm.slane %v3827, 0
  %v3832 = vsel %vm322, %v3820, 0
  %v3835 = vsel %vm322, %v3821, 0
  %v3838 = vsel %vm322, %v3822, 0
  %v3841 = vsel %vm411, %v3825, 0
  %3843 = vmatpush.msra.mxu0 0.0
  %3844 = vmatpush.msra.mxu0 0.0
  %3845 = vmatpush.msra.mxu0 0.0
  %3846 = vmatpush.msra.mxu0 0.0
  %3847 = vmatpush.msra.mxu0 0.0
  %3848 = vmatpush.msra.mxu0 0.0
  %3849 = vmatpush.msra.mxu0 0.0
  %3850 = vmatpush.msra.mxu0 0.0
  %3851 = vmatpush.msra.mxu0 0.0
  %3852 = vmatpush.msra.mxu0 0.0
  %3853 = vmatpush.msra.mxu0 0.0
  %3854 = vmatpush.msra.mxu0 0.0
  %3855 = vmatpush.msra.mxu0 0.0
  %3856 = vmatpush.msra.mxu0 0.0
  %v3857 = vand.u32 %v3841, 4294901760
  %3858 = vmatpush.msra.mxu0 %v3857
  %v3859 = vand.u32 %v3824, 4294901760
  %3860 = vmatpush.msra.mxu0 %v3859
  %v3861 = vand.u32 %v3832, 4294901760
  %v3862 = vsub.f32 %v3832, %v3861
  %v3863 = vand.u32 %v3862, 4294901760
  %v3864 = vsub.f32 %v3862, %v3863
  %v3865 = vand.u32 %v3864, 4294901760
  %3866 = vmatmul.f32.gmra.mxu0 %v3865
  %v3867 = vpop.f32.mrf.mxu0
  %v3868 = vadd.f32 %v3829, %v3867
  %v3869 = vand.u32 %v3835, 4294901760
  %v3870 = vsub.f32 %v3835, %v3869
  %v3871 = vand.u32 %v3870, 4294901760
  %v3872 = vsub.f32 %v3870, %v3871
  %v3873 = vand.u32 %v3872, 4294901760
  %3874 = vmatmul.f32.gmra.mxu0 %v3873
  %v3875 = vpop.f32.mrf.mxu0
  %v3876 = vadd.f32 %v3829, %v3875
  %v3877 = vand.u32 %v3838, 4294901760
  %v3878 = vsub.f32 %v3838, %v3877
  %v3879 = vand.u32 %v3878, 4294901760
  %v3880 = vsub.f32 %v3878, %v3879
  %v3881 = vand.u32 %v3880, 4294901760
  %3882 = vmatmul.f32.gmra.mxu0 %v3881
  %v3883 = vpop.f32.mrf.mxu0
  %v3884 = vadd.f32 %v3829, %v3883
  %3885 = vdwg.mxu0
  %3886 = vmatpush.msra.mxu0 0.0
  %3887 = vmatpush.msra.mxu0 0.0
  %3888 = vmatpush.msra.mxu0 0.0
  %3889 = vmatpush.msra.mxu0 0.0
  %3890 = vmatpush.msra.mxu0 0.0
  %3891 = vmatpush.msra.mxu0 0.0
  %3892 = vmatpush.msra.mxu0 0.0
  %3893 = vmatpush.msra.mxu0 0.0
  %3894 = vmatpush.msra.mxu0 0.0
  %3895 = vmatpush.msra.mxu0 0.0
  %3896 = vmatpush.msra.mxu0 0.0
  %3897 = vmatpush.msra.mxu0 0.0
  %3898 = vmatpush.msra.mxu0 0.0
  %3899 = vmatpush.msra.mxu0 0.0
  %v3900 = vand.u32 %v3841, 4294901760
  %v3901 = vsub.f32 %v3841, %v3900
  %v3902 = vand.u32 %v3901, 4294901760
  %v3903 = vsub.f32 %v3901, %v3902
  %v3904 = vand.u32 %v3903, 4294901760
  %3905 = vmatpush.msra.mxu0 %v3904
  %v3906 = vand.u32 %v3824, 4294901760
  %v3907 = vsub.f32 %v3824, %v3906
  %v3908 = vand.u32 %v3907, 4294901760
  %v3909 = vsub.f32 %v3907, %v3908
  %v3910 = vand.u32 %v3909, 4294901760
  %3911 = vmatpush.msra.mxu0 %v3910
  %v3912 = vand.u32 %v3832, 4294901760
  %3913 = vmatmul.f32.gmra.mxu0 %v3912
  %v3914 = vpop.f32.mrf.mxu0
  %v3915 = vadd.f32 %v3868, %v3914
  %v3916 = vand.u32 %v3835, 4294901760
  %3917 = vmatmul.f32.gmra.mxu0 %v3916
  %v3918 = vpop.f32.mrf.mxu0
  %v3919 = vadd.f32 %v3876, %v3918
  %v3920 = vand.u32 %v3838, 4294901760
  %3921 = vmatmul.f32.gmra.mxu0 %v3920
  %v3922 = vpop.f32.mrf.mxu0
  %v3923 = vadd.f32 %v3884, %v3922
  %3924 = vdwg.mxu0
  %3925 = vmatpush.msra.mxu0 0.0
  %3926 = vmatpush.msra.mxu0 0.0
  %3927 = vmatpush.msra.mxu0 0.0
  %3928 = vmatpush.msra.mxu0 0.0
  %3929 = vmatpush.msra.mxu0 0.0
  %3930 = vmatpush.msra.mxu0 0.0
  %3931 = vmatpush.msra.mxu0 0.0
  %3932 = vmatpush.msra.mxu0 0.0
  %3933 = vmatpush.msra.mxu0 0.0
  %3934 = vmatpush.msra.mxu0 0.0
  %3935 = vmatpush.msra.mxu0 0.0
  %3936 = vmatpush.msra.mxu0 0.0
  %3937 = vmatpush.msra.mxu0 0.0
  %3938 = vmatpush.msra.mxu0 0.0
  %v3939 = vand.u32 %v3841, 4294901760
  %v3940 = vsub.f32 %v3841, %v3939
  %3941 = vmatpush.msra.mxu0 %v3940
  %v3942 = vand.u32 %v3824, 4294901760
  %v3943 = vsub.f32 %v3824, %v3942
  %3944 = vmatpush.msra.mxu0 %v3943
  %v3945 = vand.u32 %v3832, 4294901760
  %v3946 = vsub.f32 %v3832, %v3945
  %3947 = vmatmul.f32.gmra.mxu0 %v3946
  %v3948 = vpop.f32.mrf.mxu0
  %v3949 = vadd.f32 %v3915, %v3948
  %v3950 = vand.u32 %v3835, 4294901760
  %v3951 = vsub.f32 %v3835, %v3950
  %3952 = vmatmul.f32.gmra.mxu0 %v3951
  %v3953 = vpop.f32.mrf.mxu0
  %v3954 = vadd.f32 %v3919, %v3953
  %v3955 = vand.u32 %v3838, 4294901760
  %v3956 = vsub.f32 %v3838, %v3955
  %3957 = vmatmul.f32.gmra.mxu0 %v3956
  %v3958 = vpop.f32.mrf.mxu0
  %v3959 = vadd.f32 %v3923, %v3958
  %3960 = vdwg.mxu0
  %3961 = vmatpush.msra.mxu0 0.0
  %3962 = vmatpush.msra.mxu0 0.0
  %3963 = vmatpush.msra.mxu0 0.0
  %3964 = vmatpush.msra.mxu0 0.0
  %3965 = vmatpush.msra.mxu0 0.0
  %3966 = vmatpush.msra.mxu0 0.0
  %3967 = vmatpush.msra.mxu0 0.0
  %3968 = vmatpush.msra.mxu0 0.0
  %3969 = vmatpush.msra.mxu0 0.0
  %3970 = vmatpush.msra.mxu0 0.0
  %3971 = vmatpush.msra.mxu0 0.0
  %3972 = vmatpush.msra.mxu0 0.0
  %3973 = vmatpush.msra.mxu0 0.0
  %3974 = vmatpush.msra.mxu0 0.0
  %v3975 = vand.u32 %v3841, 4294901760
  %3976 = vmatpush.msra.mxu0 %v3975
  %v3977 = vand.u32 %v3824, 4294901760
  %3978 = vmatpush.msra.mxu0 %v3977
  %v3979 = vand.u32 %v3832, 4294901760
  %v3980 = vsub.f32 %v3832, %v3979
  %v3981 = vand.u32 %v3980, 4294901760
  %3982 = vmatmul.f32.gmra.mxu0 %v3981
  %v3983 = vpop.f32.mrf.mxu0
  %v3984 = vadd.f32 %v3949, %v3983
  %v3985 = vand.u32 %v3835, 4294901760
  %v3986 = vsub.f32 %v3835, %v3985
  %v3987 = vand.u32 %v3986, 4294901760
  %3988 = vmatmul.f32.gmra.mxu0 %v3987
  %v3989 = vpop.f32.mrf.mxu0
  %v3990 = vadd.f32 %v3954, %v3989
  %v3991 = vand.u32 %v3838, 4294901760
  %v3992 = vsub.f32 %v3838, %v3991
  %v3993 = vand.u32 %v3992, 4294901760
  %3994 = vmatmul.f32.gmra.mxu0 %v3993
  %v3995 = vpop.f32.mrf.mxu0
  %v3996 = vadd.f32 %v3959, %v3995
  %3997 = vdwg.mxu0
  %3998 = vmatpush.msra.mxu0 0.0
  %3999 = vmatpush.msra.mxu0 0.0
  %4000 = vmatpush.msra.mxu0 0.0
  %4001 = vmatpush.msra.mxu0 0.0
  %4002 = vmatpush.msra.mxu0 0.0
  %4003 = vmatpush.msra.mxu0 0.0
  %4004 = vmatpush.msra.mxu0 0.0
  %4005 = vmatpush.msra.mxu0 0.0
  %4006 = vmatpush.msra.mxu0 0.0
  %4007 = vmatpush.msra.mxu0 0.0
  %4008 = vmatpush.msra.mxu0 0.0
  %4009 = vmatpush.msra.mxu0 0.0
  %4010 = vmatpush.msra.mxu0 0.0
  %4011 = vmatpush.msra.mxu0 0.0
  %v4012 = vand.u32 %v3841, 4294901760
  %v4013 = vsub.f32 %v3841, %v4012
  %v4014 = vand.u32 %v4013, 4294901760
  %4015 = vmatpush.msra.mxu0 %v4014
  %v4016 = vand.u32 %v3824, 4294901760
  %v4017 = vsub.f32 %v3824, %v4016
  %v4018 = vand.u32 %v4017, 4294901760
  %4019 = vmatpush.msra.mxu0 %v4018
  %v4020 = vand.u32 %v3832, 4294901760
  %4021 = vmatmul.f32.gmra.mxu0 %v4020
  %v4022 = vpop.f32.mrf.mxu0
  %v4023 = vadd.f32 %v3984, %v4022
  %v4024 = vand.u32 %v3835, 4294901760
  %4025 = vmatmul.f32.gmra.mxu0 %v4024
  %v4026 = vpop.f32.mrf.mxu0
  %v4027 = vadd.f32 %v3990, %v4026
  %v4028 = vand.u32 %v3838, 4294901760
  %4029 = vmatmul.f32.gmra.mxu0 %v4028
  %v4030 = vpop.f32.mrf.mxu0
  %v4031 = vadd.f32 %v3996, %v4030
  %4032 = vdwg.mxu0
  %4033 = vmatpush.msra.mxu0 0.0
  %4034 = vmatpush.msra.mxu0 0.0
  %4035 = vmatpush.msra.mxu0 0.0
  %4036 = vmatpush.msra.mxu0 0.0
  %4037 = vmatpush.msra.mxu0 0.0
  %4038 = vmatpush.msra.mxu0 0.0
  %4039 = vmatpush.msra.mxu0 0.0
  %4040 = vmatpush.msra.mxu0 0.0
  %4041 = vmatpush.msra.mxu0 0.0
  %4042 = vmatpush.msra.mxu0 0.0
  %4043 = vmatpush.msra.mxu0 0.0
  %4044 = vmatpush.msra.mxu0 0.0
  %4045 = vmatpush.msra.mxu0 0.0
  %4046 = vmatpush.msra.mxu0 0.0
  %v4047 = vand.u32 %v3841, 4294901760
  %4048 = vmatpush.msra.mxu0 %v4047
  %v4049 = vand.u32 %v3824, 4294901760
  %4050 = vmatpush.msra.mxu0 %v4049
  %v4051 = vand.u32 %v3832, 4294901760
  %4052 = vmatmul.f32.gmra.mxu0 %v4051
  %v4053 = vpop.f32.mrf.mxu0
  %v4054 = vadd.f32 %v4023, %v4053
  %v4055 = vand.u32 %v3835, 4294901760
  %4056 = vmatmul.f32.gmra.mxu0 %v4055
  %v4057 = vpop.f32.mrf.mxu0
  %v4058 = vadd.f32 %v4027, %v4057
  %v4059 = vand.u32 %v3838, 4294901760
  %4060 = vmatmul.f32.gmra.mxu0 %v4059
  %v4061 = vpop.f32.mrf.mxu0
  %v4062 = vadd.f32 %v4031, %v4061
  %4063 = vdwg.mxu0
  %v4064 = vmax.f32 %v4054, 0.0
  %v4065 = vmax.f32 %v4058, 0.0
  %v4066 = vmax.f32 %v4062, 0.0
  %s4067 = scalar_lea.vmem %s13, 128
  %v4068 = vld [vmem:[%s4067] sm:$0xff]
  %v4069 = vld [vmem:[%s4067 + $0x8] sm:$0xff]
  %v4070 = vld [vmem:[%s4067 + $0x10] sm:$0xff]
  %v4071 = vld [vmem:[%s4067 + $0x18] sm:$0xff]
  %v4072 = vld [vmem:[%s4067 + $0x20] sm:$0xff]
  %v4073 = vld [vmem:[%s4067 + $0x28] sm:$0xff]
  %v4074 = vld [vmem:[%s4067 + $0x30] sm:$0xff]
  %v4075 = vld [vmem:[%s4067 + $0x38] sm:$0xff]
  %v4076 = vld [vmem:[%s4067 + $0x40] sm:$0xff]
  %v4077 = vld [vmem:[%s4067 + $0x48] sm:$0xff]
  %v4078 = vld [vmem:[%s4067 + $0x50] sm:$0xff]
  %v4079 = vld [vmem:[%s4067 + $0x58] sm:$0xff]
  %v4080 = vld [vmem:[%s4067 + $0x60] sm:$0xff]
  %v4081 = vld [vmem:[%s4067 + $0x68] sm:$0xff]
  %v4082 = vld [vmem:[%s4067 + $0x70] sm:$0xff]
  %v4083 = vld [vmem:[%s4067 + $0x78] sm:$0xff]
  %s4084 = scalar_lea.vmem %s14, 1
  %v4085 = vld [vmem:[%s4084] sm:$0x1]
  %v4087 = vperm.slane %v4085, 0
  %v4089 = vand.u32 %v4083, 4294901760
  %4090 = vmatpush.msra.mxu0 %v4089
  %v4091 = vand.u32 %v4082, 4294901760
  %4092 = vmatpush.msra.mxu0 %v4091
  %v4093 = vand.u32 %v4081, 4294901760
  %4094 = vmatpush.msra.mxu0 %v4093
  %v4095 = vand.u32 %v4080, 4294901760
  %4096 = vmatpush.msra.mxu0 %v4095
  %v4097 = vand.u32 %v4079, 4294901760
  %4098 = vmatpush.msra.mxu0 %v4097
  %v4099 = vand.u32 %v4078, 4294901760
  %4100 = vmatpush.msra.mxu0 %v4099
  %v4101 = vand.u32 %v4077, 4294901760
  %4102 = vmatpush.msra.mxu0 %v4101
  %v4103 = vand.u32 %v4076, 4294901760
  %4104 = vmatpush.msra.mxu0 %v4103
  %v4105 = vand.u32 %v4075, 4294901760
  %4106 = vmatpush.msra.mxu0 %v4105
  %v4107 = vand.u32 %v4074, 4294901760
  %4108 = vmatpush.msra.mxu0 %v4107
  %v4109 = vand.u32 %v4073, 4294901760
  %4110 = vmatpush.msra.mxu0 %v4109
  %v4111 = vand.u32 %v4072, 4294901760
  %4112 = vmatpush.msra.mxu0 %v4111
  %v4113 = vand.u32 %v4071, 4294901760
  %4114 = vmatpush.msra.mxu0 %v4113
  %v4115 = vand.u32 %v4070, 4294901760
  %4116 = vmatpush.msra.mxu0 %v4115
  %v4117 = vand.u32 %v4069, 4294901760
  %4118 = vmatpush.msra.mxu0 %v4117
  %v4119 = vand.u32 %v4068, 4294901760
  %4120 = vmatpush.msra.mxu0 %v4119
  %v4121 = vand.u32 %v4064, 4294901760
  %v4122 = vsub.f32 %v4064, %v4121
  %v4123 = vand.u32 %v4122, 4294901760
  %v4124 = vsub.f32 %v4122, %v4123
  %v4125 = vand.u32 %v4124, 4294901760
  %4126 = vmatmul.f32.gmra.mxu0 %v4125
  %v4127 = vpop.f32.mrf.mxu0
  %v4128 = vadd.f32 %v4087, %v4127
  %v4129 = vand.u32 %v4065, 4294901760
  %v4130 = vsub.f32 %v4065, %v4129
  %v4131 = vand.u32 %v4130, 4294901760
  %v4132 = vsub.f32 %v4130, %v4131
  %v4133 = vand.u32 %v4132, 4294901760
  %4134 = vmatmul.f32.gmra.mxu0 %v4133
  %v4135 = vpop.f32.mrf.mxu0
  %v4136 = vadd.f32 %v4087, %v4135
  %v4137 = vand.u32 %v4066, 4294901760
  %v4138 = vsub.f32 %v4066, %v4137
  %v4139 = vand.u32 %v4138, 4294901760
  %v4140 = vsub.f32 %v4138, %v4139
  %v4141 = vand.u32 %v4140, 4294901760
  %4142 = vmatmul.f32.gmra.mxu0 %v4141
  %v4143 = vpop.f32.mrf.mxu0
  %v4144 = vadd.f32 %v4087, %v4143
  %4145 = vdwg.mxu0
  %v4146 = vand.u32 %v4083, 4294901760
  %v4147 = vsub.f32 %v4083, %v4146
  %v4148 = vand.u32 %v4147, 4294901760
  %v4149 = vsub.f32 %v4147, %v4148
  %v4150 = vand.u32 %v4149, 4294901760
  %4151 = vmatpush.msra.mxu0 %v4150
  %v4152 = vand.u32 %v4082, 4294901760
  %v4153 = vsub.f32 %v4082, %v4152
  %v4154 = vand.u32 %v4153, 4294901760
  %v4155 = vsub.f32 %v4153, %v4154
  %v4156 = vand.u32 %v4155, 4294901760
  %4157 = vmatpush.msra.mxu0 %v4156
  %v4158 = vand.u32 %v4081, 4294901760
  %v4159 = vsub.f32 %v4081, %v4158
  %v4160 = vand.u32 %v4159, 4294901760
  %v4161 = vsub.f32 %v4159, %v4160
  %v4162 = vand.u32 %v4161, 4294901760
  %4163 = vmatpush.msra.mxu0 %v4162
  %v4164 = vand.u32 %v4080, 4294901760
  %v4165 = vsub.f32 %v4080, %v4164
  %v4166 = vand.u32 %v4165, 4294901760
  %v4167 = vsub.f32 %v4165, %v4166
  %v4168 = vand.u32 %v4167, 4294901760
  %4169 = vmatpush.msra.mxu0 %v4168
  %v4170 = vand.u32 %v4079, 4294901760
  %v4171 = vsub.f32 %v4079, %v4170
  %v4172 = vand.u32 %v4171, 4294901760
  %v4173 = vsub.f32 %v4171, %v4172
  %v4174 = vand.u32 %v4173, 4294901760
  %4175 = vmatpush.msra.mxu0 %v4174
  %v4176 = vand.u32 %v4078, 4294901760
  %v4177 = vsub.f32 %v4078, %v4176
  %v4178 = vand.u32 %v4177, 4294901760
  %v4179 = vsub.f32 %v4177, %v4178
  %v4180 = vand.u32 %v4179, 4294901760
  %4181 = vmatpush.msra.mxu0 %v4180
  %v4182 = vand.u32 %v4077, 4294901760
  %v4183 = vsub.f32 %v4077, %v4182
  %v4184 = vand.u32 %v4183, 4294901760
  %v4185 = vsub.f32 %v4183, %v4184
  %v4186 = vand.u32 %v4185, 4294901760
  %4187 = vmatpush.msra.mxu0 %v4186
  %v4188 = vand.u32 %v4076, 4294901760
  %v4189 = vsub.f32 %v4076, %v4188
  %v4190 = vand.u32 %v4189, 4294901760
  %v4191 = vsub.f32 %v4189, %v4190
  %v4192 = vand.u32 %v4191, 4294901760
  %4193 = vmatpush.msra.mxu0 %v4192
  %v4194 = vand.u32 %v4075, 4294901760
  %v4195 = vsub.f32 %v4075, %v4194
  %v4196 = vand.u32 %v4195, 4294901760
  %v4197 = vsub.f32 %v4195, %v4196
  %v4198 = vand.u32 %v4197, 4294901760
  %4199 = vmatpush.msra.mxu0 %v4198
  %v4200 = vand.u32 %v4074, 4294901760
  %v4201 = vsub.f32 %v4074, %v4200
  %v4202 = vand.u32 %v4201, 4294901760
  %v4203 = vsub.f32 %v4201, %v4202
  %v4204 = vand.u32 %v4203, 4294901760
  %4205 = vmatpush.msra.mxu0 %v4204
  %v4206 = vand.u32 %v4073, 4294901760
  %v4207 = vsub.f32 %v4073, %v4206
  %v4208 = vand.u32 %v4207, 4294901760
  %v4209 = vsub.f32 %v4207, %v4208
  %v4210 = vand.u32 %v4209, 4294901760
  %4211 = vmatpush.msra.mxu0 %v4210
  %v4212 = vand.u32 %v4072, 4294901760
  %v4213 = vsub.f32 %v4072, %v4212
  %v4214 = vand.u32 %v4213, 4294901760
  %v4215 = vsub.f32 %v4213, %v4214
  %v4216 = vand.u32 %v4215, 4294901760
  %4217 = vmatpush.msra.mxu0 %v4216
  %v4218 = vand.u32 %v4071, 4294901760
  %v4219 = vsub.f32 %v4071, %v4218
  %v4220 = vand.u32 %v4219, 4294901760
  %v4221 = vsub.f32 %v4219, %v4220
  %v4222 = vand.u32 %v4221, 4294901760
  %4223 = vmatpush.msra.mxu0 %v4222
  %v4224 = vand.u32 %v4070, 4294901760
  %v4225 = vsub.f32 %v4070, %v4224
  %v4226 = vand.u32 %v4225, 4294901760
  %v4227 = vsub.f32 %v4225, %v4226
  %v4228 = vand.u32 %v4227, 4294901760
  %4229 = vmatpush.msra.mxu0 %v4228
  %v4230 = vand.u32 %v4069, 4294901760
  %v4231 = vsub.f32 %v4069, %v4230
  %v4232 = vand.u32 %v4231, 4294901760
  %v4233 = vsub.f32 %v4231, %v4232
  %v4234 = vand.u32 %v4233, 4294901760
  %4235 = vmatpush.msra.mxu0 %v4234
  %v4236 = vand.u32 %v4068, 4294901760
  %v4237 = vsub.f32 %v4068, %v4236
  %v4238 = vand.u32 %v4237, 4294901760
  %v4239 = vsub.f32 %v4237, %v4238
  %v4240 = vand.u32 %v4239, 4294901760
  %4241 = vmatpush.msra.mxu0 %v4240
  %v4242 = vand.u32 %v4064, 4294901760
  %4243 = vmatmul.f32.gmra.mxu0 %v4242
  %v4244 = vpop.f32.mrf.mxu0
  %v4245 = vadd.f32 %v4128, %v4244
  %v4246 = vand.u32 %v4065, 4294901760
  %4247 = vmatmul.f32.gmra.mxu0 %v4246
  %v4248 = vpop.f32.mrf.mxu0
  %v4249 = vadd.f32 %v4136, %v4248
  %v4250 = vand.u32 %v4066, 4294901760
  %4251 = vmatmul.f32.gmra.mxu0 %v4250
  %v4252 = vpop.f32.mrf.mxu0
  %v4253 = vadd.f32 %v4144, %v4252
  %4254 = vdwg.mxu0
  %v4255 = vand.u32 %v4083, 4294901760
  %v4256 = vsub.f32 %v4083, %v4255
  %4257 = vmatpush.msra.mxu0 %v4256
  %v4258 = vand.u32 %v4082, 4294901760
  %v4259 = vsub.f32 %v4082, %v4258
  %4260 = vmatpush.msra.mxu0 %v4259
  %v4261 = vand.u32 %v4081, 4294901760
  %v4262 = vsub.f32 %v4081, %v4261
  %4263 = vmatpush.msra.mxu0 %v4262
  %v4264 = vand.u32 %v4080, 4294901760
  %v4265 = vsub.f32 %v4080, %v4264
  %4266 = vmatpush.msra.mxu0 %v4265
  %v4267 = vand.u32 %v4079, 4294901760
  %v4268 = vsub.f32 %v4079, %v4267
  %4269 = vmatpush.msra.mxu0 %v4268
  %v4270 = vand.u32 %v4078, 4294901760
  %v4271 = vsub.f32 %v4078, %v4270
  %4272 = vmatpush.msra.mxu0 %v4271
  %v4273 = vand.u32 %v4077, 4294901760
  %v4274 = vsub.f32 %v4077, %v4273
  %4275 = vmatpush.msra.mxu0 %v4274
  %v4276 = vand.u32 %v4076, 4294901760
  %v4277 = vsub.f32 %v4076, %v4276
  %4278 = vmatpush.msra.mxu0 %v4277
  %v4279 = vand.u32 %v4075, 4294901760
  %v4280 = vsub.f32 %v4075, %v4279
  %4281 = vmatpush.msra.mxu0 %v4280
  %v4282 = vand.u32 %v4074, 4294901760
  %v4283 = vsub.f32 %v4074, %v4282
  %4284 = vmatpush.msra.mxu0 %v4283
  %v4285 = vand.u32 %v4073, 4294901760
  %v4286 = vsub.f32 %v4073, %v4285
  %4287 = vmatpush.msra.mxu0 %v4286
  %v4288 = vand.u32 %v4072, 4294901760
  %v4289 = vsub.f32 %v4072, %v4288
  %4290 = vmatpush.msra.mxu0 %v4289
  %v4291 = vand.u32 %v4071, 4294901760
  %v4292 = vsub.f32 %v4071, %v4291
  %4293 = vmatpush.msra.mxu0 %v4292
  %v4294 = vand.u32 %v4070, 4294901760
  %v4295 = vsub.f32 %v4070, %v4294
  %4296 = vmatpush.msra.mxu0 %v4295
  %v4297 = vand.u32 %v4069, 4294901760
  %v4298 = vsub.f32 %v4069, %v4297
  %4299 = vmatpush.msra.mxu0 %v4298
  %v4300 = vand.u32 %v4068, 4294901760
  %v4301 = vsub.f32 %v4068, %v4300
  %4302 = vmatpush.msra.mxu0 %v4301
  %v4303 = vand.u32 %v4064, 4294901760
  %v4304 = vsub.f32 %v4064, %v4303
  %4305 = vmatmul.f32.gmra.mxu0 %v4304
  %v4306 = vpop.f32.mrf.mxu0
  %v4307 = vadd.f32 %v4245, %v4306
  %v4308 = vand.u32 %v4065, 4294901760
  %v4309 = vsub.f32 %v4065, %v4308
  %4310 = vmatmul.f32.gmra.mxu0 %v4309
  %v4311 = vpop.f32.mrf.mxu0
  %v4312 = vadd.f32 %v4249, %v4311
  %v4313 = vand.u32 %v4066, 4294901760
  %v4314 = vsub.f32 %v4066, %v4313
  %4315 = vmatmul.f32.gmra.mxu0 %v4314
  %v4316 = vpop.f32.mrf.mxu0
  %v4317 = vadd.f32 %v4253, %v4316
  %4318 = vdwg.mxu0
  %v4319 = vand.u32 %v4083, 4294901760
  %4320 = vmatpush.msra.mxu0 %v4319
  %v4321 = vand.u32 %v4082, 4294901760
  %4322 = vmatpush.msra.mxu0 %v4321
  %v4323 = vand.u32 %v4081, 4294901760
  %4324 = vmatpush.msra.mxu0 %v4323
  %v4325 = vand.u32 %v4080, 4294901760
  %4326 = vmatpush.msra.mxu0 %v4325
  %v4327 = vand.u32 %v4079, 4294901760
  %4328 = vmatpush.msra.mxu0 %v4327
  %v4329 = vand.u32 %v4078, 4294901760
  %4330 = vmatpush.msra.mxu0 %v4329
  %v4331 = vand.u32 %v4077, 4294901760
  %4332 = vmatpush.msra.mxu0 %v4331
  %v4333 = vand.u32 %v4076, 4294901760
  %4334 = vmatpush.msra.mxu0 %v4333
  %v4335 = vand.u32 %v4075, 4294901760
  %4336 = vmatpush.msra.mxu0 %v4335
  %v4337 = vand.u32 %v4074, 4294901760
  %4338 = vmatpush.msra.mxu0 %v4337
  %v4339 = vand.u32 %v4073, 4294901760
  %4340 = vmatpush.msra.mxu0 %v4339
  %v4341 = vand.u32 %v4072, 4294901760
  %4342 = vmatpush.msra.mxu0 %v4341
  %v4343 = vand.u32 %v4071, 4294901760
  %4344 = vmatpush.msra.mxu0 %v4343
  %v4345 = vand.u32 %v4070, 4294901760
  %4346 = vmatpush.msra.mxu0 %v4345
  %v4347 = vand.u32 %v4069, 4294901760
  %4348 = vmatpush.msra.mxu0 %v4347
  %v4349 = vand.u32 %v4068, 4294901760
  %4350 = vmatpush.msra.mxu0 %v4349
  %v4351 = vand.u32 %v4064, 4294901760
  %v4352 = vsub.f32 %v4064, %v4351
  %v4353 = vand.u32 %v4352, 4294901760
  %4354 = vmatmul.f32.gmra.mxu0 %v4353
  %v4355 = vpop.f32.mrf.mxu0
  %v4356 = vadd.f32 %v4307, %v4355
  %v4357 = vand.u32 %v4065, 4294901760
  %v4358 = vsub.f32 %v4065, %v4357
  %v4359 = vand.u32 %v4358, 4294901760
  %4360 = vmatmul.f32.gmra.mxu0 %v4359
  %v4361 = vpop.f32.mrf.mxu0
  %v4362 = vadd.f32 %v4312, %v4361
  %v4363 = vand.u32 %v4066, 4294901760
  %v4364 = vsub.f32 %v4066, %v4363
  %v4365 = vand.u32 %v4364, 4294901760
  %4366 = vmatmul.f32.gmra.mxu0 %v4365
  %v4367 = vpop.f32.mrf.mxu0
  %v4368 = vadd.f32 %v4317, %v4367
  %4369 = vdwg.mxu0
  %v4370 = vand.u32 %v4083, 4294901760
  %v4371 = vsub.f32 %v4083, %v4370
  %v4372 = vand.u32 %v4371, 4294901760
  %4373 = vmatpush.msra.mxu0 %v4372
  %v4374 = vand.u32 %v4082, 4294901760
  %v4375 = vsub.f32 %v4082, %v4374
  %v4376 = vand.u32 %v4375, 4294901760
  %4377 = vmatpush.msra.mxu0 %v4376
  %v4378 = vand.u32 %v4081, 4294901760
  %v4379 = vsub.f32 %v4081, %v4378
  %v4380 = vand.u32 %v4379, 4294901760
  %4381 = vmatpush.msra.mxu0 %v4380
  %v4382 = vand.u32 %v4080, 4294901760
  %v4383 = vsub.f32 %v4080, %v4382
  %v4384 = vand.u32 %v4383, 4294901760
  %4385 = vmatpush.msra.mxu0 %v4384
  %v4386 = vand.u32 %v4079, 4294901760
  %v4387 = vsub.f32 %v4079, %v4386
  %v4388 = vand.u32 %v4387, 4294901760
  %4389 = vmatpush.msra.mxu0 %v4388
  %v4390 = vand.u32 %v4078, 4294901760
  %v4391 = vsub.f32 %v4078, %v4390
  %v4392 = vand.u32 %v4391, 4294901760
  %4393 = vmatpush.msra.mxu0 %v4392
  %v4394 = vand.u32 %v4077, 4294901760
  %v4395 = vsub.f32 %v4077, %v4394
  %v4396 = vand.u32 %v4395, 4294901760
  %4397 = vmatpush.msra.mxu0 %v4396
  %v4398 = vand.u32 %v4076, 4294901760
  %v4399 = vsub.f32 %v4076, %v4398
  %v4400 = vand.u32 %v4399, 4294901760
  %4401 = vmatpush.msra.mxu0 %v4400
  %v4402 = vand.u32 %v4075, 4294901760
  %v4403 = vsub.f32 %v4075, %v4402
  %v4404 = vand.u32 %v4403, 4294901760
  %4405 = vmatpush.msra.mxu0 %v4404
  %v4406 = vand.u32 %v4074, 4294901760
  %v4407 = vsub.f32 %v4074, %v4406
  %v4408 = vand.u32 %v4407, 4294901760
  %4409 = vmatpush.msra.mxu0 %v4408
  %v4410 = vand.u32 %v4073, 4294901760
  %v4411 = vsub.f32 %v4073, %v4410
  %v4412 = vand.u32 %v4411, 4294901760
  %4413 = vmatpush.msra.mxu0 %v4412
  %v4414 = vand.u32 %v4072, 4294901760
  %v4415 = vsub.f32 %v4072, %v4414
  %v4416 = vand.u32 %v4415, 4294901760
  %4417 = vmatpush.msra.mxu0 %v4416
  %v4418 = vand.u32 %v4071, 4294901760
  %v4419 = vsub.f32 %v4071, %v4418
  %v4420 = vand.u32 %v4419, 4294901760
  %4421 = vmatpush.msra.mxu0 %v4420
  %v4422 = vand.u32 %v4070, 4294901760
  %v4423 = vsub.f32 %v4070, %v4422
  %v4424 = vand.u32 %v4423, 4294901760
  %4425 = vmatpush.msra.mxu0 %v4424
  %v4426 = vand.u32 %v4069, 4294901760
  %v4427 = vsub.f32 %v4069, %v4426
  %v4428 = vand.u32 %v4427, 4294901760
  %4429 = vmatpush.msra.mxu0 %v4428
  %v4430 = vand.u32 %v4068, 4294901760
  %v4431 = vsub.f32 %v4068, %v4430
  %v4432 = vand.u32 %v4431, 4294901760
  %4433 = vmatpush.msra.mxu0 %v4432
  %v4434 = vand.u32 %v4064, 4294901760
  %4435 = vmatmul.f32.gmra.mxu0 %v4434
  %v4436 = vpop.f32.mrf.mxu0
  %v4437 = vadd.f32 %v4356, %v4436
  %v4438 = vand.u32 %v4065, 4294901760
  %4439 = vmatmul.f32.gmra.mxu0 %v4438
  %v4440 = vpop.f32.mrf.mxu0
  %v4441 = vadd.f32 %v4362, %v4440
  %v4442 = vand.u32 %v4066, 4294901760
  %4443 = vmatmul.f32.gmra.mxu0 %v4442
  %v4444 = vpop.f32.mrf.mxu0
  %v4445 = vadd.f32 %v4368, %v4444
  %4446 = vdwg.mxu0
  %v4447 = vand.u32 %v4083, 4294901760
  %4448 = vmatpush.msra.mxu0 %v4447
  %v4449 = vand.u32 %v4082, 4294901760
  %4450 = vmatpush.msra.mxu0 %v4449
  %v4451 = vand.u32 %v4081, 4294901760
  %4452 = vmatpush.msra.mxu0 %v4451
  %v4453 = vand.u32 %v4080, 4294901760
  %4454 = vmatpush.msra.mxu0 %v4453
  %v4455 = vand.u32 %v4079, 4294901760
  %4456 = vmatpush.msra.mxu0 %v4455
  %v4457 = vand.u32 %v4078, 4294901760
  %4458 = vmatpush.msra.mxu0 %v4457
  %v4459 = vand.u32 %v4077, 4294901760
  %4460 = vmatpush.msra.mxu0 %v4459
  %v4461 = vand.u32 %v4076, 4294901760
  %4462 = vmatpush.msra.mxu0 %v4461
  %v4463 = vand.u32 %v4075, 4294901760
  %4464 = vmatpush.msra.mxu0 %v4463
  %v4465 = vand.u32 %v4074, 4294901760
  %4466 = vmatpush.msra.mxu0 %v4465
  %v4467 = vand.u32 %v4073, 4294901760
  %4468 = vmatpush.msra.mxu0 %v4467
  %v4469 = vand.u32 %v4072, 4294901760
  %4470 = vmatpush.msra.mxu0 %v4469
  %v4471 = vand.u32 %v4071, 4294901760
  %4472 = vmatpush.msra.mxu0 %v4471
  %v4473 = vand.u32 %v4070, 4294901760
  %4474 = vmatpush.msra.mxu0 %v4473
  %v4475 = vand.u32 %v4069, 4294901760
  %4476 = vmatpush.msra.mxu0 %v4475
  %v4477 = vand.u32 %v4068, 4294901760
  %4478 = vmatpush.msra.mxu0 %v4477
  %v4479 = vand.u32 %v4064, 4294901760
  %4480 = vmatmul.f32.gmra.mxu0 %v4479
  %v4481 = vpop.f32.mrf.mxu0
  %v4482 = vadd.f32 %v4437, %v4481
  %v4483 = vand.u32 %v4065, 4294901760
  %4484 = vmatmul.f32.gmra.mxu0 %v4483
  %v4485 = vpop.f32.mrf.mxu0
  %v4486 = vadd.f32 %v4441, %v4485
  %v4487 = vand.u32 %v4066, 4294901760
  %4488 = vmatmul.f32.gmra.mxu0 %v4487
  %v4489 = vpop.f32.mrf.mxu0
  %v4490 = vadd.f32 %v4445, %v4489
  %4491 = vdwg.mxu0
  %v4492 = vadd.f32 %v3754, %v4482
  %v4493 = vadd.f32 %v3755, %v4486
  %v4494 = vadd.f32 %v3756, %v4490
  %v4495 = vld [vmem:[%s15] sm:$0xff]
  %v4496 = vld [vmem:[%s15 + $0x8] sm:$0xf]
  %v4497 = vld [vmem:[%s16] sm:$0x1]
  %v4499 = vperm.slane %v4497, 0
  %v4502 = vsel %vm322, %v4492, 0
  %v4505 = vsel %vm322, %v4493, 0
  %v4508 = vsel %vm322, %v4494, 0
  %v4511 = vsel %vm411, %v4496, 0
  %4513 = vmatpush.msra.mxu0 0.0
  %4514 = vmatpush.msra.mxu0 0.0
  %4515 = vmatpush.msra.mxu0 0.0
  %4516 = vmatpush.msra.mxu0 0.0
  %4517 = vmatpush.msra.mxu0 0.0
  %4518 = vmatpush.msra.mxu0 0.0
  %4519 = vmatpush.msra.mxu0 0.0
  %4520 = vmatpush.msra.mxu0 0.0
  %4521 = vmatpush.msra.mxu0 0.0
  %4522 = vmatpush.msra.mxu0 0.0
  %4523 = vmatpush.msra.mxu0 0.0
  %4524 = vmatpush.msra.mxu0 0.0
  %4525 = vmatpush.msra.mxu0 0.0
  %4526 = vmatpush.msra.mxu0 0.0
  %v4527 = vand.u32 %v4511, 4294901760
  %4528 = vmatpush.msra.mxu0 %v4527
  %v4529 = vand.u32 %v4495, 4294901760
  %4530 = vmatpush.msra.mxu0 %v4529
  %v4531 = vand.u32 %v4502, 4294901760
  %v4532 = vsub.f32 %v4502, %v4531
  %v4533 = vand.u32 %v4532, 4294901760
  %v4534 = vsub.f32 %v4532, %v4533
  %v4535 = vand.u32 %v4534, 4294901760
  %4536 = vmatmul.f32.gmra.mxu0 %v4535
  %v4537 = vpop.f32.mrf.mxu0
  %v4538 = vadd.f32 %v4499, %v4537
  %v4539 = vand.u32 %v4505, 4294901760
  %v4540 = vsub.f32 %v4505, %v4539
  %v4541 = vand.u32 %v4540, 4294901760
  %v4542 = vsub.f32 %v4540, %v4541
  %v4543 = vand.u32 %v4542, 4294901760
  %4544 = vmatmul.f32.gmra.mxu0 %v4543
  %v4545 = vpop.f32.mrf.mxu0
  %v4546 = vadd.f32 %v4499, %v4545
  %v4547 = vand.u32 %v4508, 4294901760
  %v4548 = vsub.f32 %v4508, %v4547
  %v4549 = vand.u32 %v4548, 4294901760
  %v4550 = vsub.f32 %v4548, %v4549
  %v4551 = vand.u32 %v4550, 4294901760
  %4552 = vmatmul.f32.gmra.mxu0 %v4551
  %v4553 = vpop.f32.mrf.mxu0
  %v4554 = vadd.f32 %v4499, %v4553
  %4555 = vdwg.mxu0
  %4556 = vmatpush.msra.mxu0 0.0
  %4557 = vmatpush.msra.mxu0 0.0
  %4558 = vmatpush.msra.mxu0 0.0
  %4559 = vmatpush.msra.mxu0 0.0
  %4560 = vmatpush.msra.mxu0 0.0
  %4561 = vmatpush.msra.mxu0 0.0
  %4562 = vmatpush.msra.mxu0 0.0
  %4563 = vmatpush.msra.mxu0 0.0
  %4564 = vmatpush.msra.mxu0 0.0
  %4565 = vmatpush.msra.mxu0 0.0
  %4566 = vmatpush.msra.mxu0 0.0
  %4567 = vmatpush.msra.mxu0 0.0
  %4568 = vmatpush.msra.mxu0 0.0
  %4569 = vmatpush.msra.mxu0 0.0
  %v4570 = vand.u32 %v4511, 4294901760
  %v4571 = vsub.f32 %v4511, %v4570
  %v4572 = vand.u32 %v4571, 4294901760
  %v4573 = vsub.f32 %v4571, %v4572
  %v4574 = vand.u32 %v4573, 4294901760
  %4575 = vmatpush.msra.mxu0 %v4574
  %v4576 = vand.u32 %v4495, 4294901760
  %v4577 = vsub.f32 %v4495, %v4576
  %v4578 = vand.u32 %v4577, 4294901760
  %v4579 = vsub.f32 %v4577, %v4578
  %v4580 = vand.u32 %v4579, 4294901760
  %4581 = vmatpush.msra.mxu0 %v4580
  %v4582 = vand.u32 %v4502, 4294901760
  %4583 = vmatmul.f32.gmra.mxu0 %v4582
  %v4584 = vpop.f32.mrf.mxu0
  %v4585 = vadd.f32 %v4538, %v4584
  %v4586 = vand.u32 %v4505, 4294901760
  %4587 = vmatmul.f32.gmra.mxu0 %v4586
  %v4588 = vpop.f32.mrf.mxu0
  %v4589 = vadd.f32 %v4546, %v4588
  %v4590 = vand.u32 %v4508, 4294901760
  %4591 = vmatmul.f32.gmra.mxu0 %v4590
  %v4592 = vpop.f32.mrf.mxu0
  %v4593 = vadd.f32 %v4554, %v4592
  %4594 = vdwg.mxu0
  %4595 = vmatpush.msra.mxu0 0.0
  %4596 = vmatpush.msra.mxu0 0.0
  %4597 = vmatpush.msra.mxu0 0.0
  %4598 = vmatpush.msra.mxu0 0.0
  %4599 = vmatpush.msra.mxu0 0.0
  %4600 = vmatpush.msra.mxu0 0.0
  %4601 = vmatpush.msra.mxu0 0.0
  %4602 = vmatpush.msra.mxu0 0.0
  %4603 = vmatpush.msra.mxu0 0.0
  %4604 = vmatpush.msra.mxu0 0.0
  %4605 = vmatpush.msra.mxu0 0.0
  %4606 = vmatpush.msra.mxu0 0.0
  %4607 = vmatpush.msra.mxu0 0.0
  %4608 = vmatpush.msra.mxu0 0.0
  %v4609 = vand.u32 %v4511, 4294901760
  %v4610 = vsub.f32 %v4511, %v4609
  %4611 = vmatpush.msra.mxu0 %v4610
  %v4612 = vand.u32 %v4495, 4294901760
  %v4613 = vsub.f32 %v4495, %v4612
  %4614 = vmatpush.msra.mxu0 %v4613
  %v4615 = vand.u32 %v4502, 4294901760
  %v4616 = vsub.f32 %v4502, %v4615
  %4617 = vmatmul.f32.gmra.mxu0 %v4616
  %v4618 = vpop.f32.mrf.mxu0
  %v4619 = vadd.f32 %v4585, %v4618
  %v4620 = vand.u32 %v4505, 4294901760
  %v4621 = vsub.f32 %v4505, %v4620
  %4622 = vmatmul.f32.gmra.mxu0 %v4621
  %v4623 = vpop.f32.mrf.mxu0
  %v4624 = vadd.f32 %v4589, %v4623
  %v4625 = vand.u32 %v4508, 4294901760
  %v4626 = vsub.f32 %v4508, %v4625
  %4627 = vmatmul.f32.gmra.mxu0 %v4626
  %v4628 = vpop.f32.mrf.mxu0
  %v4629 = vadd.f32 %v4593, %v4628
  %4630 = vdwg.mxu0
  %4631 = vmatpush.msra.mxu0 0.0
  %4632 = vmatpush.msra.mxu0 0.0
  %4633 = vmatpush.msra.mxu0 0.0
  %4634 = vmatpush.msra.mxu0 0.0
  %4635 = vmatpush.msra.mxu0 0.0
  %4636 = vmatpush.msra.mxu0 0.0
  %4637 = vmatpush.msra.mxu0 0.0
  %4638 = vmatpush.msra.mxu0 0.0
  %4639 = vmatpush.msra.mxu0 0.0
  %4640 = vmatpush.msra.mxu0 0.0
  %4641 = vmatpush.msra.mxu0 0.0
  %4642 = vmatpush.msra.mxu0 0.0
  %4643 = vmatpush.msra.mxu0 0.0
  %4644 = vmatpush.msra.mxu0 0.0
  %v4645 = vand.u32 %v4511, 4294901760
  %4646 = vmatpush.msra.mxu0 %v4645
  %v4647 = vand.u32 %v4495, 4294901760
  %4648 = vmatpush.msra.mxu0 %v4647
  %v4649 = vand.u32 %v4502, 4294901760
  %v4650 = vsub.f32 %v4502, %v4649
  %v4651 = vand.u32 %v4650, 4294901760
  %4652 = vmatmul.f32.gmra.mxu0 %v4651
  %v4653 = vpop.f32.mrf.mxu0
  %v4654 = vadd.f32 %v4619, %v4653
  %v4655 = vand.u32 %v4505, 4294901760
  %v4656 = vsub.f32 %v4505, %v4655
  %v4657 = vand.u32 %v4656, 4294901760
  %4658 = vmatmul.f32.gmra.mxu0 %v4657
  %v4659 = vpop.f32.mrf.mxu0
  %v4660 = vadd.f32 %v4624, %v4659
  %v4661 = vand.u32 %v4508, 4294901760
  %v4662 = vsub.f32 %v4508, %v4661
  %v4663 = vand.u32 %v4662, 4294901760
  %4664 = vmatmul.f32.gmra.mxu0 %v4663
  %v4665 = vpop.f32.mrf.mxu0
  %v4666 = vadd.f32 %v4629, %v4665
  %4667 = vdwg.mxu0
  %4668 = vmatpush.msra.mxu0 0.0
  %4669 = vmatpush.msra.mxu0 0.0
  %4670 = vmatpush.msra.mxu0 0.0
  %4671 = vmatpush.msra.mxu0 0.0
  %4672 = vmatpush.msra.mxu0 0.0
  %4673 = vmatpush.msra.mxu0 0.0
  %4674 = vmatpush.msra.mxu0 0.0
  %4675 = vmatpush.msra.mxu0 0.0
  %4676 = vmatpush.msra.mxu0 0.0
  %4677 = vmatpush.msra.mxu0 0.0
  %4678 = vmatpush.msra.mxu0 0.0
  %4679 = vmatpush.msra.mxu0 0.0
  %4680 = vmatpush.msra.mxu0 0.0
  %4681 = vmatpush.msra.mxu0 0.0
  %v4682 = vand.u32 %v4511, 4294901760
  %v4683 = vsub.f32 %v4511, %v4682
  %v4684 = vand.u32 %v4683, 4294901760
  %4685 = vmatpush.msra.mxu0 %v4684
  %v4686 = vand.u32 %v4495, 4294901760
  %v4687 = vsub.f32 %v4495, %v4686
  %v4688 = vand.u32 %v4687, 4294901760
  %4689 = vmatpush.msra.mxu0 %v4688
  %v4690 = vand.u32 %v4502, 4294901760
  %4691 = vmatmul.f32.gmra.mxu0 %v4690
  %v4692 = vpop.f32.mrf.mxu0
  %v4693 = vadd.f32 %v4654, %v4692
  %v4694 = vand.u32 %v4505, 4294901760
  %4695 = vmatmul.f32.gmra.mxu0 %v4694
  %v4696 = vpop.f32.mrf.mxu0
  %v4697 = vadd.f32 %v4660, %v4696
  %v4698 = vand.u32 %v4508, 4294901760
  %4699 = vmatmul.f32.gmra.mxu0 %v4698
  %v4700 = vpop.f32.mrf.mxu0
  %v4701 = vadd.f32 %v4666, %v4700
  %4702 = vdwg.mxu0
  %4703 = vmatpush.msra.mxu0 0.0
  %4704 = vmatpush.msra.mxu0 0.0
  %4705 = vmatpush.msra.mxu0 0.0
  %4706 = vmatpush.msra.mxu0 0.0
  %4707 = vmatpush.msra.mxu0 0.0
  %4708 = vmatpush.msra.mxu0 0.0
  %4709 = vmatpush.msra.mxu0 0.0
  %4710 = vmatpush.msra.mxu0 0.0
  %4711 = vmatpush.msra.mxu0 0.0
  %4712 = vmatpush.msra.mxu0 0.0
  %4713 = vmatpush.msra.mxu0 0.0
  %4714 = vmatpush.msra.mxu0 0.0
  %4715 = vmatpush.msra.mxu0 0.0
  %4716 = vmatpush.msra.mxu0 0.0
  %v4717 = vand.u32 %v4511, 4294901760
  %4718 = vmatpush.msra.mxu0 %v4717
  %v4719 = vand.u32 %v4495, 4294901760
  %4720 = vmatpush.msra.mxu0 %v4719
  %v4721 = vand.u32 %v4502, 4294901760
  %4722 = vmatmul.f32.gmra.mxu0 %v4721
  %v4723 = vpop.f32.mrf.mxu0
  %v4724 = vadd.f32 %v4693, %v4723
  %v4725 = vand.u32 %v4505, 4294901760
  %4726 = vmatmul.f32.gmra.mxu0 %v4725
  %v4727 = vpop.f32.mrf.mxu0
  %v4728 = vadd.f32 %v4697, %v4727
  %v4729 = vand.u32 %v4508, 4294901760
  %4730 = vmatmul.f32.gmra.mxu0 %v4729
  %v4731 = vpop.f32.mrf.mxu0
  %v4732 = vadd.f32 %v4701, %v4731
  %4733 = vdwg.mxu0
  %4734 = vst [vmem:[%s17] sm:$0xff] %v4724
  %4735 = vst [vmem:[%s17 + $0x8] sm:$0xff] %v4728
  %4736 = vst [vmem:[%s17 + $0x10] sm:$0xff] %v4732
  // Predicated region
  $region70: #{tiny_transformer_packed.1} parent=0 // pred_check
    _
  $region71: #{tiny_transformer_packed.1} parent=0 // pred_check_branch
    %4738 = sbr.rel (0) target = $region73
  $region72: #{tiny_transformer_packed.1} parent=0 // pred_region
    _
  $region73: #{tiny_transformer_packed.1} parent=0 // pred_fallthru
    _
  // Predicated region
  $region74: #{tiny_transformer_packed.1} parent=0 // pred_check
    _
  $region75: #{tiny_transformer_packed.1} parent=0 // pred_check_branch
    %4740 = sbr.rel (0) target = $region77
  $region76: #{tiny_transformer_packed.1} parent=0 // pred_region
    _
  $region77: #{tiny_transformer_packed.1} parent=0 // pred_fallthru
    _

</llo_original>
